<compile_context>
chip_gen: v7x
topology: tpu7x:2x2x1
jax: 0.10.0
libtpu: 0.0.40
codegen_flags: <defaults>
</compile_context>

<pallas_src>
import functools
import math

import jax
import jax.numpy as jnp
from jax import lax
from jax.experimental import pallas as pl
from jax.experimental.pallas import tpu as pltpu


# ------------------------------ kernel helpers -------------------------------

def _layer_norm(x, ln_ref, idx, eps):
    """LayerNorm of f32 x:(L,D). ln_ref:(3,2,D); row `idx` holds [gamma; beta]."""
    ln = ln_ref[idx]                                     # (2, D)
    mu = jnp.mean(x, axis=-1, keepdims=True)
    var = jnp.mean(jnp.square(x - mu), axis=-1, keepdims=True)
    return (x - mu) * lax.rsqrt(var + eps) * ln[0:1, :] + ln[1:2, :]


def _heads_attention(q, k, v, *, num_heads, head_dim, scale, mxu_dtype,
                     extra_q=None, extra_k=None):
    """Multi-head attention on packed (Lq, H*hd) x (Lk, H*hd) -> (Lq, H*hd).

    If extra_q/extra_k are given, the per-head score is
      q_h.k_h^T + extra_q_h.extra_k_h^T
    which equals attention over the per-head concatenation [q_h|extra_q_h],
    [k_h|extra_k_h] used by the PyTorch cross-attention (head_size = 2*hd).
    Value head size equals head_dim in both attentions of this layer.
    """
    nt = (((1,), (1,)), ((), ()))          # contract last dim with last dim (q.k^T)
    outs = []
    for h in range(num_heads):
        sl = slice(h * head_dim, (h + 1) * head_dim)
        s = lax.dot_general(q[:, sl].astype(mxu_dtype), k[:, sl].astype(mxu_dtype),
                            nt, preferred_element_type=jnp.float32)
        if extra_q is not None:
            s = s + lax.dot_general(extra_q[:, sl].astype(mxu_dtype),
                                    extra_k[:, sl].astype(mxu_dtype),
                                    nt, preferred_element_type=jnp.float32)
        s = s * scale
        s = s - jnp.max(s, axis=-1, keepdims=True)
        p = jnp.exp(s)
        p = p * pl.reciprocal(jnp.sum(p, axis=-1, keepdims=True), approx=True)
        outs.append(jnp.dot(p.astype(mxu_dtype), v[:, sl].astype(mxu_dtype),
                            preferred_element_type=jnp.float32))
    return jnp.concatenate(outs, axis=-1)


# ------------------------------ fused kernel ---------------------------------

def _decoder_layer_kernel(
        tgt_ref, qpos_ref, qsine_ref, mem_ref, pos_ref,
        w_sa_tgt_ref, b_sa_tgt_ref,      # tgt       -> [sa_qc | sa_kc | sa_v]     (D,3D)
        w_qpos_ref, b_qpos_ref,          # query_pos -> [sa_qp | sa_kp | ca_qp]    (D,3D)
        w_ca_q_ref, b_ca_q_ref,          # tgt(norm1)-> ca_q_content               (D,D)
        w_ca_sine_ref, b_ca_sine_ref,    # query_sine-> ca_qpos_sine               (D,D)
        w_ca_mem_ref, b_ca_mem_ref,      # memory    -> [ca_kc | ca_v]             (D,2D)
        w_ca_kpos_ref, b_ca_kpos_ref,    # pos       -> ca_k_pos                   (D,D)
        w_ff1_ref, b_ff1_ref, w_ff2_ref, b_ff2_ref,
        ln_ref,                          # (3, 2, D): norm1 / norm2 / norm3
        out_ref,
        *, num_heads, head_dim, ca_add_pos, eps, mxu_dtype):
    d = num_heads * head_dim

    def proj(x, w_ref, b_ref):
        # bf16 MXU operands, f32 accumulation; bias added once (hoisted per proj).
        return (jnp.dot(x.astype(mxu_dtype), w_ref[...].astype(mxu_dtype),
                        preferred_element_type=jnp.float32) + b_ref[...])

    tgt = tgt_ref[0]                                       # (NQ, D) f32

    # ---------------- self-attention -----------------------------------------
    p_tgt = proj(tgt, w_sa_tgt_ref, b_sa_tgt_ref)          # (NQ, 3D) lane-dense
    p_qpos = proj(qpos_ref[0], w_qpos_ref, b_qpos_ref)     # (NQ, 3D) lane-dense
    q_sa = p_tgt[:, 0:d] + p_qpos[:, 0:d]
    k_sa = p_tgt[:, d:2 * d] + p_qpos[:, d:2 * d]
    v_sa = p_tgt[:, 2 * d:3 * d]
    ca_q_pos = p_qpos[:, 2 * d:3 * d]                      # reused by cross-attn

    tgt2 = _heads_attention(q_sa, k_sa, v_sa,
                            num_heads=num_heads, head_dim=head_dim,
                            scale=1.0 / math.sqrt(head_dim), mxu_dtype=mxu_dtype)
    tgt = _layer_norm(tgt + tgt2, ln_ref, 0, eps)          # norm1 (dropout = identity)
    # TODO(synk): sementic_fu=True branch (semantic_align / ContrastBlock / norm4)
    # omitted -- its `Prediction` sub-module is undefined in the reference source.

    # ---------------- cross-attention ------------------------------------------
    q_ca = proj(tgt, w_ca_q_ref, b_ca_q_ref)               # (NQ, D)
    if ca_add_pos:                                         # is_first or keep_query_pos
        q_ca = q_ca + ca_q_pos
    q_sine = proj(qsine_ref[0], w_ca_sine_ref, b_ca_sine_ref)   # (NQ, D)
    p_mem = proj(mem_ref[0], w_ca_mem_ref, b_ca_mem_ref)   # (HW, 2D)
    k_pos = proj(pos_ref[0], w_ca_kpos_ref, b_ca_kpos_ref) # (HW, D)
    k_ca = p_mem[:, 0:d] + k_pos if ca_add_pos else p_mem[:, 0:d]
    v_ca = p_mem[:, d:2 * d]

    # concat([q, q_sine]).concat([k, k_pos])^T == q.k^T + q_sine.k_pos^T
    tgt2 = _heads_attention(q_ca, k_ca, v_ca,
                            num_heads=num_heads, head_dim=head_dim,
                            scale=1.0 / math.sqrt(2 * head_dim), mxu_dtype=mxu_dtype,
                            extra_q=q_sine, extra_k=k_pos)
    tgt = _layer_norm(tgt + tgt2, ln_ref, 1, eps)          # norm2

    # ---------------- feed-forward ---------------------------------------------
    h = jnp.maximum(proj(tgt, w_ff1_ref, b_ff1_ref), 0.0)  # relu (f32)
    y = proj(h, w_ff2_ref, b_ff2_ref)
    out_ref[0] = _layer_norm(tgt + y, ln_ref, 2, eps).astype(out_ref.dtype)   # norm3


# ------------------------------- Pallas wrapper -------------------------------

def decoder_layer_forward_pallas(params, pos_feature, scale, ref_points,
                                 tgt, memory, pos, query_pos, query_sine_embed,
                                 *, num_heads, is_first=True, keep_query_pos=False,
                                 eps=1e-5, mxu_dtype=jnp.bfloat16):
    # pos_feature / scale / ref_points ("box") are only consumed by the
    # sementic_fu=True branch, which is disabled here.
    del pos_feature, scale, ref_points

    nq, bsz, d = tgt.shape
    hw = memory.shape[0]
    hd = d // num_heads

    def bm(x):  # (L, B, D) -> (B, L, D): batch-contiguous rows for per-batch blocks
        return jnp.transpose(x, (1, 0, 2))

    def cat_w(names):  # concatenate projections along the output (lane) dim
        w = jnp.concatenate([params[n][0] for n in names], axis=1)
        b = jnp.concatenate([params[n][1] for n in names], axis=0)[None, :]
        return w, b

    w_sa_tgt, b_sa_tgt = cat_w(['sa_qcontent', 'sa_kcontent', 'sa_v'])     # (D, 3D)
    w_qpos, b_qpos = cat_w(['sa_qpos', 'sa_kpos', 'ca_qpos'])              # (D, 3D)
    w_ca_mem, b_ca_mem = cat_w(['ca_kcontent', 'ca_v'])                    # (D, 2D)
    w_ca_q, b_ca_q = params['ca_qcontent'][0], params['ca_qcontent'][1][None, :]
    w_ca_sine, b_ca_sine = params['ca_qpos_sine'][0], params['ca_qpos_sine'][1][None, :]
    w_ca_kpos, b_ca_kpos = params['ca_kpos'][0], params['ca_kpos'][1][None, :]
    w_ff1, b_ff1 = params['linear1'][0], params['linear1'][1][None, :]
    w_ff2, b_ff2 = params['linear2'][0], params['linear2'][1][None, :]
    ln_all = jnp.stack([jnp.stack(params['norm1']),
                        jnp.stack(params['norm2']),
                        jnp.stack(params['norm3'])])       # (3, 2, D)

    weights = [w_sa_tgt, b_sa_tgt, w_qpos, b_qpos, w_ca_q, b_ca_q,
               w_ca_sine, b_ca_sine, w_ca_mem, b_ca_mem, w_ca_kpos, b_ca_kpos,
               w_ff1, b_ff1, w_ff2, b_ff2, ln_all]

    q_spec = pl.BlockSpec((1, nq, d), lambda b: (b, 0, 0))
    kv_spec = pl.BlockSpec((1, hw, d), lambda b: (b, 0, 0))

    def full_spec(a):  # whole array, constant block index -> stays resident in VMEM
        return pl.BlockSpec(a.shape, lambda b, _nd=a.ndim: (0,) * _nd)

    kernel = functools.partial(
        _decoder_layer_kernel,
        num_heads=num_heads, head_dim=hd,
        ca_add_pos=bool(is_first or keep_query_pos),
        eps=eps, mxu_dtype=mxu_dtype)

    out = pl.pallas_call(
        kernel,
        grid=(bsz,),
        in_specs=[q_spec, q_spec, q_spec, kv_spec, kv_spec]
                 + [full_spec(w) for w in weights],
        out_specs=pl.BlockSpec((1, nq, d), lambda b: (b, 0, 0)),
        out_shape=jax.ShapeDtypeStruct((bsz, nq, d), tgt.dtype),
        compiler_params=pltpu.CompilerParams(dimension_semantics=("parallel",)),
    )(bm(tgt), bm(query_pos), bm(query_sine_embed), bm(memory), bm(pos), *weights)

    return jnp.transpose(out, (1, 0, 2))    # back to (NQ, B, D)


# --------------------------- pure-JAX reference --------------------------------

def decoder_layer_forward_ref(params, tgt, memory, pos, query_pos, query_sine_embed,
                              *, num_heads, is_first=True, keep_query_pos=False,
                              eps=1e-5, mxu_dtype=jnp.float32):
    """Mirror of the PyTorch forward (dropout=0, sementic_fu=False).
    `mxu_dtype` optionally rounds matmul operands to match the kernel's bf16 MXU feed."""
    d = tgt.shape[-1]
    hd = d // num_heads
    mx = lambda x: x.astype(mxu_dtype)

    def lin(x, name):
        w, b = params[name]
        return jnp.dot(mx(x), mx(w), preferred_element_type=jnp.float32) + b

    def ln(x, name):
        g, b = params[name]
        mu = x.mean(-1, keepdims=True)
        var = ((x - mu) ** 2).mean(-1, keepdims=True)
        return (x - mu) / jnp.sqrt(var + eps) * g + b

    def mha(q, k, v, hdq, hdv):
        lq, bs, _ = q.shape
        lk = k.shape[0]
        qh = q.transpose(1, 0, 2).reshape(bs, lq, num_heads, hdq).transpose(0, 2, 1, 3)
        kh = k.transpose(1, 0, 2).reshape(bs, lk, num_heads, hdq).transpose(0, 2, 1, 3)
        vh = v.transpose(1, 0, 2).reshape(bs, lk, num_heads, hdv).transpose(0, 2, 1, 3)
        s = jnp.einsum('bhqd,bhkd->bhqk', mx(qh), mx(kh),
                       preferred_element_type=jnp.float32) / math.sqrt(hdq)
        p = jax.nn.softmax(s, axis=-1)
        o = jnp.einsum('bhqk,bhkd->bhqd', mx(p), mx(vh),
                       preferred_element_type=jnp.float32)
        return o.transpose(0, 2, 1, 3).reshape(bs, lq, num_heads * hdv).transpose(1, 0, 2)

    # self attention
    q = lin(tgt, 'sa_qcontent') + lin(query_pos, 'sa_qpos')
    k = lin(tgt, 'sa_kcontent') + lin(query_pos, 'sa_kpos')
    v = lin(tgt, 'sa_v')
    tgt = ln(tgt + mha(q, k, v, hd, hd), 'norm1')

    # cross attention
    nq, bs, _ = tgt.shape
    hw = memory.shape[0]
    q_content = lin(tgt, 'ca_qcontent')
    k_content = lin(memory, 'ca_kcontent')
    v = lin(memory, 'ca_v')
    k_pos = lin(pos, 'ca_kpos')
    if is_first or keep_query_pos:
        q = q_content + lin(query_pos, 'ca_qpos')
        k = k_content + k_pos
    else:
        q, k = q_content, k_content
    qse = lin(query_sine_embed, 'ca_qpos_sine')
    q = jnp.concatenate([q.reshape(nq, bs, num_heads, hd),
                         qse.reshape(nq, bs, num_heads, hd)], axis=3).reshape(nq, bs, 2 * d)
    k = jnp.concatenate([k.reshape(hw, bs, num_heads, hd),
                         k_pos.reshape(hw, bs, num_heads, hd)], axis=3).reshape(hw, bs, 2 * d)
    tgt = ln(tgt + mha(q, k, v, 2 * hd, hd), 'norm2')

    # feed-forward
    y = lin(jnp.maximum(lin(tgt, 'linear1'), 0.0), 'linear2')
    return ln(tgt + y, 'norm3')


# --------------------------------- param init ----------------------------------

def init_params(key, d, ff):
    names = ['sa_qcontent', 'sa_qpos', 'sa_kcontent', 'sa_kpos', 'sa_v',
             'ca_qcontent', 'ca_qpos', 'ca_kcontent', 'ca_kpos', 'ca_v',
             'ca_qpos_sine']
    keys = jax.random.split(key, len(names) + 2)
    params = {}
    for n, k in zip(names, keys[:len(names)]):
        kw, kb = jax.random.split(k)
        params[n] = (jax.random.normal(kw, (d, d), jnp.float32) * 0.05,
                     jax.random.normal(kb, (d,), jnp.float32) * 0.01)
    kw, kb = jax.random.split(keys[-2])
    params['linear1'] = (jax.random.normal(kw, (d, ff), jnp.float32) * 0.05,
                         jax.random.normal(kb, (ff,), jnp.float32) * 0.01)
    kw, kb = jax.random.split(keys[-1])
    params['linear2'] = (jax.random.normal(kw, (ff, d), jnp.float32) * 0.05,
                         jax.random.normal(kb, (d,), jnp.float32) * 0.01)
    for n in ['norm1', 'norm2', 'norm3']:
        params[n] = (jnp.ones((d,), jnp.float32), jnp.zeros((d,), jnp.float32))
    return params


# ------------------------------------- main -------------------------------------

if __name__ == "__main__":
    D, H, FF = 32, 4, 64
    NQ, B, HW = 8, 2, 16

    key = jax.random.PRNGKey(0)
    kp, k0, k1, k2, k3, k4, k5, k6, k7 = jax.random.split(key, 9)
    params = init_params(kp, D, FF)

    tgt = jax.random.normal(k0, (NQ, B, D), jnp.float32)
    memory = jax.random.normal(k1, (HW, B, D), jnp.float32)
    pos = jax.random.normal(k2, (HW, B, D), jnp.float32)
    query_pos = jax.random.normal(k3, (NQ, B, D), jnp.float32)
    query_sine_embed = jax.random.normal(k4, (NQ, B, D), jnp.float32)
    ref_points = jax.random.uniform(k5, (NQ, B, 2), jnp.float32)
    scale = jax.random.uniform(k6, (B, 2), jnp.float32)
    pos_feature = jax.random.normal(k7, (B, NQ, D), jnp.float32)  # unused (sementic_fu=False)

    run = jax.jit(functools.partial(decoder_layer_forward_pallas,
                                    num_heads=H, is_first=True))
    out = run(params, pos_feature, scale, ref_points, tgt, memory, pos,
              query_pos, query_sine_embed)
    out = jax.block_until_ready(out)
    assert out.shape == (NQ, B, D), out.shape

    # Reference 1: exact PyTorch semantics in f32.
    ref_f32 = decoder_layer_forward_ref(params, tgt, memory, pos, query_pos,
                                        query_sine_embed, num_heads=H,
                                        is_first=True, mxu_dtype=jnp.float32)
    # Reference 2: same math with bf16-rounded matmul operands (matches the kernel's
    # MXU feed) -- tight check that the fused kernel implements the right algebra.
    ref_bf16 = decoder_layer_forward_ref(params, tgt, memory, pos, query_pos,
                                         query_sine_embed, num_heads=H,
                                         is_first=True, mxu_dtype=jnp.bfloat16)
    ref_f32 = jax.block_until_ready(ref_f32)
    ref_bf16 = jax.block_until_ready(ref_bf16)

    err_match = float(jnp.max(jnp.abs(out - ref_bf16)))
    err_full = float(jnp.max(jnp.abs(out - ref_f32)))
    assert err_match < 1e-2, f"max abs err vs bf16-matched reference: {err_match}"
    assert err_full < 5e-2, f"max abs err vs f32 reference: {err_full}"
    print("KERNEL_OK")
</pallas_src>

<mosaic_0001>
module attributes {stable_mosaic.version = 11 : i64} {
  func.func @_decoder_layer_kernel(%arg0: i32, %arg1: memref<1x8x32xf32, #tpu.memory_space<vmem>>, %arg2: memref<1x8x32xf32, #tpu.memory_space<vmem>>, %arg3: memref<1x8x32xf32, #tpu.memory_space<vmem>>, %arg4: memref<1x16x32xf32, #tpu.memory_space<vmem>>, %arg5: memref<1x16x32xf32, #tpu.memory_space<vmem>>, %arg6: memref<32x96xf32, #tpu.memory_space<vmem>>, %arg7: memref<1x96xf32, #tpu.memory_space<vmem>>, %arg8: memref<32x96xf32, #tpu.memory_space<vmem>>, %arg9: memref<1x96xf32, #tpu.memory_space<vmem>>, %arg10: memref<32x32xf32, #tpu.memory_space<vmem>>, %arg11: memref<1x32xf32, #tpu.memory_space<vmem>>, %arg12: memref<32x32xf32, #tpu.memory_space<vmem>>, %arg13: memref<1x32xf32, #tpu.memory_space<vmem>>, %arg14: memref<32x64xf32, #tpu.memory_space<vmem>>, %arg15: memref<1x64xf32, #tpu.memory_space<vmem>>, %arg16: memref<32x32xf32, #tpu.memory_space<vmem>>, %arg17: memref<1x32xf32, #tpu.memory_space<vmem>>, %arg18: memref<32x64xf32, #tpu.memory_space<vmem>>, %arg19: memref<1x64xf32, #tpu.memory_space<vmem>>, %arg20: memref<64x32xf32, #tpu.memory_space<vmem>>, %arg21: memref<1x32xf32, #tpu.memory_space<vmem>>, %arg22: memref<3x2x32xf32, #tpu.memory_space<vmem>>, %arg23: memref<1x8x32xf32, #tpu.memory_space<vmem>>) attributes {dimension_semantics = [#tpu.dimension_semantics<parallel>], iteration_bounds = array<i64: 2>, scalar_prefetch = 0 : i64, scratch_operands = 0 : i64, tpu.core_type = #tpu.core_type<tc>, window_params = [{transform_indices = @transform_0, window_bounds = array<i64: 1, 8, 32>}, {transform_indices = @transform_1, window_bounds = array<i64: 1, 8, 32>}, {transform_indices = @transform_2, window_bounds = array<i64: 1, 8, 32>}, {transform_indices = @transform_3, window_bounds = array<i64: 1, 16, 32>}, {transform_indices = @transform_4, window_bounds = array<i64: 1, 16, 32>}, {pipeline_mode = #tpu.pipeline_mode<synchronous>, transform_indices = @transform_5, window_bounds = array<i64: 32, 96>}, {pipeline_mode = #tpu.pipeline_mode<synchronous>, transform_indices = @transform_6, window_bounds = array<i64: 1, 96>}, {pipeline_mode = #tpu.pipeline_mode<synchronous>, transform_indices = @transform_7, window_bounds = array<i64: 32, 96>}, {pipeline_mode = #tpu.pipeline_mode<synchronous>, transform_indices = @transform_8, window_bounds = array<i64: 1, 96>}, {pipeline_mode = #tpu.pipeline_mode<synchronous>, transform_indices = @transform_9, window_bounds = array<i64: 32, 32>}, {pipeline_mode = #tpu.pipeline_mode<synchronous>, transform_indices = @transform_10, window_bounds = array<i64: 1, 32>}, {pipeline_mode = #tpu.pipeline_mode<synchronous>, transform_indices = @transform_11, window_bounds = array<i64: 32, 32>}, {pipeline_mode = #tpu.pipeline_mode<synchronous>, transform_indices = @transform_12, window_bounds = array<i64: 1, 32>}, {pipeline_mode = #tpu.pipeline_mode<synchronous>, transform_indices = @transform_13, window_bounds = array<i64: 32, 64>}, {pipeline_mode = #tpu.pipeline_mode<synchronous>, transform_indices = @transform_14, window_bounds = array<i64: 1, 64>}, {pipeline_mode = #tpu.pipeline_mode<synchronous>, transform_indices = @transform_15, window_bounds = array<i64: 32, 32>}, {pipeline_mode = #tpu.pipeline_mode<synchronous>, transform_indices = @transform_16, window_bounds = array<i64: 1, 32>}, {pipeline_mode = #tpu.pipeline_mode<synchronous>, transform_indices = @transform_17, window_bounds = array<i64: 32, 64>}, {pipeline_mode = #tpu.pipeline_mode<synchronous>, transform_indices = @transform_18, window_bounds = array<i64: 1, 64>}, {pipeline_mode = #tpu.pipeline_mode<synchronous>, transform_indices = @transform_19, window_bounds = array<i64: 64, 32>}, {pipeline_mode = #tpu.pipeline_mode<synchronous>, transform_indices = @transform_20, window_bounds = array<i64: 1, 32>}, {pipeline_mode = #tpu.pipeline_mode<synchronous>, transform_indices = @transform_21, window_bounds = array<i64: 3, 2, 32>}, {transform_indices = @transform_22, window_bounds = array<i64: 1, 8, 32>}]} {
    %c0 = arith.constant 0 : index
    %c0_0 = arith.constant 0 : index
    %c0_1 = arith.constant 0 : index
    %0 = vector.load %arg1[%c0, %c0_0, %c0_1] : memref<1x8x32xf32, #tpu.memory_space<vmem>>, vector<1x8x32xf32>
    %1 = vector.shape_cast %0 : vector<1x8x32xf32> to vector<8x32xf32>
    %2 = arith.truncf %1 : vector<8x32xf32> to vector<8x32xbf16>
    %c0_2 = arith.constant 0 : index
    %c0_3 = arith.constant 0 : index
    %3 = vector.load %arg6[%c0_2, %c0_3] : memref<32x96xf32, #tpu.memory_space<vmem>>, vector<32x96xf32>
    %4 = arith.truncf %3 : vector<32x96xf32> to vector<32x96xbf16>
    %cst = arith.constant dense<0.000000e+00> : vector<8x96xf32>
    %5 = tpu.matmul %2, %4, %cst {dimension_numbers = #tpu.dot_dimension_numbers<[1], [0], [0], [1], [0, 0, 1, 1], [], []>} : vector<8x32xbf16>, vector<32x96xbf16>, vector<8x96xf32> -> vector<8x96xf32>
    %c0_4 = arith.constant 0 : index
    %c0_5 = arith.constant 0 : index
    %6 = vector.load %arg7[%c0_4, %c0_5] : memref<1x96xf32, #tpu.memory_space<vmem>>, vector<1x96xf32>
    %7 = vector.broadcast %6 : vector<1x96xf32> to vector<8x96xf32>
    %8 = arith.addf %5, %7 : vector<8x96xf32>
    %c0_6 = arith.constant 0 : index
    %c0_7 = arith.constant 0 : index
    %c0_8 = arith.constant 0 : index
    %9 = vector.load %arg2[%c0_6, %c0_7, %c0_8] : memref<1x8x32xf32, #tpu.memory_space<vmem>>, vector<1x8x32xf32>
    %10 = vector.shape_cast %9 : vector<1x8x32xf32> to vector<8x32xf32>
    %11 = arith.truncf %10 : vector<8x32xf32> to vector<8x32xbf16>
    %c0_9 = arith.constant 0 : index
    %c0_10 = arith.constant 0 : index
    %12 = vector.load %arg8[%c0_9, %c0_10] : memref<32x96xf32, #tpu.memory_space<vmem>>, vector<32x96xf32>
    %13 = arith.truncf %12 : vector<32x96xf32> to vector<32x96xbf16>
    %cst_11 = arith.constant dense<0.000000e+00> : vector<8x96xf32>
    %14 = tpu.matmul %11, %13, %cst_11 {dimension_numbers = #tpu.dot_dimension_numbers<[1], [0], [0], [1], [0, 0, 1, 1], [], []>} : vector<8x32xbf16>, vector<32x96xbf16>, vector<8x96xf32> -> vector<8x96xf32>
    %c0_12 = arith.constant 0 : index
    %c0_13 = arith.constant 0 : index
    %15 = vector.load %arg9[%c0_12, %c0_13] : memref<1x96xf32, #tpu.memory_space<vmem>>, vector<1x96xf32>
    %16 = vector.broadcast %15 : vector<1x96xf32> to vector<8x96xf32>
    %17 = arith.addf %14, %16 : vector<8x96xf32>
    %18 = vector.extract_strided_slice %8 {offsets = [0, 0], sizes = [8, 32], strides = [1, 1]} : vector<8x96xf32> to vector<8x32xf32>
    %19 = vector.extract_strided_slice %17 {offsets = [0, 0], sizes = [8, 32], strides = [1, 1]} : vector<8x96xf32> to vector<8x32xf32>
    %20 = arith.addf %18, %19 : vector<8x32xf32>
    %21 = vector.extract_strided_slice %8 {offsets = [0, 32], sizes = [8, 32], strides = [1, 1]} : vector<8x96xf32> to vector<8x32xf32>
    %22 = vector.extract_strided_slice %17 {offsets = [0, 32], sizes = [8, 32], strides = [1, 1]} : vector<8x96xf32> to vector<8x32xf32>
    %23 = arith.addf %21, %22 : vector<8x32xf32>
    %24 = vector.extract_strided_slice %8 {offsets = [0, 64], sizes = [8, 32], strides = [1, 1]} : vector<8x96xf32> to vector<8x32xf32>
    %25 = vector.extract_strided_slice %17 {offsets = [0, 64], sizes = [8, 32], strides = [1, 1]} : vector<8x96xf32> to vector<8x32xf32>
    %26 = vector.extract_strided_slice %20 {offsets = [0, 0], sizes = [8, 8], strides = [1, 1]} : vector<8x32xf32> to vector<8x8xf32>
    %27 = arith.truncf %26 : vector<8x8xf32> to vector<8x8xbf16>
    %28 = vector.extract_strided_slice %23 {offsets = [0, 0], sizes = [8, 8], strides = [1, 1]} : vector<8x32xf32> to vector<8x8xf32>
    %29 = arith.truncf %28 : vector<8x8xf32> to vector<8x8xbf16>
    %cst_14 = arith.constant dense<0.000000e+00> : vector<8x8xf32>
    %30 = tpu.matmul %27, %29, %cst_14 {dimension_numbers = #tpu.dot_dimension_numbers<[1], [1], [0], [0], [0, 0, 1, 0], [], []>} : vector<8x8xbf16>, vector<8x8xbf16>, vector<8x8xf32> -> vector<8x8xf32>
    %cst_15 = arith.constant 0.353553385 : f32
    %31 = vector.broadcast %cst_15 : f32 to vector<8x8xf32>
    %32 = arith.mulf %30, %31 : vector<8x8xf32>
    %cst_16 = arith.constant dense<0xFF800000> : vector<8xf32>
    %33 = vector.multi_reduction <maximumf>, %32, %cst_16 [1] : vector<8x8xf32> to vector<8xf32>
    %34 = vector.shape_cast %33 : vector<8xf32> to vector<8x1xf32>
    %35 = vector.broadcast %34 : vector<8x1xf32> to vector<8x8xf32>
    %36 = arith.subf %32, %35 : vector<8x8xf32>
    %37 = math.exp %36 : vector<8x8xf32>
    %cst_17 = arith.constant dense<0.000000e+00> : vector<8xf32>
    %38 = vector.multi_reduction <add>, %37, %cst_17 [1] : vector<8x8xf32> to vector<8xf32>
    %39 = vector.shape_cast %38 : vector<8xf32> to vector<8x1xf32>
    %40 = tpu.reciprocal %39 {approx = true} : vector<8x1xf32> -> vector<8x1xf32>
    %41 = vector.broadcast %40 : vector<8x1xf32> to vector<8x8xf32>
    %42 = arith.mulf %37, %41 : vector<8x8xf32>
    %43 = arith.truncf %42 : vector<8x8xf32> to vector<8x8xbf16>
    %44 = vector.extract_strided_slice %24 {offsets = [0, 0], sizes = [8, 8], strides = [1, 1]} : vector<8x32xf32> to vector<8x8xf32>
    %45 = arith.truncf %44 : vector<8x8xf32> to vector<8x8xbf16>
    %cst_18 = arith.constant dense<0.000000e+00> : vector<8x8xf32>
    %46 = tpu.matmul %43, %45, %cst_18 {dimension_numbers = #tpu.dot_dimension_numbers<[1], [0], [0], [1], [0, 0, 1, 1], [], []>} : vector<8x8xbf16>, vector<8x8xbf16>, vector<8x8xf32> -> vector<8x8xf32>
    %47 = vector.extract_strided_slice %20 {offsets = [0, 8], sizes = [8, 8], strides = [1, 1]} : vector<8x32xf32> to vector<8x8xf32>
    %48 = arith.truncf %47 : vector<8x8xf32> to vector<8x8xbf16>
    %49 = vector.extract_strided_slice %23 {offsets = [0, 8], sizes = [8, 8], strides = [1, 1]} : vector<8x32xf32> to vector<8x8xf32>
    %50 = arith.truncf %49 : vector<8x8xf32> to vector<8x8xbf16>
    %cst_19 = arith.constant dense<0.000000e+00> : vector<8x8xf32>
    %51 = tpu.matmul %48, %50, %cst_19 {dimension_numbers = #tpu.dot_dimension_numbers<[1], [1], [0], [0], [0, 0, 1, 0], [], []>} : vector<8x8xbf16>, vector<8x8xbf16>, vector<8x8xf32> -> vector<8x8xf32>
    %cst_20 = arith.constant 0.353553385 : f32
    %52 = vector.broadcast %cst_20 : f32 to vector<8x8xf32>
    %53 = arith.mulf %51, %52 : vector<8x8xf32>
    %cst_21 = arith.constant dense<0xFF800000> : vector<8xf32>
    %54 = vector.multi_reduction <maximumf>, %53, %cst_21 [1] : vector<8x8xf32> to vector<8xf32>
    %55 = vector.shape_cast %54 : vector<8xf32> to vector<8x1xf32>
    %56 = vector.broadcast %55 : vector<8x1xf32> to vector<8x8xf32>
    %57 = arith.subf %53, %56 : vector<8x8xf32>
    %58 = math.exp %57 : vector<8x8xf32>
    %cst_22 = arith.constant dense<0.000000e+00> : vector<8xf32>
    %59 = vector.multi_reduction <add>, %58, %cst_22 [1] : vector<8x8xf32> to vector<8xf32>
    %60 = vector.shape_cast %59 : vector<8xf32> to vector<8x1xf32>
    %61 = tpu.reciprocal %60 {approx = true} : vector<8x1xf32> -> vector<8x1xf32>
    %62 = vector.broadcast %61 : vector<8x1xf32> to vector<8x8xf32>
    %63 = arith.mulf %58, %62 : vector<8x8xf32>
    %64 = arith.truncf %63 : vector<8x8xf32> to vector<8x8xbf16>
    %65 = vector.extract_strided_slice %24 {offsets = [0, 8], sizes = [8, 8], strides = [1, 1]} : vector<8x32xf32> to vector<8x8xf32>
    %66 = arith.truncf %65 : vector<8x8xf32> to vector<8x8xbf16>
    %cst_23 = arith.constant dense<0.000000e+00> : vector<8x8xf32>
    %67 = tpu.matmul %64, %66, %cst_23 {dimension_numbers = #tpu.dot_dimension_numbers<[1], [0], [0], [1], [0, 0, 1, 1], [], []>} : vector<8x8xbf16>, vector<8x8xbf16>, vector<8x8xf32> -> vector<8x8xf32>
    %68 = vector.extract_strided_slice %20 {offsets = [0, 16], sizes = [8, 8], strides = [1, 1]} : vector<8x32xf32> to vector<8x8xf32>
    %69 = arith.truncf %68 : vector<8x8xf32> to vector<8x8xbf16>
    %70 = vector.extract_strided_slice %23 {offsets = [0, 16], sizes = [8, 8], strides = [1, 1]} : vector<8x32xf32> to vector<8x8xf32>
    %71 = arith.truncf %70 : vector<8x8xf32> to vector<8x8xbf16>
    %cst_24 = arith.constant dense<0.000000e+00> : vector<8x8xf32>
    %72 = tpu.matmul %69, %71, %cst_24 {dimension_numbers = #tpu.dot_dimension_numbers<[1], [1], [0], [0], [0, 0, 1, 0], [], []>} : vector<8x8xbf16>, vector<8x8xbf16>, vector<8x8xf32> -> vector<8x8xf32>
    %cst_25 = arith.constant 0.353553385 : f32
    %73 = vector.broadcast %cst_25 : f32 to vector<8x8xf32>
    %74 = arith.mulf %72, %73 : vector<8x8xf32>
    %cst_26 = arith.constant dense<0xFF800000> : vector<8xf32>
    %75 = vector.multi_reduction <maximumf>, %74, %cst_26 [1] : vector<8x8xf32> to vector<8xf32>
    %76 = vector.shape_cast %75 : vector<8xf32> to vector<8x1xf32>
    %77 = vector.broadcast %76 : vector<8x1xf32> to vector<8x8xf32>
    %78 = arith.subf %74, %77 : vector<8x8xf32>
    %79 = math.exp %78 : vector<8x8xf32>
    %cst_27 = arith.constant dense<0.000000e+00> : vector<8xf32>
    %80 = vector.multi_reduction <add>, %79, %cst_27 [1] : vector<8x8xf32> to vector<8xf32>
    %81 = vector.shape_cast %80 : vector<8xf32> to vector<8x1xf32>
    %82 = tpu.reciprocal %81 {approx = true} : vector<8x1xf32> -> vector<8x1xf32>
    %83 = vector.broadcast %82 : vector<8x1xf32> to vector<8x8xf32>
    %84 = arith.mulf %79, %83 : vector<8x8xf32>
    %85 = arith.truncf %84 : vector<8x8xf32> to vector<8x8xbf16>
    %86 = vector.extract_strided_slice %24 {offsets = [0, 16], sizes = [8, 8], strides = [1, 1]} : vector<8x32xf32> to vector<8x8xf32>
    %87 = arith.truncf %86 : vector<8x8xf32> to vector<8x8xbf16>
    %cst_28 = arith.constant dense<0.000000e+00> : vector<8x8xf32>
    %88 = tpu.matmul %85, %87, %cst_28 {dimension_numbers = #tpu.dot_dimension_numbers<[1], [0], [0], [1], [0, 0, 1, 1], [], []>} : vector<8x8xbf16>, vector<8x8xbf16>, vector<8x8xf32> -> vector<8x8xf32>
    %89 = vector.extract_strided_slice %20 {offsets = [0, 24], sizes = [8, 8], strides = [1, 1]} : vector<8x32xf32> to vector<8x8xf32>
    %90 = arith.truncf %89 : vector<8x8xf32> to vector<8x8xbf16>
    %91 = vector.extract_strided_slice %23 {offsets = [0, 24], sizes = [8, 8], strides = [1, 1]} : vector<8x32xf32> to vector<8x8xf32>
    %92 = arith.truncf %91 : vector<8x8xf32> to vector<8x8xbf16>
    %cst_29 = arith.constant dense<0.000000e+00> : vector<8x8xf32>
    %93 = tpu.matmul %90, %92, %cst_29 {dimension_numbers = #tpu.dot_dimension_numbers<[1], [1], [0], [0], [0, 0, 1, 0], [], []>} : vector<8x8xbf16>, vector<8x8xbf16>, vector<8x8xf32> -> vector<8x8xf32>
    %cst_30 = arith.constant 0.353553385 : f32
    %94 = vector.broadcast %cst_30 : f32 to vector<8x8xf32>
    %95 = arith.mulf %93, %94 : vector<8x8xf32>
    %cst_31 = arith.constant dense<0xFF800000> : vector<8xf32>
    %96 = vector.multi_reduction <maximumf>, %95, %cst_31 [1] : vector<8x8xf32> to vector<8xf32>
    %97 = vector.shape_cast %96 : vector<8xf32> to vector<8x1xf32>
    %98 = vector.broadcast %97 : vector<8x1xf32> to vector<8x8xf32>
    %99 = arith.subf %95, %98 : vector<8x8xf32>
    %100 = math.exp %99 : vector<8x8xf32>
    %cst_32 = arith.constant dense<0.000000e+00> : vector<8xf32>
    %101 = vector.multi_reduction <add>, %100, %cst_32 [1] : vector<8x8xf32> to vector<8xf32>
    %102 = vector.shape_cast %101 : vector<8xf32> to vector<8x1xf32>
    %103 = tpu.reciprocal %102 {approx = true} : vector<8x1xf32> -> vector<8x1xf32>
    %104 = vector.broadcast %103 : vector<8x1xf32> to vector<8x8xf32>
    %105 = arith.mulf %100, %104 : vector<8x8xf32>
    %106 = arith.truncf %105 : vector<8x8xf32> to vector<8x8xbf16>
    %107 = vector.extract_strided_slice %24 {offsets = [0, 24], sizes = [8, 8], strides = [1, 1]} : vector<8x32xf32> to vector<8x8xf32>
    %108 = arith.truncf %107 : vector<8x8xf32> to vector<8x8xbf16>
    %cst_33 = arith.constant dense<0.000000e+00> : vector<8x8xf32>
    %109 = tpu.matmul %106, %108, %cst_33 {dimension_numbers = #tpu.dot_dimension_numbers<[1], [0], [0], [1], [0, 0, 1, 1], [], []>} : vector<8x8xbf16>, vector<8x8xbf16>, vector<8x8xf32> -> vector<8x8xf32>
    %110 = tpu.concatenate %46, %67, %88, %109 in 1 : vector<8x8xf32>, vector<8x8xf32>, vector<8x8xf32>, vector<8x8xf32> -> vector<8x32xf32>
    %111 = arith.addf %1, %110 : vector<8x32xf32>
    %c0_34 = arith.constant 0 : index
    %c0_35 = arith.constant 0 : index
    %c0_36 = arith.constant 0 : index
    %112 = vector.load %arg22[%c0_34, %c0_35, %c0_36] : memref<3x2x32xf32, #tpu.memory_space<vmem>>, vector<1x2x32xf32>
    %113 = vector.shape_cast %112 : vector<1x2x32xf32> to vector<2x32xf32>
    %cst_37 = arith.constant dense<0.000000e+00> : vector<8xf32>
    %114 = vector.multi_reduction <add>, %111, %cst_37 [1] : vector<8x32xf32> to vector<8xf32>
    %115 = vector.shape_cast %114 : vector<8xf32> to vector<8x1xf32>
    %cst_38 = arith.constant 3.200000e+01 : f32
    %116 = vector.broadcast %cst_38 : f32 to vector<8x1xf32>
    %117 = arith.divf %115, %116 : vector<8x1xf32>
    %118 = vector.broadcast %117 : vector<8x1xf32> to vector<8x32xf32>
    %119 = arith.subf %111, %118 : vector<8x32xf32>
    %120 = arith.mulf %119, %119 : vector<8x32xf32>
    %cst_39 = arith.constant dense<0.000000e+00> : vector<8xf32>
    %121 = vector.multi_reduction <add>, %120, %cst_39 [1] : vector<8x32xf32> to vector<8xf32>
    %122 = vector.shape_cast %121 : vector<8xf32> to vector<8x1xf32>
    %cst_40 = arith.constant 3.200000e+01 : f32
    %123 = vector.broadcast %cst_40 : f32 to vector<8x1xf32>
    %124 = arith.divf %122, %123 : vector<8x1xf32>
    %125 = vector.broadcast %117 : vector<8x1xf32> to vector<8x32xf32>
    %126 = arith.subf %111, %125 : vector<8x32xf32>
    %cst_41 = arith.constant 9.99999974E-6 : f32
    %127 = vector.broadcast %cst_41 : f32 to vector<8x1xf32>
    %128 = arith.addf %124, %127 : vector<8x1xf32>
    %129 = math.rsqrt %128 : vector<8x1xf32>
    %130 = vector.broadcast %129 : vector<8x1xf32> to vector<8x32xf32>
    %131 = arith.mulf %126, %130 : vector<8x32xf32>
    %132 = vector.extract_strided_slice %113 {offsets = [0, 0], sizes = [1, 32], strides = [1, 1]} : vector<2x32xf32> to vector<1x32xf32>
    %133 = vector.broadcast %132 : vector<1x32xf32> to vector<8x32xf32>
    %134 = arith.mulf %131, %133 : vector<8x32xf32>
    %135 = vector.extract_strided_slice %113 {offsets = [1, 0], sizes = [1, 32], strides = [1, 1]} : vector<2x32xf32> to vector<1x32xf32>
    %136 = vector.broadcast %135 : vector<1x32xf32> to vector<8x32xf32>
    %137 = arith.addf %134, %136 : vector<8x32xf32>
    %138 = arith.truncf %137 : vector<8x32xf32> to vector<8x32xbf16>
    %c0_42 = arith.constant 0 : index
    %c0_43 = arith.constant 0 : index
    %139 = vector.load %arg10[%c0_42, %c0_43] : memref<32x32xf32, #tpu.memory_space<vmem>>, vector<32x32xf32>
    %140 = arith.truncf %139 : vector<32x32xf32> to vector<32x32xbf16>
    %cst_44 = arith.constant dense<0.000000e+00> : vector<8x32xf32>
    %141 = tpu.matmul %138, %140, %cst_44 {dimension_numbers = #tpu.dot_dimension_numbers<[1], [0], [0], [1], [0, 0, 1, 1], [], []>} : vector<8x32xbf16>, vector<32x32xbf16>, vector<8x32xf32> -> vector<8x32xf32>
    %c0_45 = arith.constant 0 : index
    %c0_46 = arith.constant 0 : index
    %142 = vector.load %arg11[%c0_45, %c0_46] : memref<1x32xf32, #tpu.memory_space<vmem>>, vector<1x32xf32>
    %143 = vector.broadcast %142 : vector<1x32xf32> to vector<8x32xf32>
    %144 = arith.addf %141, %143 : vector<8x32xf32>
    %145 = arith.addf %144, %25 : vector<8x32xf32>
    %c0_47 = arith.constant 0 : index
    %c0_48 = arith.constant 0 : index
    %c0_49 = arith.constant 0 : index
    %146 = vector.load %arg3[%c0_47, %c0_48, %c0_49] : memref<1x8x32xf32, #tpu.memory_space<vmem>>, vector<1x8x32xf32>
    %147 = vector.shape_cast %146 : vector<1x8x32xf32> to vector<8x32xf32>
    %148 = arith.truncf %147 : vector<8x32xf32> to vector<8x32xbf16>
    %c0_50 = arith.constant 0 : index
    %c0_51 = arith.constant 0 : index
    %149 = vector.load %arg12[%c0_50, %c0_51] : memref<32x32xf32, #tpu.memory_space<vmem>>, vector<32x32xf32>
    %150 = arith.truncf %149 : vector<32x32xf32> to vector<32x32xbf16>
    %cst_52 = arith.constant dense<0.000000e+00> : vector<8x32xf32>
    %151 = tpu.matmul %148, %150, %cst_52 {dimension_numbers = #tpu.dot_dimension_numbers<[1], [0], [0], [1], [0, 0, 1, 1], [], []>} : vector<8x32xbf16>, vector<32x32xbf16>, vector<8x32xf32> -> vector<8x32xf32>
    %c0_53 = arith.constant 0 : index
    %c0_54 = arith.constant 0 : index
    %152 = vector.load %arg13[%c0_53, %c0_54] : memref<1x32xf32, #tpu.memory_space<vmem>>, vector<1x32xf32>
    %153 = vector.broadcast %152 : vector<1x32xf32> to vector<8x32xf32>
    %154 = arith.addf %151, %153 : vector<8x32xf32>
    %c0_55 = arith.constant 0 : index
    %c0_56 = arith.constant 0 : index
    %c0_57 = arith.constant 0 : index
    %155 = vector.load %arg4[%c0_55, %c0_56, %c0_57] : memref<1x16x32xf32, #tpu.memory_space<vmem>>, vector<1x16x32xf32>
    %156 = vector.shape_cast %155 : vector<1x16x32xf32> to vector<16x32xf32>
    %157 = arith.truncf %156 : vector<16x32xf32> to vector<16x32xbf16>
    %c0_58 = arith.constant 0 : index
    %c0_59 = arith.constant 0 : index
    %158 = vector.load %arg14[%c0_58, %c0_59] : memref<32x64xf32, #tpu.memory_space<vmem>>, vector<32x64xf32>
    %159 = arith.truncf %158 : vector<32x64xf32> to vector<32x64xbf16>
    %cst_60 = arith.constant dense<0.000000e+00> : vector<16x64xf32>
    %160 = tpu.matmul %157, %159, %cst_60 {dimension_numbers = #tpu.dot_dimension_numbers<[1], [0], [0], [1], [0, 0, 1, 1], [], []>} : vector<16x32xbf16>, vector<32x64xbf16>, vector<16x64xf32> -> vector<16x64xf32>
    %c0_61 = arith.constant 0 : index
    %c0_62 = arith.constant 0 : index
    %161 = vector.load %arg15[%c0_61, %c0_62] : memref<1x64xf32, #tpu.memory_space<vmem>>, vector<1x64xf32>
    %162 = vector.broadcast %161 : vector<1x64xf32> to vector<16x64xf32>
    %163 = arith.addf %160, %162 : vector<16x64xf32>
    %c0_63 = arith.constant 0 : index
    %c0_64 = arith.constant 0 : index
    %c0_65 = arith.constant 0 : index
    %164 = vector.load %arg5[%c0_63, %c0_64, %c0_65] : memref<1x16x32xf32, #tpu.memory_space<vmem>>, vector<1x16x32xf32>
    %165 = vector.shape_cast %164 : vector<1x16x32xf32> to vector<16x32xf32>
    %166 = arith.truncf %165 : vector<16x32xf32> to vector<16x32xbf16>
    %c0_66 = arith.constant 0 : index
    %c0_67 = arith.constant 0 : index
    %167 = vector.load %arg16[%c0_66, %c0_67] : memref<32x32xf32, #tpu.memory_space<vmem>>, vector<32x32xf32>
    %168 = arith.truncf %167 : vector<32x32xf32> to vector<32x32xbf16>
    %cst_68 = arith.constant dense<0.000000e+00> : vector<16x32xf32>
    %169 = tpu.matmul %166, %168, %cst_68 {dimension_numbers = #tpu.dot_dimension_numbers<[1], [0], [0], [1], [0, 0, 1, 1], [], []>} : vector<16x32xbf16>, vector<32x32xbf16>, vector<16x32xf32> -> vector<16x32xf32>
    %c0_69 = arith.constant 0 : index
    %c0_70 = arith.constant 0 : index
    %170 = vector.load %arg17[%c0_69, %c0_70] : memref<1x32xf32, #tpu.memory_space<vmem>>, vector<1x32xf32>
    %171 = vector.broadcast %170 : vector<1x32xf32> to vector<16x32xf32>
    %172 = arith.addf %169, %171 : vector<16x32xf32>
    %173 = vector.extract_strided_slice %163 {offsets = [0, 0], sizes = [16, 32], strides = [1, 1]} : vector<16x64xf32> to vector<16x32xf32>
    %174 = arith.addf %173, %172 : vector<16x32xf32>
    %175 = vector.extract_strided_slice %163 {offsets = [0, 32], sizes = [16, 32], strides = [1, 1]} : vector<16x64xf32> to vector<16x32xf32>
    %176 = vector.extract_strided_slice %145 {offsets = [0, 0], sizes = [8, 8], strides = [1, 1]} : vector<8x32xf32> to vector<8x8xf32>
    %177 = arith.truncf %176 : vector<8x8xf32> to vector<8x8xbf16>
    %178 = vector.extract_strided_slice %174 {offsets = [0, 0], sizes = [16, 8], strides = [1, 1]} : vector<16x32xf32> to vector<16x8xf32>
    %179 = arith.truncf %178 : vector<16x8xf32> to vector<16x8xbf16>
    %cst_71 = arith.constant dense<0.000000e+00> : vector<8x16xf32>
    %180 = tpu.matmul %177, %179, %cst_71 {dimension_numbers = #tpu.dot_dimension_numbers<[1], [1], [0], [0], [0, 0, 1, 0], [], []>} : vector<8x8xbf16>, vector<16x8xbf16>, vector<8x16xf32> -> vector<8x16xf32>
    %181 = vector.extract_strided_slice %154 {offsets = [0, 0], sizes = [8, 8], strides = [1, 1]} : vector<8x32xf32> to vector<8x8xf32>
    %182 = arith.truncf %181 : vector<8x8xf32> to vector<8x8xbf16>
    %183 = vector.extract_strided_slice %172 {offsets = [0, 0], sizes = [16, 8], strides = [1, 1]} : vector<16x32xf32> to vector<16x8xf32>
    %184 = arith.truncf %183 : vector<16x8xf32> to vector<16x8xbf16>
    %cst_72 = arith.constant dense<0.000000e+00> : vector<8x16xf32>
    %185 = tpu.matmul %182, %184, %cst_72 {dimension_numbers = #tpu.dot_dimension_numbers<[1], [1], [0], [0], [0, 0, 1, 0], [], []>} : vector<8x8xbf16>, vector<16x8xbf16>, vector<8x16xf32> -> vector<8x16xf32>
    %186 = arith.addf %180, %185 : vector<8x16xf32>
    %cst_73 = arith.constant 2.500000e-01 : f32
    %187 = vector.broadcast %cst_73 : f32 to vector<8x16xf32>
    %188 = arith.mulf %186, %187 : vector<8x16xf32>
    %cst_74 = arith.constant dense<0xFF800000> : vector<8xf32>
    %189 = vector.multi_reduction <maximumf>, %188, %cst_74 [1] : vector<8x16xf32> to vector<8xf32>
    %190 = vector.shape_cast %189 : vector<8xf32> to vector<8x1xf32>
    %191 = vector.broadcast %190 : vector<8x1xf32> to vector<8x16xf32>
    %192 = arith.subf %188, %191 : vector<8x16xf32>
    %193 = math.exp %192 : vector<8x16xf32>
    %cst_75 = arith.constant dense<0.000000e+00> : vector<8xf32>
    %194 = vector.multi_reduction <add>, %193, %cst_75 [1] : vector<8x16xf32> to vector<8xf32>
    %195 = vector.shape_cast %194 : vector<8xf32> to vector<8x1xf32>
    %196 = tpu.reciprocal %195 {approx = true} : vector<8x1xf32> -> vector<8x1xf32>
    %197 = vector.broadcast %196 : vector<8x1xf32> to vector<8x16xf32>
    %198 = arith.mulf %193, %197 : vector<8x16xf32>
    %199 = arith.truncf %198 : vector<8x16xf32> to vector<8x16xbf16>
    %200 = vector.extract_strided_slice %175 {offsets = [0, 0], sizes = [16, 8], strides = [1, 1]} : vector<16x32xf32> to vector<16x8xf32>
    %201 = arith.truncf %200 : vector<16x8xf32> to vector<16x8xbf16>
    %cst_76 = arith.constant dense<0.000000e+00> : vector<8x8xf32>
    %202 = tpu.matmul %199, %201, %cst_76 {dimension_numbers = #tpu.dot_dimension_numbers<[1], [0], [0], [1], [0, 0, 1, 1], [], []>} : vector<8x16xbf16>, vector<16x8xbf16>, vector<8x8xf32> -> vector<8x8xf32>
    %203 = vector.extract_strided_slice %145 {offsets = [0, 8], sizes = [8, 8], strides = [1, 1]} : vector<8x32xf32> to vector<8x8xf32>
    %204 = arith.truncf %203 : vector<8x8xf32> to vector<8x8xbf16>
    %205 = vector.extract_strided_slice %174 {offsets = [0, 8], sizes = [16, 8], strides = [1, 1]} : vector<16x32xf32> to vector<16x8xf32>
    %206 = arith.truncf %205 : vector<16x8xf32> to vector<16x8xbf16>
    %cst_77 = arith.constant dense<0.000000e+00> : vector<8x16xf32>
    %207 = tpu.matmul %204, %206, %cst_77 {dimension_numbers = #tpu.dot_dimension_numbers<[1], [1], [0], [0], [0, 0, 1, 0], [], []>} : vector<8x8xbf16>, vector<16x8xbf16>, vector<8x16xf32> -> vector<8x16xf32>
    %208 = vector.extract_strided_slice %154 {offsets = [0, 8], sizes = [8, 8], strides = [1, 1]} : vector<8x32xf32> to vector<8x8xf32>
    %209 = arith.truncf %208 : vector<8x8xf32> to vector<8x8xbf16>
    %210 = vector.extract_strided_slice %172 {offsets = [0, 8], sizes = [16, 8], strides = [1, 1]} : vector<16x32xf32> to vector<16x8xf32>
    %211 = arith.truncf %210 : vector<16x8xf32> to vector<16x8xbf16>
    %cst_78 = arith.constant dense<0.000000e+00> : vector<8x16xf32>
    %212 = tpu.matmul %209, %211, %cst_78 {dimension_numbers = #tpu.dot_dimension_numbers<[1], [1], [0], [0], [0, 0, 1, 0], [], []>} : vector<8x8xbf16>, vector<16x8xbf16>, vector<8x16xf32> -> vector<8x16xf32>
    %213 = arith.addf %207, %212 : vector<8x16xf32>
    %cst_79 = arith.constant 2.500000e-01 : f32
    %214 = vector.broadcast %cst_79 : f32 to vector<8x16xf32>
    %215 = arith.mulf %213, %214 : vector<8x16xf32>
    %cst_80 = arith.constant dense<0xFF800000> : vector<8xf32>
    %216 = vector.multi_reduction <maximumf>, %215, %cst_80 [1] : vector<8x16xf32> to vector<8xf32>
    %217 = vector.shape_cast %216 : vector<8xf32> to vector<8x1xf32>
    %218 = vector.broadcast %217 : vector<8x1xf32> to vector<8x16xf32>
    %219 = arith.subf %215, %218 : vector<8x16xf32>
    %220 = math.exp %219 : vector<8x16xf32>
    %cst_81 = arith.constant dense<0.000000e+00> : vector<8xf32>
    %221 = vector.multi_reduction <add>, %220, %cst_81 [1] : vector<8x16xf32> to vector<8xf32>
    %222 = vector.shape_cast %221 : vector<8xf32> to vector<8x1xf32>
    %223 = tpu.reciprocal %222 {approx = true} : vector<8x1xf32> -> vector<8x1xf32>
    %224 = vector.broadcast %223 : vector<8x1xf32> to vector<8x16xf32>
    %225 = arith.mulf %220, %224 : vector<8x16xf32>
    %226 = arith.truncf %225 : vector<8x16xf32> to vector<8x16xbf16>
    %227 = vector.extract_strided_slice %175 {offsets = [0, 8], sizes = [16, 8], strides = [1, 1]} : vector<16x32xf32> to vector<16x8xf32>
    %228 = arith.truncf %227 : vector<16x8xf32> to vector<16x8xbf16>
    %cst_82 = arith.constant dense<0.000000e+00> : vector<8x8xf32>
    %229 = tpu.matmul %226, %228, %cst_82 {dimension_numbers = #tpu.dot_dimension_numbers<[1], [0], [0], [1], [0, 0, 1, 1], [], []>} : vector<8x16xbf16>, vector<16x8xbf16>, vector<8x8xf32> -> vector<8x8xf32>
    %230 = vector.extract_strided_slice %145 {offsets = [0, 16], sizes = [8, 8], strides = [1, 1]} : vector<8x32xf32> to vector<8x8xf32>
    %231 = arith.truncf %230 : vector<8x8xf32> to vector<8x8xbf16>
    %232 = vector.extract_strided_slice %174 {offsets = [0, 16], sizes = [16, 8], strides = [1, 1]} : vector<16x32xf32> to vector<16x8xf32>
    %233 = arith.truncf %232 : vector<16x8xf32> to vector<16x8xbf16>
    %cst_83 = arith.constant dense<0.000000e+00> : vector<8x16xf32>
    %234 = tpu.matmul %231, %233, %cst_83 {dimension_numbers = #tpu.dot_dimension_numbers<[1], [1], [0], [0], [0, 0, 1, 0], [], []>} : vector<8x8xbf16>, vector<16x8xbf16>, vector<8x16xf32> -> vector<8x16xf32>
    %235 = vector.extract_strided_slice %154 {offsets = [0, 16], sizes = [8, 8], strides = [1, 1]} : vector<8x32xf32> to vector<8x8xf32>
    %236 = arith.truncf %235 : vector<8x8xf32> to vector<8x8xbf16>
    %237 = vector.extract_strided_slice %172 {offsets = [0, 16], sizes = [16, 8], strides = [1, 1]} : vector<16x32xf32> to vector<16x8xf32>
    %238 = arith.truncf %237 : vector<16x8xf32> to vector<16x8xbf16>
    %cst_84 = arith.constant dense<0.000000e+00> : vector<8x16xf32>
    %239 = tpu.matmul %236, %238, %cst_84 {dimension_numbers = #tpu.dot_dimension_numbers<[1], [1], [0], [0], [0, 0, 1, 0], [], []>} : vector<8x8xbf16>, vector<16x8xbf16>, vector<8x16xf32> -> vector<8x16xf32>
    %240 = arith.addf %234, %239 : vector<8x16xf32>
    %cst_85 = arith.constant 2.500000e-01 : f32
    %241 = vector.broadcast %cst_85 : f32 to vector<8x16xf32>
    %242 = arith.mulf %240, %241 : vector<8x16xf32>
    %cst_86 = arith.constant dense<0xFF800000> : vector<8xf32>
    %243 = vector.multi_reduction <maximumf>, %242, %cst_86 [1] : vector<8x16xf32> to vector<8xf32>
    %244 = vector.shape_cast %243 : vector<8xf32> to vector<8x1xf32>
    %245 = vector.broadcast %244 : vector<8x1xf32> to vector<8x16xf32>
    %246 = arith.subf %242, %245 : vector<8x16xf32>
    %247 = math.exp %246 : vector<8x16xf32>
    %cst_87 = arith.constant dense<0.000000e+00> : vector<8xf32>
    %248 = vector.multi_reduction <add>, %247, %cst_87 [1] : vector<8x16xf32> to vector<8xf32>
    %249 = vector.shape_cast %248 : vector<8xf32> to vector<8x1xf32>
    %250 = tpu.reciprocal %249 {approx = true} : vector<8x1xf32> -> vector<8x1xf32>
    %251 = vector.broadcast %250 : vector<8x1xf32> to vector<8x16xf32>
    %252 = arith.mulf %247, %251 : vector<8x16xf32>
    %253 = arith.truncf %252 : vector<8x16xf32> to vector<8x16xbf16>
    %254 = vector.extract_strided_slice %175 {offsets = [0, 16], sizes = [16, 8], strides = [1, 1]} : vector<16x32xf32> to vector<16x8xf32>
    %255 = arith.truncf %254 : vector<16x8xf32> to vector<16x8xbf16>
    %cst_88 = arith.constant dense<0.000000e+00> : vector<8x8xf32>
    %256 = tpu.matmul %253, %255, %cst_88 {dimension_numbers = #tpu.dot_dimension_numbers<[1], [0], [0], [1], [0, 0, 1, 1], [], []>} : vector<8x16xbf16>, vector<16x8xbf16>, vector<8x8xf32> -> vector<8x8xf32>
    %257 = vector.extract_strided_slice %145 {offsets = [0, 24], sizes = [8, 8], strides = [1, 1]} : vector<8x32xf32> to vector<8x8xf32>
    %258 = arith.truncf %257 : vector<8x8xf32> to vector<8x8xbf16>
    %259 = vector.extract_strided_slice %174 {offsets = [0, 24], sizes = [16, 8], strides = [1, 1]} : vector<16x32xf32> to vector<16x8xf32>
    %260 = arith.truncf %259 : vector<16x8xf32> to vector<16x8xbf16>
    %cst_89 = arith.constant dense<0.000000e+00> : vector<8x16xf32>
    %261 = tpu.matmul %258, %260, %cst_89 {dimension_numbers = #tpu.dot_dimension_numbers<[1], [1], [0], [0], [0, 0, 1, 0], [], []>} : vector<8x8xbf16>, vector<16x8xbf16>, vector<8x16xf32> -> vector<8x16xf32>
    %262 = vector.extract_strided_slice %154 {offsets = [0, 24], sizes = [8, 8], strides = [1, 1]} : vector<8x32xf32> to vector<8x8xf32>
    %263 = arith.truncf %262 : vector<8x8xf32> to vector<8x8xbf16>
    %264 = vector.extract_strided_slice %172 {offsets = [0, 24], sizes = [16, 8], strides = [1, 1]} : vector<16x32xf32> to vector<16x8xf32>
    %265 = arith.truncf %264 : vector<16x8xf32> to vector<16x8xbf16>
    %cst_90 = arith.constant dense<0.000000e+00> : vector<8x16xf32>
    %266 = tpu.matmul %263, %265, %cst_90 {dimension_numbers = #tpu.dot_dimension_numbers<[1], [1], [0], [0], [0, 0, 1, 0], [], []>} : vector<8x8xbf16>, vector<16x8xbf16>, vector<8x16xf32> -> vector<8x16xf32>
    %267 = arith.addf %261, %266 : vector<8x16xf32>
    %cst_91 = arith.constant 2.500000e-01 : f32
    %268 = vector.broadcast %cst_91 : f32 to vector<8x16xf32>
    %269 = arith.mulf %267, %268 : vector<8x16xf32>
    %cst_92 = arith.constant dense<0xFF800000> : vector<8xf32>
    %270 = vector.multi_reduction <maximumf>, %269, %cst_92 [1] : vector<8x16xf32> to vector<8xf32>
    %271 = vector.shape_cast %270 : vector<8xf32> to vector<8x1xf32>
    %272 = vector.broadcast %271 : vector<8x1xf32> to vector<8x16xf32>
    %273 = arith.subf %269, %272 : vector<8x16xf32>
    %274 = math.exp %273 : vector<8x16xf32>
    %cst_93 = arith.constant dense<0.000000e+00> : vector<8xf32>
    %275 = vector.multi_reduction <add>, %274, %cst_93 [1] : vector<8x16xf32> to vector<8xf32>
    %276 = vector.shape_cast %275 : vector<8xf32> to vector<8x1xf32>
    %277 = tpu.reciprocal %276 {approx = true} : vector<8x1xf32> -> vector<8x1xf32>
    %278 = vector.broadcast %277 : vector<8x1xf32> to vector<8x16xf32>
    %279 = arith.mulf %274, %278 : vector<8x16xf32>
    %280 = arith.truncf %279 : vector<8x16xf32> to vector<8x16xbf16>
    %281 = vector.extract_strided_slice %175 {offsets = [0, 24], sizes = [16, 8], strides = [1, 1]} : vector<16x32xf32> to vector<16x8xf32>
    %282 = arith.truncf %281 : vector<16x8xf32> to vector<16x8xbf16>
    %cst_94 = arith.constant dense<0.000000e+00> : vector<8x8xf32>
    %283 = tpu.matmul %280, %282, %cst_94 {dimension_numbers = #tpu.dot_dimension_numbers<[1], [0], [0], [1], [0, 0, 1, 1], [], []>} : vector<8x16xbf16>, vector<16x8xbf16>, vector<8x8xf32> -> vector<8x8xf32>
    %284 = tpu.concatenate %202, %229, %256, %283 in 1 : vector<8x8xf32>, vector<8x8xf32>, vector<8x8xf32>, vector<8x8xf32> -> vector<8x32xf32>
    %285 = arith.addf %137, %284 : vector<8x32xf32>
    %c1 = arith.constant 1 : index
    %c0_95 = arith.constant 0 : index
    %c0_96 = arith.constant 0 : index
    %286 = vector.load %arg22[%c1, %c0_95, %c0_96] : memref<3x2x32xf32, #tpu.memory_space<vmem>>, vector<1x2x32xf32>
    %287 = vector.shape_cast %286 : vector<1x2x32xf32> to vector<2x32xf32>
    %cst_97 = arith.constant dense<0.000000e+00> : vector<8xf32>
    %288 = vector.multi_reduction <add>, %285, %cst_97 [1] : vector<8x32xf32> to vector<8xf32>
    %289 = vector.shape_cast %288 : vector<8xf32> to vector<8x1xf32>
    %cst_98 = arith.constant 3.200000e+01 : f32
    %290 = vector.broadcast %cst_98 : f32 to vector<8x1xf32>
    %291 = arith.divf %289, %290 : vector<8x1xf32>
    %292 = vector.broadcast %291 : vector<8x1xf32> to vector<8x32xf32>
    %293 = arith.subf %285, %292 : vector<8x32xf32>
    %294 = arith.mulf %293, %293 : vector<8x32xf32>
    %cst_99 = arith.constant dense<0.000000e+00> : vector<8xf32>
    %295 = vector.multi_reduction <add>, %294, %cst_99 [1] : vector<8x32xf32> to vector<8xf32>
    %296 = vector.shape_cast %295 : vector<8xf32> to vector<8x1xf32>
    %cst_100 = arith.constant 3.200000e+01 : f32
    %297 = vector.broadcast %cst_100 : f32 to vector<8x1xf32>
    %298 = arith.divf %296, %297 : vector<8x1xf32>
    %299 = vector.broadcast %291 : vector<8x1xf32> to vector<8x32xf32>
    %300 = arith.subf %285, %299 : vector<8x32xf32>
    %cst_101 = arith.constant 9.99999974E-6 : f32
    %301 = vector.broadcast %cst_101 : f32 to vector<8x1xf32>
    %302 = arith.addf %298, %301 : vector<8x1xf32>
    %303 = math.rsqrt %302 : vector<8x1xf32>
    %304 = vector.broadcast %303 : vector<8x1xf32> to vector<8x32xf32>
    %305 = arith.mulf %300, %304 : vector<8x32xf32>
    %306 = vector.extract_strided_slice %287 {offsets = [0, 0], sizes = [1, 32], strides = [1, 1]} : vector<2x32xf32> to vector<1x32xf32>
    %307 = vector.broadcast %306 : vector<1x32xf32> to vector<8x32xf32>
    %308 = arith.mulf %305, %307 : vector<8x32xf32>
    %309 = vector.extract_strided_slice %287 {offsets = [1, 0], sizes = [1, 32], strides = [1, 1]} : vector<2x32xf32> to vector<1x32xf32>
    %310 = vector.broadcast %309 : vector<1x32xf32> to vector<8x32xf32>
    %311 = arith.addf %308, %310 : vector<8x32xf32>
    %312 = arith.truncf %311 : vector<8x32xf32> to vector<8x32xbf16>
    %c0_102 = arith.constant 0 : index
    %c0_103 = arith.constant 0 : index
    %313 = vector.load %arg18[%c0_102, %c0_103] : memref<32x64xf32, #tpu.memory_space<vmem>>, vector<32x64xf32>
    %314 = arith.truncf %313 : vector<32x64xf32> to vector<32x64xbf16>
    %cst_104 = arith.constant dense<0.000000e+00> : vector<8x64xf32>
    %315 = tpu.matmul %312, %314, %cst_104 {dimension_numbers = #tpu.dot_dimension_numbers<[1], [0], [0], [1], [0, 0, 1, 1], [], []>} : vector<8x32xbf16>, vector<32x64xbf16>, vector<8x64xf32> -> vector<8x64xf32>
    %c0_105 = arith.constant 0 : index
    %c0_106 = arith.constant 0 : index
    %316 = vector.load %arg19[%c0_105, %c0_106] : memref<1x64xf32, #tpu.memory_space<vmem>>, vector<1x64xf32>
    %317 = vector.broadcast %316 : vector<1x64xf32> to vector<8x64xf32>
    %318 = arith.addf %315, %317 : vector<8x64xf32>
    %cst_107 = arith.constant 0.000000e+00 : f32
    %319 = vector.broadcast %cst_107 : f32 to vector<8x64xf32>
    %320 = arith.maximumf %318, %319 : vector<8x64xf32>
    %321 = arith.truncf %320 : vector<8x64xf32> to vector<8x64xbf16>
    %c0_108 = arith.constant 0 : index
    %c0_109 = arith.constant 0 : index
    %322 = vector.load %arg20[%c0_108, %c0_109] : memref<64x32xf32, #tpu.memory_space<vmem>>, vector<64x32xf32>
    %323 = arith.truncf %322 : vector<64x32xf32> to vector<64x32xbf16>
    %cst_110 = arith.constant dense<0.000000e+00> : vector<8x32xf32>
    %324 = tpu.matmul %321, %323, %cst_110 {dimension_numbers = #tpu.dot_dimension_numbers<[1], [0], [0], [1], [0, 0, 1, 1], [], []>} : vector<8x64xbf16>, vector<64x32xbf16>, vector<8x32xf32> -> vector<8x32xf32>
    %c0_111 = arith.constant 0 : index
    %c0_112 = arith.constant 0 : index
    %325 = vector.load %arg21[%c0_111, %c0_112] : memref<1x32xf32, #tpu.memory_space<vmem>>, vector<1x32xf32>
    %326 = vector.broadcast %325 : vector<1x32xf32> to vector<8x32xf32>
    %327 = arith.addf %324, %326 : vector<8x32xf32>
    %328 = arith.addf %311, %327 : vector<8x32xf32>
    %c2 = arith.constant 2 : index
    %c0_113 = arith.constant 0 : index
    %c0_114 = arith.constant 0 : index
    %329 = vector.load %arg22[%c2, %c0_113, %c0_114] : memref<3x2x32xf32, #tpu.memory_space<vmem>>, vector<1x2x32xf32>
    %330 = vector.shape_cast %329 : vector<1x2x32xf32> to vector<2x32xf32>
    %cst_115 = arith.constant dense<0.000000e+00> : vector<8xf32>
    %331 = vector.multi_reduction <add>, %328, %cst_115 [1] : vector<8x32xf32> to vector<8xf32>
    %332 = vector.shape_cast %331 : vector<8xf32> to vector<8x1xf32>
    %cst_116 = arith.constant 3.200000e+01 : f32
    %333 = vector.broadcast %cst_116 : f32 to vector<8x1xf32>
    %334 = arith.divf %332, %333 : vector<8x1xf32>
    %335 = vector.broadcast %334 : vector<8x1xf32> to vector<8x32xf32>
    %336 = arith.subf %328, %335 : vector<8x32xf32>
    %337 = arith.mulf %336, %336 : vector<8x32xf32>
    %cst_117 = arith.constant dense<0.000000e+00> : vector<8xf32>
    %338 = vector.multi_reduction <add>, %337, %cst_117 [1] : vector<8x32xf32> to vector<8xf32>
    %339 = vector.shape_cast %338 : vector<8xf32> to vector<8x1xf32>
    %cst_118 = arith.constant 3.200000e+01 : f32
    %340 = vector.broadcast %cst_118 : f32 to vector<8x1xf32>
    %341 = arith.divf %339, %340 : vector<8x1xf32>
    %342 = vector.broadcast %334 : vector<8x1xf32> to vector<8x32xf32>
    %343 = arith.subf %328, %342 : vector<8x32xf32>
    %cst_119 = arith.constant 9.99999974E-6 : f32
    %344 = vector.broadcast %cst_119 : f32 to vector<8x1xf32>
    %345 = arith.addf %341, %344 : vector<8x1xf32>
    %346 = math.rsqrt %345 : vector<8x1xf32>
    %347 = vector.broadcast %346 : vector<8x1xf32> to vector<8x32xf32>
    %348 = arith.mulf %343, %347 : vector<8x32xf32>
    %349 = vector.extract_strided_slice %330 {offsets = [0, 0], sizes = [1, 32], strides = [1, 1]} : vector<2x32xf32> to vector<1x32xf32>
    %350 = vector.broadcast %349 : vector<1x32xf32> to vector<8x32xf32>
    %351 = arith.mulf %348, %350 : vector<8x32xf32>
    %352 = vector.extract_strided_slice %330 {offsets = [1, 0], sizes = [1, 32], strides = [1, 1]} : vector<2x32xf32> to vector<1x32xf32>
    %353 = vector.broadcast %352 : vector<1x32xf32> to vector<8x32xf32>
    %354 = arith.addf %351, %353 : vector<8x32xf32>
    %c0_120 = arith.constant 0 : index
    %c0_121 = arith.constant 0 : index
    %c0_122 = arith.constant 0 : index
    %355 = vector.load %arg23[%c0_120, %c0_121, %c0_122] : memref<1x8x32xf32, #tpu.memory_space<vmem>>, vector<1x8x32xf32>
    %356 = vector.shape_cast %355 : vector<1x8x32xf32> to vector<8x32xf32>
    %357 = vector.shape_cast %354 : vector<8x32xf32> to vector<1x8x32xf32>
    tpu.vector_store %arg23[%c0_120, %c0_121, %c0_122], %357 {strides = array<i32>} : memref<1x8x32xf32, #tpu.memory_space<vmem>>, vector<1x8x32xf32>,
    return
  }
  func.func @transform_0(%arg0: i32) -> (i32, i32, i32) {
    %c0_i32 = arith.constant 0 : i32
    %c0_i32_0 = arith.constant 0 : i32
    %c0_i32_1 = arith.constant 0 : i32
    return %arg0, %c0_i32, %c0_i32_0 : i32, i32, i32
  }
  func.func @transform_1(%arg0: i32) -> (i32, i32, i32) {
    %c0_i32 = arith.constant 0 : i32
    %c0_i32_0 = arith.constant 0 : i32
    %c0_i32_1 = arith.constant 0 : i32
    return %arg0, %c0_i32, %c0_i32_0 : i32, i32, i32
  }
  func.func @transform_2(%arg0: i32) -> (i32, i32, i32) {
    %c0_i32 = arith.constant 0 : i32
    %c0_i32_0 = arith.constant 0 : i32
    %c0_i32_1 = arith.constant 0 : i32
    return %arg0, %c0_i32, %c0_i32_0 : i32, i32, i32
  }
  func.func @transform_3(%arg0: i32) -> (i32, i32, i32) {
    %c0_i32 = arith.constant 0 : i32
    %c0_i32_0 = arith.constant 0 : i32
    %c0_i32_1 = arith.constant 0 : i32
    return %arg0, %c0_i32, %c0_i32_0 : i32, i32, i32
  }
  func.func @transform_4(%arg0: i32) -> (i32, i32, i32) {
    %c0_i32 = arith.constant 0 : i32
    %c0_i32_0 = arith.constant 0 : i32
    %c0_i32_1 = arith.constant 0 : i32
    return %arg0, %c0_i32, %c0_i32_0 : i32, i32, i32
  }
  func.func @transform_5(%arg0: i32) -> (i32, i32) {
    %c0_i32 = arith.constant 0 : i32
    %c0_i32_0 = arith.constant 0 : i32
    %c0_i32_1 = arith.constant 0 : i32
    return %c0_i32, %c0_i32_0 : i32, i32
  }
  func.func @transform_6(%arg0: i32) -> (i32, i32) {
    %c0_i32 = arith.constant 0 : i32
    %c0_i32_0 = arith.constant 0 : i32
    %c0_i32_1 = arith.constant 0 : i32
    return %c0_i32, %c0_i32_0 : i32, i32
  }
  func.func @transform_7(%arg0: i32) -> (i32, i32) {
    %c0_i32 = arith.constant 0 : i32
    %c0_i32_0 = arith.constant 0 : i32
    %c0_i32_1 = arith.constant 0 : i32
    return %c0_i32, %c0_i32_0 : i32, i32
  }
  func.func @transform_8(%arg0: i32) -> (i32, i32) {
    %c0_i32 = arith.constant 0 : i32
    %c0_i32_0 = arith.constant 0 : i32
    %c0_i32_1 = arith.constant 0 : i32
    return %c0_i32, %c0_i32_0 : i32, i32
  }
  func.func @transform_9(%arg0: i32) -> (i32, i32) {
    %c0_i32 = arith.constant 0 : i32
    %c0_i32_0 = arith.constant 0 : i32
    %c0_i32_1 = arith.constant 0 : i32
    return %c0_i32, %c0_i32_0 : i32, i32
  }
  func.func @transform_10(%arg0: i32) -> (i32, i32) {
    %c0_i32 = arith.constant 0 : i32
    %c0_i32_0 = arith.constant 0 : i32
    %c0_i32_1 = arith.constant 0 : i32
    return %c0_i32, %c0_i32_0 : i32, i32
  }
  func.func @transform_11(%arg0: i32) -> (i32, i32) {
    %c0_i32 = arith.constant 0 : i32
    %c0_i32_0 = arith.constant 0 : i32
    %c0_i32_1 = arith.constant 0 : i32
    return %c0_i32, %c0_i32_0 : i32, i32
  }
  func.func @transform_12(%arg0: i32) -> (i32, i32) {
    %c0_i32 = arith.constant 0 : i32
    %c0_i32_0 = arith.constant 0 : i32
    %c0_i32_1 = arith.constant 0 : i32
    return %c0_i32, %c0_i32_0 : i32, i32
  }
  func.func @transform_13(%arg0: i32) -> (i32, i32) {
    %c0_i32 = arith.constant 0 : i32
    %c0_i32_0 = arith.constant 0 : i32
    %c0_i32_1 = arith.constant 0 : i32
    return %c0_i32, %c0_i32_0 : i32, i32
  }
  func.func @transform_14(%arg0: i32) -> (i32, i32) {
    %c0_i32 = arith.constant 0 : i32
    %c0_i32_0 = arith.constant 0 : i32
    %c0_i32_1 = arith.constant 0 : i32
    return %c0_i32, %c0_i32_0 : i32, i32
  }
  func.func @transform_15(%arg0: i32) -> (i32, i32) {
    %c0_i32 = arith.constant 0 : i32
    %c0_i32_0 = arith.constant 0 : i32
    %c0_i32_1 = arith.constant 0 : i32
    return %c0_i32, %c0_i32_0 : i32, i32
  }
  func.func @transform_16(%arg0: i32) -> (i32, i32) {
    %c0_i32 = arith.constant 0 : i32
    %c0_i32_0 = arith.constant 0 : i32
    %c0_i32_1 = arith.constant 0 : i32
    return %c0_i32, %c0_i32_0 : i32, i32
  }
  func.func @transform_17(%arg0: i32) -> (i32, i32) {
    %c0_i32 = arith.constant 0 : i32
    %c0_i32_0 = arith.constant 0 : i32
    %c0_i32_1 = arith.constant 0 : i32
    return %c0_i32, %c0_i32_0 : i32, i32
  }
  func.func @transform_18(%arg0: i32) -> (i32, i32) {
    %c0_i32 = arith.constant 0 : i32
    %c0_i32_0 = arith.constant 0 : i32
    %c0_i32_1 = arith.constant 0 : i32
    return %c0_i32, %c0_i32_0 : i32, i32
  }
  func.func @transform_19(%arg0: i32) -> (i32, i32) {
    %c0_i32 = arith.constant 0 : i32
    %c0_i32_0 = arith.constant 0 : i32
    %c0_i32_1 = arith.constant 0 : i32
    return %c0_i32, %c0_i32_0 : i32, i32
  }
  func.func @transform_20(%arg0: i32) -> (i32, i32) {
    %c0_i32 = arith.constant 0 : i32
    %c0_i32_0 = arith.constant 0 : i32
    %c0_i32_1 = arith.constant 0 : i32
    return %c0_i32, %c0_i32_0 : i32, i32
  }
  func.func @transform_21(%arg0: i32) -> (i32, i32, i32) {
    %c0_i32 = arith.constant 0 : i32
    %c0_i32_0 = arith.constant 0 : i32
    %c0_i32_1 = arith.constant 0 : i32
    %c0_i32_2 = arith.constant 0 : i32
    return %c0_i32, %c0_i32_0, %c0_i32_1 : i32, i32, i32
  }
  func.func @transform_22(%arg0: i32) -> (i32, i32, i32) {
    %c0_i32 = arith.constant 0 : i32
    %c0_i32_0 = arith.constant 0 : i32
    %c0_i32_1 = arith.constant 0 : i32
    return %arg0, %c0_i32, %c0_i32_0 : i32, i32, i32
  }
}

</mosaic_0001>

<llo_original>
// kernel: decoder_layer_forward_pallas.1
$region0: #{decoder_layer_forward_pallas.1}
  #allocation0 [shape = 'u32[]', space=smem, size = 0x4, offset = 0x4, fixed_abs, tag = 'smem constant byte address 0x4 - core index']
  #allocation1 [shape = 'u32[144,128]{1,0:T(1,128)}', space=vmem, size = 0x12000, scoped, tag = 'internal scratch']
  %s0 = inlined_call_operand.vmem [shape: f32[2,8,32], index: 0, kind: input, shape index: {}]
  %s1 = inlined_call_operand.vmem [shape: f32[2,8,32], index: 1, kind: input, shape index: {}]
  %s2 = inlined_call_operand.vmem [shape: f32[2,8,32], index: 2, kind: input, shape index: {}]
  %s3 = inlined_call_operand.vmem [shape: f32[2,16,32], index: 3, kind: input, shape index: {}]
  %s4 = inlined_call_operand.vmem [shape: f32[2,16,32], index: 4, kind: input, shape index: {}]
  %s5 = inlined_call_operand.vmem [shape: f32[32,96], index: 5, kind: input, shape index: {}]
  %s6 = inlined_call_operand.vmem [shape: f32[1,96], index: 6, kind: input, shape index: {}]
  %s7 = inlined_call_operand.vmem [shape: f32[32,96], index: 7, kind: input, shape index: {}]
  %s8 = inlined_call_operand.vmem [shape: f32[1,96], index: 8, kind: input, shape index: {}]
  %s9 = inlined_call_operand.vmem [shape: f32[32,32], index: 9, kind: input, shape index: {}]
  %s10 = inlined_call_operand.vmem [shape: f32[1,32], index: 10, kind: input, shape index: {}]
  %s11 = inlined_call_operand.vmem [shape: f32[32,32], index: 11, kind: input, shape index: {}]
  %s12 = inlined_call_operand.vmem [shape: f32[1,32], index: 12, kind: input, shape index: {}]
  %s13 = inlined_call_operand.vmem [shape: f32[32,64], index: 13, kind: input, shape index: {}]
  %s14 = inlined_call_operand.vmem [shape: f32[1,64], index: 14, kind: input, shape index: {}]
  %s15 = inlined_call_operand.vmem [shape: f32[32,32], index: 15, kind: input, shape index: {}]
  %s16 = inlined_call_operand.vmem [shape: f32[1,32], index: 16, kind: input, shape index: {}]
  %s17 = inlined_call_operand.vmem [shape: f32[32,64], index: 17, kind: input, shape index: {}]
  %s18 = inlined_call_operand.vmem [shape: f32[1,64], index: 18, kind: input, shape index: {}]
  %s19 = inlined_call_operand.vmem [shape: f32[64,32], index: 19, kind: input, shape index: {}]
  %s20 = inlined_call_operand.vmem [shape: f32[1,32], index: 20, kind: input, shape index: {}]
  %s21 = inlined_call_operand.vmem [shape: f32[3,2,32], index: 21, kind: input, shape index: {}]
  %s22 = inlined_call_operand.vmem [shape: f32[2,8,32], index: 22, kind: output, shape index: {}]
  %s23 = sld [smem:[#allocation0]]
  $region121: #{decoder_layer_forward_pallas.1} parent=0
    _
  %s25 = ssub.s32 1, %s23
  %s26 = scalar_select 0, %s25, %s23
  loop: start=0, step=1, limit=4
  $region2: #{decoder_layer_forward_pallas.1} parent=0 // loop_pre_header
    _
  $region3: #{decoder_layer_forward_pallas.1} parent=0 // loop_header
    %s28 = sphi 0, %s32
    %p29 = scmp.ge.s32.totalorder %s28, 4
    %s38 = sphi 0, %s40
    %s41 = sphi 0, %s38
    %s42 = sphi 0, %s41
    %s58 = sphi 0, %s42
    %s64 = sphi 0, %s66
    %s67 = sphi 0, %s64
    %s68 = sphi 0, %s67
    %s84 = sphi 0, %s68
    %s90 = sphi 0, %s92
    %s93 = sphi 0, %s90
    %s94 = sphi 0, %s93
    %s110 = sphi 0, %s94
    %s116 = sphi 0, %s118
    %s119 = sphi 0, %s116
    %s120 = sphi 0, %s119
    %s136 = sphi 0, %s120
    %s142 = sphi 0, %s144
    %s145 = sphi 0, %s142
    %s146 = sphi 0, %s145
    %s162 = sphi 0, %s146
    %s166 = sphi 0, %s166
    %s168 = sphi 0, %s166
    %s169 = sphi 0, %s168
    %s183 = sphi 0, %s169
    %s187 = sphi 0, %s187
    %s189 = sphi 0, %s187
    %s190 = sphi 0, %s189
    %s204 = sphi 0, %s190
    %s208 = sphi 0, %s208
    %s210 = sphi 0, %s208
    %s211 = sphi 0, %s210
    %s225 = sphi 0, %s211
    %s229 = sphi 0, %s229
    %s231 = sphi 0, %s229
    %s232 = sphi 0, %s231
    %s246 = sphi 0, %s232
    %s250 = sphi 0, %s250
    %s252 = sphi 0, %s250
    %s253 = sphi 0, %s252
    %s267 = sphi 0, %s253
    %s271 = sphi 0, %s271
    %s273 = sphi 0, %s271
    %s274 = sphi 0, %s273
    %s288 = sphi 0, %s274
    %s292 = sphi 0, %s292
    %s294 = sphi 0, %s292
    %s295 = sphi 0, %s294
    %s309 = sphi 0, %s295
    %s313 = sphi 0, %s313
    %s315 = sphi 0, %s313
    %s316 = sphi 0, %s315
    %s330 = sphi 0, %s316
    %s334 = sphi 0, %s334
    %s336 = sphi 0, %s334
    %s337 = sphi 0, %s336
    %s351 = sphi 0, %s337
    %s355 = sphi 0, %s355
    %s357 = sphi 0, %s355
    %s358 = sphi 0, %s357
    %s372 = sphi 0, %s358
    %s376 = sphi 0, %s376
    %s378 = sphi 0, %s376
    %s379 = sphi 0, %s378
    %s393 = sphi 0, %s379
    %s397 = sphi 0, %s397
    %s399 = sphi 0, %s397
    %s400 = sphi 0, %s399
    %s414 = sphi 0, %s400
    %s418 = sphi 0, %s418
    %s420 = sphi 0, %s418
    %s421 = sphi 0, %s420
    %s435 = sphi 0, %s421
    %s439 = sphi 0, %s439
    %s441 = sphi 0, %s439
    %s442 = sphi 0, %s441
    %s456 = sphi 0, %s442
    %s460 = sphi 0, %s460
    %s462 = sphi 0, %s460
    %s463 = sphi 0, %s462
    %s477 = sphi 0, %s463
    %s481 = sphi 0, %s481
    %s483 = sphi 0, %s481
    %s484 = sphi 0, %s483
    %s498 = sphi 0, %s484
    %s502 = sphi 0, %s502
    %s504 = sphi 0, %s502
    %s505 = sphi 0, %s504
    %s519 = sphi 0, %s505
    %s525 = sphi 0, %s527
    %s528 = sphi 0, %s525
    %s529 = sphi 0, %s528
    %s545 = sphi 0, %s529
  $region4: #{decoder_layer_forward_pallas.1} parent=0 // loop_header_branch
    %31 = sbr.rel (%p29) target = $region8
  $region5: #{decoder_layer_forward_pallas.1} parent=0 // loop_body
    %s33 = ssub.s32 %s28, 1
    %s34 = ssub.s32 %s28, 2
    %s35 = sadd.s32 %s28, 1
    %s36 = ssub.s32 %s28, %s35
    %p37 = scmp.eq.s32.totalorder %s36, 0
    %s39 = sadd.s32 %s38, 1
    %s40 = scalar_select %p37, %s38, %s39
    %p43 = pneg %p37
    %p44 = scmp.eq.s32.totalorder %s28, 1
    %p45 = por %p43, %p44
    %p46 = scmp.ne.s32.totalorder %s38, %s41
    %p47 = scmp.eq.s32.totalorder %s28, 0
    %p48 = por %p46, %p47
    %p49 = scmp.ne.s32.totalorder %s38, %s41
    %p50 = scmp.eq.s32.totalorder %s33, 1
    %p51 = por %p49, %p50
    %p52 = scmp.ne.s32.totalorder %s41, %s42
    %p53 = scmp.eq.s32.totalorder %s33, 0
    %p54 = por %p52, %p53
    %p55 = scmp.ne.s32.totalorder %s41, %s42
    %p56 = scmp.eq.s32.totalorder %s34, 1
    %p57 = por %p55, %p56
    %p59 = scmp.ne.s32.totalorder %s42, %s58
    %p60 = scmp.eq.s32.totalorder %s34, 0
    %p61 = por %p59, %p60
    %s62 = ssub.s32 %s28, %s35
    %p63 = scmp.eq.s32.totalorder %s62, 0
    %s65 = sadd.s32 %s64, 1
    %s66 = scalar_select %p63, %s64, %s65
    %p69 = pneg %p63
    %p70 = scmp.eq.s32.totalorder %s28, 1
    %p71 = por %p69, %p70
    %p72 = scmp.ne.s32.totalorder %s64, %s67
    %p73 = scmp.eq.s32.totalorder %s28, 0
    %p74 = por %p72, %p73
    %p75 = scmp.ne.s32.totalorder %s64, %s67
    %p76 = scmp.eq.s32.totalorder %s33, 1
    %p77 = por %p75, %p76
    %p78 = scmp.ne.s32.totalorder %s67, %s68
    %p79 = scmp.eq.s32.totalorder %s33, 0
    %p80 = por %p78, %p79
    %p81 = scmp.ne.s32.totalorder %s67, %s68
    %p82 = scmp.eq.s32.totalorder %s34, 1
    %p83 = por %p81, %p82
    %p85 = scmp.ne.s32.totalorder %s68, %s84
    %p86 = scmp.eq.s32.totalorder %s34, 0
    %p87 = por %p85, %p86
    %s88 = ssub.s32 %s28, %s35
    %p89 = scmp.eq.s32.totalorder %s88, 0
    %s91 = sadd.s32 %s90, 1
    %s92 = scalar_select %p89, %s90, %s91
    %p95 = pneg %p89
    %p96 = scmp.eq.s32.totalorder %s28, 1
    %p97 = por %p95, %p96
    %p98 = scmp.ne.s32.totalorder %s90, %s93
    %p99 = scmp.eq.s32.totalorder %s28, 0
    %p100 = por %p98, %p99
    %p101 = scmp.ne.s32.totalorder %s90, %s93
    %p102 = scmp.eq.s32.totalorder %s33, 1
    %p103 = por %p101, %p102
    %p104 = scmp.ne.s32.totalorder %s93, %s94
    %p105 = scmp.eq.s32.totalorder %s33, 0
    %p106 = por %p104, %p105
    %p107 = scmp.ne.s32.totalorder %s93, %s94
    %p108 = scmp.eq.s32.totalorder %s34, 1
    %p109 = por %p107, %p108
    %p111 = scmp.ne.s32.totalorder %s94, %s110
    %p112 = scmp.eq.s32.totalorder %s34, 0
    %p113 = por %p111, %p112
    %s114 = ssub.s32 %s28, %s35
    %p115 = scmp.eq.s32.totalorder %s114, 0
    %s117 = sadd.s32 %s116, 1
    %s118 = scalar_select %p115, %s116, %s117
    %p121 = pneg %p115
    %p122 = scmp.eq.s32.totalorder %s28, 1
    %p123 = por %p121, %p122
    %p124 = scmp.ne.s32.totalorder %s116, %s119
    %p125 = scmp.eq.s32.totalorder %s28, 0
    %p126 = por %p124, %p125
    %p127 = scmp.ne.s32.totalorder %s116, %s119
    %p128 = scmp.eq.s32.totalorder %s33, 1
    %p129 = por %p127, %p128
    %p130 = scmp.ne.s32.totalorder %s119, %s120
    %p131 = scmp.eq.s32.totalorder %s33, 0
    %p132 = por %p130, %p131
    %p133 = scmp.ne.s32.totalorder %s119, %s120
    %p134 = scmp.eq.s32.totalorder %s34, 1
    %p135 = por %p133, %p134
    %p137 = scmp.ne.s32.totalorder %s120, %s136
    %p138 = scmp.eq.s32.totalorder %s34, 0
    %p139 = por %p137, %p138
    %s140 = ssub.s32 %s28, %s35
    %p141 = scmp.eq.s32.totalorder %s140, 0
    %s143 = sadd.s32 %s142, 1
    %s144 = scalar_select %p141, %s142, %s143
    %p147 = pneg %p141
    %p148 = scmp.eq.s32.totalorder %s28, 1
    %p149 = por %p147, %p148
    %p150 = scmp.ne.s32.totalorder %s142, %s145
    %p151 = scmp.eq.s32.totalorder %s28, 0
    %p152 = por %p150, %p151
    %p153 = scmp.ne.s32.totalorder %s142, %s145
    %p154 = scmp.eq.s32.totalorder %s33, 1
    %p155 = por %p153, %p154
    %p156 = scmp.ne.s32.totalorder %s145, %s146
    %p157 = scmp.eq.s32.totalorder %s33, 0
    %p158 = por %p156, %p157
    %p159 = scmp.ne.s32.totalorder %s145, %s146
    %p160 = scmp.eq.s32.totalorder %s34, 1
    %p161 = por %p159, %p160
    %p163 = scmp.ne.s32.totalorder %s146, %s162
    %p164 = scmp.eq.s32.totalorder %s34, 0
    %p165 = por %p163, %p164
    %s167 = sadd.s32 %s166, 1
    %p170 = scmp.eq.s32.totalorder %s28, 1
    %p171 = scmp.ne.s32.totalorder %s166, %s168
    %p172 = scmp.eq.s32.totalorder %s28, 0
    %p173 = por %p171, %p172
    %p174 = scmp.ne.s32.totalorder %s166, %s168
    %p175 = scmp.eq.s32.totalorder %s33, 1
    %p176 = por %p174, %p175
    %p177 = scmp.ne.s32.totalorder %s168, %s169
    %p178 = scmp.eq.s32.totalorder %s33, 0
    %p179 = por %p177, %p178
    %p180 = scmp.ne.s32.totalorder %s168, %s169
    %p181 = scmp.eq.s32.totalorder %s34, 1
    %p182 = por %p180, %p181
    %p184 = scmp.ne.s32.totalorder %s169, %s183
    %p185 = scmp.eq.s32.totalorder %s34, 0
    %p186 = por %p184, %p185
    %s188 = sadd.s32 %s187, 1
    %p191 = scmp.eq.s32.totalorder %s28, 1
    %p192 = scmp.ne.s32.totalorder %s187, %s189
    %p193 = scmp.eq.s32.totalorder %s28, 0
    %p194 = por %p192, %p193
    %p195 = scmp.ne.s32.totalorder %s187, %s189
    %p196 = scmp.eq.s32.totalorder %s33, 1
    %p197 = por %p195, %p196
    %p198 = scmp.ne.s32.totalorder %s189, %s190
    %p199 = scmp.eq.s32.totalorder %s33, 0
    %p200 = por %p198, %p199
    %p201 = scmp.ne.s32.totalorder %s189, %s190
    %p202 = scmp.eq.s32.totalorder %s34, 1
    %p203 = por %p201, %p202
    %p205 = scmp.ne.s32.totalorder %s190, %s204
    %p206 = scmp.eq.s32.totalorder %s34, 0
    %p207 = por %p205, %p206
    %s209 = sadd.s32 %s208, 1
    %p212 = scmp.eq.s32.totalorder %s28, 1
    %p213 = scmp.ne.s32.totalorder %s208, %s210
    %p214 = scmp.eq.s32.totalorder %s28, 0
    %p215 = por %p213, %p214
    %p216 = scmp.ne.s32.totalorder %s208, %s210
    %p217 = scmp.eq.s32.totalorder %s33, 1
    %p218 = por %p216, %p217
    %p219 = scmp.ne.s32.totalorder %s210, %s211
    %p220 = scmp.eq.s32.totalorder %s33, 0
    %p221 = por %p219, %p220
    %p222 = scmp.ne.s32.totalorder %s210, %s211
    %p223 = scmp.eq.s32.totalorder %s34, 1
    %p224 = por %p222, %p223
    %p226 = scmp.ne.s32.totalorder %s211, %s225
    %p227 = scmp.eq.s32.totalorder %s34, 0
    %p228 = por %p226, %p227
    %s230 = sadd.s32 %s229, 1
    %p233 = scmp.eq.s32.totalorder %s28, 1
    %p234 = scmp.ne.s32.totalorder %s229, %s231
    %p235 = scmp.eq.s32.totalorder %s28, 0
    %p236 = por %p234, %p235
    %p237 = scmp.ne.s32.totalorder %s229, %s231
    %p238 = scmp.eq.s32.totalorder %s33, 1
    %p239 = por %p237, %p238
    %p240 = scmp.ne.s32.totalorder %s231, %s232
    %p241 = scmp.eq.s32.totalorder %s33, 0
    %p242 = por %p240, %p241
    %p243 = scmp.ne.s32.totalorder %s231, %s232
    %p244 = scmp.eq.s32.totalorder %s34, 1
    %p245 = por %p243, %p244
    %p247 = scmp.ne.s32.totalorder %s232, %s246
    %p248 = scmp.eq.s32.totalorder %s34, 0
    %p249 = por %p247, %p248
    %s251 = sadd.s32 %s250, 1
    %p254 = scmp.eq.s32.totalorder %s28, 1
    %p255 = scmp.ne.s32.totalorder %s250, %s252
    %p256 = scmp.eq.s32.totalorder %s28, 0
    %p257 = por %p255, %p256
    %p258 = scmp.ne.s32.totalorder %s250, %s252
    %p259 = scmp.eq.s32.totalorder %s33, 1
    %p260 = por %p258, %p259
    %p261 = scmp.ne.s32.totalorder %s252, %s253
    %p262 = scmp.eq.s32.totalorder %s33, 0
    %p263 = por %p261, %p262
    %p264 = scmp.ne.s32.totalorder %s252, %s253
    %p265 = scmp.eq.s32.totalorder %s34, 1
    %p266 = por %p264, %p265
    %p268 = scmp.ne.s32.totalorder %s253, %s267
    %p269 = scmp.eq.s32.totalorder %s34, 0
    %p270 = por %p268, %p269
    %s272 = sadd.s32 %s271, 1
    %p275 = scmp.eq.s32.totalorder %s28, 1
    %p276 = scmp.ne.s32.totalorder %s271, %s273
    %p277 = scmp.eq.s32.totalorder %s28, 0
    %p278 = por %p276, %p277
    %p279 = scmp.ne.s32.totalorder %s271, %s273
    %p280 = scmp.eq.s32.totalorder %s33, 1
    %p281 = por %p279, %p280
    %p282 = scmp.ne.s32.totalorder %s273, %s274
    %p283 = scmp.eq.s32.totalorder %s33, 0
    %p284 = por %p282, %p283
    %p285 = scmp.ne.s32.totalorder %s273, %s274
    %p286 = scmp.eq.s32.totalorder %s34, 1
    %p287 = por %p285, %p286
    %p289 = scmp.ne.s32.totalorder %s274, %s288
    %p290 = scmp.eq.s32.totalorder %s34, 0
    %p291 = por %p289, %p290
    %s293 = sadd.s32 %s292, 1
    %p296 = scmp.eq.s32.totalorder %s28, 1
    %p297 = scmp.ne.s32.totalorder %s292, %s294
    %p298 = scmp.eq.s32.totalorder %s28, 0
    %p299 = por %p297, %p298
    %p300 = scmp.ne.s32.totalorder %s292, %s294
    %p301 = scmp.eq.s32.totalorder %s33, 1
    %p302 = por %p300, %p301
    %p303 = scmp.ne.s32.totalorder %s294, %s295
    %p304 = scmp.eq.s32.totalorder %s33, 0
    %p305 = por %p303, %p304
    %p306 = scmp.ne.s32.totalorder %s294, %s295
    %p307 = scmp.eq.s32.totalorder %s34, 1
    %p308 = por %p306, %p307
    %p310 = scmp.ne.s32.totalorder %s295, %s309
    %p311 = scmp.eq.s32.totalorder %s34, 0
    %p312 = por %p310, %p311
    %s314 = sadd.s32 %s313, 1
    %p317 = scmp.eq.s32.totalorder %s28, 1
    %p318 = scmp.ne.s32.totalorder %s313, %s315
    %p319 = scmp.eq.s32.totalorder %s28, 0
    %p320 = por %p318, %p319
    %p321 = scmp.ne.s32.totalorder %s313, %s315
    %p322 = scmp.eq.s32.totalorder %s33, 1
    %p323 = por %p321, %p322
    %p324 = scmp.ne.s32.totalorder %s315, %s316
    %p325 = scmp.eq.s32.totalorder %s33, 0
    %p326 = por %p324, %p325
    %p327 = scmp.ne.s32.totalorder %s315, %s316
    %p328 = scmp.eq.s32.totalorder %s34, 1
    %p329 = por %p327, %p328
    %p331 = scmp.ne.s32.totalorder %s316, %s330
    %p332 = scmp.eq.s32.totalorder %s34, 0
    %p333 = por %p331, %p332
    %s335 = sadd.s32 %s334, 1
    %p338 = scmp.eq.s32.totalorder %s28, 1
    %p339 = scmp.ne.s32.totalorder %s334, %s336
    %p340 = scmp.eq.s32.totalorder %s28, 0
    %p341 = por %p339, %p340
    %p342 = scmp.ne.s32.totalorder %s334, %s336
    %p343 = scmp.eq.s32.totalorder %s33, 1
    %p344 = por %p342, %p343
    %p345 = scmp.ne.s32.totalorder %s336, %s337
    %p346 = scmp.eq.s32.totalorder %s33, 0
    %p347 = por %p345, %p346
    %p348 = scmp.ne.s32.totalorder %s336, %s337
    %p349 = scmp.eq.s32.totalorder %s34, 1
    %p350 = por %p348, %p349
    %p352 = scmp.ne.s32.totalorder %s337, %s351
    %p353 = scmp.eq.s32.totalorder %s34, 0
    %p354 = por %p352, %p353
    %s356 = sadd.s32 %s355, 1
    %p359 = scmp.eq.s32.totalorder %s28, 1
    %p360 = scmp.ne.s32.totalorder %s355, %s357
    %p361 = scmp.eq.s32.totalorder %s28, 0
    %p362 = por %p360, %p361
    %p363 = scmp.ne.s32.totalorder %s355, %s357
    %p364 = scmp.eq.s32.totalorder %s33, 1
    %p365 = por %p363, %p364
    %p366 = scmp.ne.s32.totalorder %s357, %s358
    %p367 = scmp.eq.s32.totalorder %s33, 0
    %p368 = por %p366, %p367
    %p369 = scmp.ne.s32.totalorder %s357, %s358
    %p370 = scmp.eq.s32.totalorder %s34, 1
    %p371 = por %p369, %p370
    %p373 = scmp.ne.s32.totalorder %s358, %s372
    %p374 = scmp.eq.s32.totalorder %s34, 0
    %p375 = por %p373, %p374
    %s377 = sadd.s32 %s376, 1
    %p380 = scmp.eq.s32.totalorder %s28, 1
    %p381 = scmp.ne.s32.totalorder %s376, %s378
    %p382 = scmp.eq.s32.totalorder %s28, 0
    %p383 = por %p381, %p382
    %p384 = scmp.ne.s32.totalorder %s376, %s378
    %p385 = scmp.eq.s32.totalorder %s33, 1
    %p386 = por %p384, %p385
    %p387 = scmp.ne.s32.totalorder %s378, %s379
    %p388 = scmp.eq.s32.totalorder %s33, 0
    %p389 = por %p387, %p388
    %p390 = scmp.ne.s32.totalorder %s378, %s379
    %p391 = scmp.eq.s32.totalorder %s34, 1
    %p392 = por %p390, %p391
    %p394 = scmp.ne.s32.totalorder %s379, %s393
    %p395 = scmp.eq.s32.totalorder %s34, 0
    %p396 = por %p394, %p395
    %s398 = sadd.s32 %s397, 1
    %p401 = scmp.eq.s32.totalorder %s28, 1
    %p402 = scmp.ne.s32.totalorder %s397, %s399
    %p403 = scmp.eq.s32.totalorder %s28, 0
    %p404 = por %p402, %p403
    %p405 = scmp.ne.s32.totalorder %s397, %s399
    %p406 = scmp.eq.s32.totalorder %s33, 1
    %p407 = por %p405, %p406
    %p408 = scmp.ne.s32.totalorder %s399, %s400
    %p409 = scmp.eq.s32.totalorder %s33, 0
    %p410 = por %p408, %p409
    %p411 = scmp.ne.s32.totalorder %s399, %s400
    %p412 = scmp.eq.s32.totalorder %s34, 1
    %p413 = por %p411, %p412
    %p415 = scmp.ne.s32.totalorder %s400, %s414
    %p416 = scmp.eq.s32.totalorder %s34, 0
    %p417 = por %p415, %p416
    %s419 = sadd.s32 %s418, 1
    %p422 = scmp.eq.s32.totalorder %s28, 1
    %p423 = scmp.ne.s32.totalorder %s418, %s420
    %p424 = scmp.eq.s32.totalorder %s28, 0
    %p425 = por %p423, %p424
    %p426 = scmp.ne.s32.totalorder %s418, %s420
    %p427 = scmp.eq.s32.totalorder %s33, 1
    %p428 = por %p426, %p427
    %p429 = scmp.ne.s32.totalorder %s420, %s421
    %p430 = scmp.eq.s32.totalorder %s33, 0
    %p431 = por %p429, %p430
    %p432 = scmp.ne.s32.totalorder %s420, %s421
    %p433 = scmp.eq.s32.totalorder %s34, 1
    %p434 = por %p432, %p433
    %p436 = scmp.ne.s32.totalorder %s421, %s435
    %p437 = scmp.eq.s32.totalorder %s34, 0
    %p438 = por %p436, %p437
    %s440 = sadd.s32 %s439, 1
    %p443 = scmp.eq.s32.totalorder %s28, 1
    %p444 = scmp.ne.s32.totalorder %s439, %s441
    %p445 = scmp.eq.s32.totalorder %s28, 0
    %p446 = por %p444, %p445
    %p447 = scmp.ne.s32.totalorder %s439, %s441
    %p448 = scmp.eq.s32.totalorder %s33, 1
    %p449 = por %p447, %p448
    %p450 = scmp.ne.s32.totalorder %s441, %s442
    %p451 = scmp.eq.s32.totalorder %s33, 0
    %p452 = por %p450, %p451
    %p453 = scmp.ne.s32.totalorder %s441, %s442
    %p454 = scmp.eq.s32.totalorder %s34, 1
    %p455 = por %p453, %p454
    %p457 = scmp.ne.s32.totalorder %s442, %s456
    %p458 = scmp.eq.s32.totalorder %s34, 0
    %p459 = por %p457, %p458
    %s461 = sadd.s32 %s460, 1
    %p464 = scmp.eq.s32.totalorder %s28, 1
    %p465 = scmp.ne.s32.totalorder %s460, %s462
    %p466 = scmp.eq.s32.totalorder %s28, 0
    %p467 = por %p465, %p466
    %p468 = scmp.ne.s32.totalorder %s460, %s462
    %p469 = scmp.eq.s32.totalorder %s33, 1
    %p470 = por %p468, %p469
    %p471 = scmp.ne.s32.totalorder %s462, %s463
    %p472 = scmp.eq.s32.totalorder %s33, 0
    %p473 = por %p471, %p472
    %p474 = scmp.ne.s32.totalorder %s462, %s463
    %p475 = scmp.eq.s32.totalorder %s34, 1
    %p476 = por %p474, %p475
    %p478 = scmp.ne.s32.totalorder %s463, %s477
    %p479 = scmp.eq.s32.totalorder %s34, 0
    %p480 = por %p478, %p479
    %s482 = sadd.s32 %s481, 1
    %p485 = scmp.eq.s32.totalorder %s28, 1
    %p486 = scmp.ne.s32.totalorder %s481, %s483
    %p487 = scmp.eq.s32.totalorder %s28, 0
    %p488 = por %p486, %p487
    %p489 = scmp.ne.s32.totalorder %s481, %s483
    %p490 = scmp.eq.s32.totalorder %s33, 1
    %p491 = por %p489, %p490
    %p492 = scmp.ne.s32.totalorder %s483, %s484
    %p493 = scmp.eq.s32.totalorder %s33, 0
    %p494 = por %p492, %p493
    %p495 = scmp.ne.s32.totalorder %s483, %s484
    %p496 = scmp.eq.s32.totalorder %s34, 1
    %p497 = por %p495, %p496
    %p499 = scmp.ne.s32.totalorder %s484, %s498
    %p500 = scmp.eq.s32.totalorder %s34, 0
    %p501 = por %p499, %p500
    %s503 = sadd.s32 %s502, 1
    %p506 = scmp.eq.s32.totalorder %s28, 1
    %p507 = scmp.ne.s32.totalorder %s502, %s504
    %p508 = scmp.eq.s32.totalorder %s28, 0
    %p509 = por %p507, %p508
    %p510 = scmp.ne.s32.totalorder %s502, %s504
    %p511 = scmp.eq.s32.totalorder %s33, 1
    %p512 = por %p510, %p511
    %p513 = scmp.ne.s32.totalorder %s504, %s505
    %p514 = scmp.eq.s32.totalorder %s33, 0
    %p515 = por %p513, %p514
    %p516 = scmp.ne.s32.totalorder %s504, %s505
    %p517 = scmp.eq.s32.totalorder %s34, 1
    %p518 = por %p516, %p517
    %p520 = scmp.ne.s32.totalorder %s505, %s519
    %p521 = scmp.eq.s32.totalorder %s34, 0
    %p522 = por %p520, %p521
    %s523 = ssub.s32 %s28, %s35
    %p524 = scmp.eq.s32.totalorder %s523, 0
    %s526 = sadd.s32 %s525, 1
    %s527 = scalar_select %p524, %s525, %s526
    %p530 = pneg %p524
    %p531 = scmp.eq.s32.totalorder %s28, 1
    %p532 = por %p530, %p531
    %p533 = scmp.ne.s32.totalorder %s525, %s528
    %p534 = scmp.eq.s32.totalorder %s28, 0
    %p535 = por %p533, %p534
    %p536 = scmp.ne.s32.totalorder %s525, %s528
    %p537 = scmp.eq.s32.totalorder %s33, 1
    %p538 = por %p536, %p537
    %p539 = scmp.ne.s32.totalorder %s528, %s529
    %p540 = scmp.eq.s32.totalorder %s33, 0
    %p541 = por %p539, %p540
    %p542 = scmp.ne.s32.totalorder %s528, %s529
    %p543 = scmp.eq.s32.totalorder %s34, 1
    %p544 = por %p542, %p543
    %p546 = scmp.ne.s32.totalorder %s529, %s545
    %p547 = scmp.eq.s32.totalorder %s34, 0
    %p548 = por %p546, %p547
    %p549 = scmp.le.s32.totalorder 1, %s28
    %p550 = scmp.lt.s32.totalorder %s28, 3
    %p551 = pnand %p549, %p550
    %p552 = pneg %p551
    // Predicated region
    $region9: #{decoder_layer_forward_pallas.1} parent=5 // pred_check
      _
    $region10: #{decoder_layer_forward_pallas.1} parent=5 // pred_check_branch
      %554 = sbr.rel (%p551) target = $region12
    $region11: #{decoder_layer_forward_pallas.1} parent=5 // pred_region
      %s555 = ssub.s32 %s28, 1
      // Predicated region
      $region13: #{decoder_layer_forward_pallas.1} parent=11 // pred_check
        %p556 = pneg %p179
      $region14: #{decoder_layer_forward_pallas.1} parent=11 // pred_check_branch
        %558 = sbr.rel (%p556) target = $region16
      $region15: #{decoder_layer_forward_pallas.1} parent=11 // pred_region
        _
      $region16: #{decoder_layer_forward_pallas.1} parent=11 // pred_fallthru
        _
      // Predicated region
      $region17: #{decoder_layer_forward_pallas.1} parent=11 // pred_check
        %p559 = pneg %p200
      $region18: #{decoder_layer_forward_pallas.1} parent=11 // pred_check_branch
        %561 = sbr.rel (%p559) target = $region20
      $region19: #{decoder_layer_forward_pallas.1} parent=11 // pred_region
        _
      $region20: #{decoder_layer_forward_pallas.1} parent=11 // pred_fallthru
        _
      // Predicated region
      $region21: #{decoder_layer_forward_pallas.1} parent=11 // pred_check
        %p562 = pneg %p221
      $region22: #{decoder_layer_forward_pallas.1} parent=11 // pred_check_branch
        %564 = sbr.rel (%p562) target = $region24
      $region23: #{decoder_layer_forward_pallas.1} parent=11 // pred_region
        _
      $region24: #{decoder_layer_forward_pallas.1} parent=11 // pred_fallthru
        _
      // Predicated region
      $region25: #{decoder_layer_forward_pallas.1} parent=11 // pred_check
        %p565 = pneg %p242
      $region26: #{decoder_layer_forward_pallas.1} parent=11 // pred_check_branch
        %567 = sbr.rel (%p565) target = $region28
      $region27: #{decoder_layer_forward_pallas.1} parent=11 // pred_region
        _
      $region28: #{decoder_layer_forward_pallas.1} parent=11 // pred_fallthru
        _
      // Predicated region
      $region29: #{decoder_layer_forward_pallas.1} parent=11 // pred_check
        %p568 = pneg %p263
      $region30: #{decoder_layer_forward_pallas.1} parent=11 // pred_check_branch
        %570 = sbr.rel (%p568) target = $region32
      $region31: #{decoder_layer_forward_pallas.1} parent=11 // pred_region
        _
      $region32: #{decoder_layer_forward_pallas.1} parent=11 // pred_fallthru
        _
      // Predicated region
      $region33: #{decoder_layer_forward_pallas.1} parent=11 // pred_check
        %p571 = pneg %p284
      $region34: #{decoder_layer_forward_pallas.1} parent=11 // pred_check_branch
        %573 = sbr.rel (%p571) target = $region36
      $region35: #{decoder_layer_forward_pallas.1} parent=11 // pred_region
        _
      $region36: #{decoder_layer_forward_pallas.1} parent=11 // pred_fallthru
        _
      // Predicated region
      $region37: #{decoder_layer_forward_pallas.1} parent=11 // pred_check
        %p574 = pneg %p305
      $region38: #{decoder_layer_forward_pallas.1} parent=11 // pred_check_branch
        %576 = sbr.rel (%p574) target = $region40
      $region39: #{decoder_layer_forward_pallas.1} parent=11 // pred_region
        _
      $region40: #{decoder_layer_forward_pallas.1} parent=11 // pred_fallthru
        _
      // Predicated region
      $region41: #{decoder_layer_forward_pallas.1} parent=11 // pred_check
        %p577 = pneg %p326
      $region42: #{decoder_layer_forward_pallas.1} parent=11 // pred_check_branch
        %579 = sbr.rel (%p577) target = $region44
      $region43: #{decoder_layer_forward_pallas.1} parent=11 // pred_region
        _
      $region44: #{decoder_layer_forward_pallas.1} parent=11 // pred_fallthru
        _
      // Predicated region
      $region45: #{decoder_layer_forward_pallas.1} parent=11 // pred_check
        %p580 = pneg %p347
      $region46: #{decoder_layer_forward_pallas.1} parent=11 // pred_check_branch
        %582 = sbr.rel (%p580) target = $region48
      $region47: #{decoder_layer_forward_pallas.1} parent=11 // pred_region
        _
      $region48: #{decoder_layer_forward_pallas.1} parent=11 // pred_fallthru
        _
      // Predicated region
      $region49: #{decoder_layer_forward_pallas.1} parent=11 // pred_check
        %p583 = pneg %p368
      $region50: #{decoder_layer_forward_pallas.1} parent=11 // pred_check_branch
        %585 = sbr.rel (%p583) target = $region52
      $region51: #{decoder_layer_forward_pallas.1} parent=11 // pred_region
        _
      $region52: #{decoder_layer_forward_pallas.1} parent=11 // pred_fallthru
        _
      // Predicated region
      $region53: #{decoder_layer_forward_pallas.1} parent=11 // pred_check
        %p586 = pneg %p389
      $region54: #{decoder_layer_forward_pallas.1} parent=11 // pred_check_branch
        %588 = sbr.rel (%p586) target = $region56
      $region55: #{decoder_layer_forward_pallas.1} parent=11 // pred_region
        _
      $region56: #{decoder_layer_forward_pallas.1} parent=11 // pred_fallthru
        _
      // Predicated region
      $region57: #{decoder_layer_forward_pallas.1} parent=11 // pred_check
        %p589 = pneg %p410
      $region58: #{decoder_layer_forward_pallas.1} parent=11 // pred_check_branch
        %591 = sbr.rel (%p589) target = $region60
      $region59: #{decoder_layer_forward_pallas.1} parent=11 // pred_region
        _
      $region60: #{decoder_layer_forward_pallas.1} parent=11 // pred_fallthru
        _
      // Predicated region
      $region61: #{decoder_layer_forward_pallas.1} parent=11 // pred_check
        %p592 = pneg %p431
      $region62: #{decoder_layer_forward_pallas.1} parent=11 // pred_check_branch
        %594 = sbr.rel (%p592) target = $region64
      $region63: #{decoder_layer_forward_pallas.1} parent=11 // pred_region
        _
      $region64: #{decoder_layer_forward_pallas.1} parent=11 // pred_fallthru
        _
      // Predicated region
      $region65: #{decoder_layer_forward_pallas.1} parent=11 // pred_check
        %p595 = pneg %p452
      $region66: #{decoder_layer_forward_pallas.1} parent=11 // pred_check_branch
        %597 = sbr.rel (%p595) target = $region68
      $region67: #{decoder_layer_forward_pallas.1} parent=11 // pred_region
        _
      $region68: #{decoder_layer_forward_pallas.1} parent=11 // pred_fallthru
        _
      // Predicated region
      $region69: #{decoder_layer_forward_pallas.1} parent=11 // pred_check
        %p598 = pneg %p473
      $region70: #{decoder_layer_forward_pallas.1} parent=11 // pred_check_branch
        %600 = sbr.rel (%p598) target = $region72
      $region71: #{decoder_layer_forward_pallas.1} parent=11 // pred_region
        _
      $region72: #{decoder_layer_forward_pallas.1} parent=11 // pred_fallthru
        _
      // Predicated region
      $region73: #{decoder_layer_forward_pallas.1} parent=11 // pred_check
        %p601 = pneg %p494
      $region74: #{decoder_layer_forward_pallas.1} parent=11 // pred_check_branch
        %603 = sbr.rel (%p601) target = $region76
      $region75: #{decoder_layer_forward_pallas.1} parent=11 // pred_region
        _
      $region76: #{decoder_layer_forward_pallas.1} parent=11 // pred_fallthru
        _
      // Predicated region
      $region77: #{decoder_layer_forward_pallas.1} parent=11 // pred_check
        %p604 = pneg %p515
      $region78: #{decoder_layer_forward_pallas.1} parent=11 // pred_check_branch
        %606 = sbr.rel (%p604) target = $region80
      $region79: #{decoder_layer_forward_pallas.1} parent=11 // pred_region
        _
      $region80: #{decoder_layer_forward_pallas.1} parent=11 // pred_fallthru
        _
    $region12: #{decoder_layer_forward_pallas.1} parent=5 // pred_fallthru
      _
    %p607 = scmp.lt.s32.totalorder %s28, 2
    // Predicated region
    $region81: #{decoder_layer_forward_pallas.1} parent=5 // pred_check
      %p608 = pneg %p607
    $region82: #{decoder_layer_forward_pallas.1} parent=5 // pred_check_branch
      %610 = sbr.rel (%p608) target = $region84
    $region83: #{decoder_layer_forward_pallas.1} parent=5 // pred_region
      // Predicated region
      $region85: #{decoder_layer_forward_pallas.1} parent=83 // pred_check
        %p611 = pneg %p48
      $region86: #{decoder_layer_forward_pallas.1} parent=83 // pred_check_branch
        %613 = sbr.rel (%p611) target = $region88
      $region87: #{decoder_layer_forward_pallas.1} parent=83 // pred_region
        %p614 = scmp.lt.s32.totalorder %s28, 1
        %s615 = scalar_select %p614, %s28, 1
        %s616 = smul.addr %s615, 8
        %s617 = scalar_lea.vmem %s0, %s616
      $region88: #{decoder_layer_forward_pallas.1} parent=83 // pred_fallthru
        _
      // Predicated region
      $region89: #{decoder_layer_forward_pallas.1} parent=83 // pred_check
        %p618 = pneg %p74
      $region90: #{decoder_layer_forward_pallas.1} parent=83 // pred_check_branch
        %620 = sbr.rel (%p618) target = $region92
      $region91: #{decoder_layer_forward_pallas.1} parent=83 // pred_region
        %p621 = scmp.lt.s32.totalorder %s28, 1
        %s622 = scalar_select %p621, %s28, 1
        %s623 = smul.addr %s622, 8
        %s624 = scalar_lea.vmem %s1, %s623
      $region92: #{decoder_layer_forward_pallas.1} parent=83 // pred_fallthru
        _
      // Predicated region
      $region93: #{decoder_layer_forward_pallas.1} parent=83 // pred_check
        %p625 = pneg %p100
      $region94: #{decoder_layer_forward_pallas.1} parent=83 // pred_check_branch
        %627 = sbr.rel (%p625) target = $region96
      $region95: #{decoder_layer_forward_pallas.1} parent=83 // pred_region
        %p628 = scmp.lt.s32.totalorder %s28, 1
        %s629 = scalar_select %p628, %s28, 1
        %s630 = smul.addr %s629, 8
        %s631 = scalar_lea.vmem %s2, %s630
      $region96: #{decoder_layer_forward_pallas.1} parent=83 // pred_fallthru
        _
      // Predicated region
      $region97: #{decoder_layer_forward_pallas.1} parent=83 // pred_check
        %p632 = pneg %p126
      $region98: #{decoder_layer_forward_pallas.1} parent=83 // pred_check_branch
        %634 = sbr.rel (%p632) target = $region100
      $region99: #{decoder_layer_forward_pallas.1} parent=83 // pred_region
        %p635 = scmp.lt.s32.totalorder %s28, 1
        %s636 = scalar_select %p635, %s28, 1
        %s637 = smul.addr %s636, 2
        %s638 = smul.addr %s637, 8
        %s639 = scalar_lea.vmem %s3, %s638
      $region100: #{decoder_layer_forward_pallas.1} parent=83 // pred_fallthru
        _
      // Predicated region
      $region101: #{decoder_layer_forward_pallas.1} parent=83 // pred_check
        %p640 = pneg %p152
      $region102: #{decoder_layer_forward_pallas.1} parent=83 // pred_check_branch
        %642 = sbr.rel (%p640) target = $region104
      $region103: #{decoder_layer_forward_pallas.1} parent=83 // pred_region
        %p643 = scmp.lt.s32.totalorder %s28, 1
        %s644 = scalar_select %p643, %s28, 1
        %s645 = smul.addr %s644, 2
        %s646 = smul.addr %s645, 8
        %s647 = scalar_lea.vmem %s4, %s646
      $region104: #{decoder_layer_forward_pallas.1} parent=83 // pred_fallthru
        _
    $region84: #{decoder_layer_forward_pallas.1} parent=5 // pred_fallthru
      _
    %p648 = scmp.le.s32.totalorder 1, %s28
    %p649 = scmp.lt.s32.totalorder %s28, 3
    %p650 = pnand %p648, %p649
    %p651 = pneg %p650
    // Predicated region
    $region105: #{decoder_layer_forward_pallas.1} parent=5 // pred_check
      _
    $region106: #{decoder_layer_forward_pallas.1} parent=5 // pred_check_branch
      %653 = sbr.rel (%p650) target = $region108
    $region107: #{decoder_layer_forward_pallas.1} parent=5 // pred_region
      %s654 = ssub.s32 %s28, 1
      %p655 = scmp.lt.s32.totalorder %s33, 1
      %s656 = scalar_select %p655, %s33, 1
      %s657 = smul.addr %s656, 8
      %s658 = scalar_lea.vmem %s0, %s657
      %p659 = pneg %p54
      %p660 = pneg %p51
      %p661 = scmp.lt.s32.totalorder %s33, 1
      %s662 = scalar_select %p661, %s33, 1
      %s663 = smul.addr %s662, 8
      %s664 = scalar_lea.vmem %s1, %s663
      %p665 = pneg %p80
      %p666 = pneg %p77
      %p667 = scmp.lt.s32.totalorder %s33, 1
      %s668 = scalar_select %p667, %s33, 1
      %s669 = smul.addr %s668, 8
      %s670 = scalar_lea.vmem %s2, %s669
      %p671 = pneg %p106
      %p672 = pneg %p103
      %p673 = scmp.lt.s32.totalorder %s33, 1
      %s674 = scalar_select %p673, %s33, 1
      %s675 = smul.addr %s674, 2
      %s676 = smul.addr %s675, 8
      %s677 = scalar_lea.vmem %s3, %s676
      %p678 = pneg %p132
      %p679 = pneg %p129
      %p680 = scmp.lt.s32.totalorder %s33, 1
      %s681 = scalar_select %p680, %s33, 1
      %s682 = smul.addr %s681, 2
      %s683 = smul.addr %s682, 8
      %s684 = scalar_lea.vmem %s4, %s683
      %p685 = pneg %p158
      %p686 = pneg %p155
      %p687 = pneg %p179
      %p688 = pneg %p176
      %p689 = pneg %p200
      %p690 = pneg %p197
      %p691 = pneg %p221
      %p692 = pneg %p218
      %p693 = pneg %p242
      %p694 = pneg %p239
      %p695 = pneg %p263
      %p696 = pneg %p260
      %p697 = pneg %p284
      %p698 = pneg %p281
      %p699 = pneg %p305
      %p700 = pneg %p302
      %p701 = pneg %p326
      %p702 = pneg %p323
      %p703 = pneg %p347
      %p704 = pneg %p344
      %p705 = pneg %p368
      %p706 = pneg %p365
      %p707 = pneg %p389
      %p708 = pneg %p386
      %p709 = pneg %p410
      %p710 = pneg %p407
      %p711 = pneg %p431
      %p712 = pneg %p428
      %p713 = pneg %p452
      %p714 = pneg %p449
      %p715 = pneg %p473
      %p716 = pneg %p470
      %p717 = pneg %p494
      %p718 = pneg %p491
      %p719 = pneg %p515
      %p720 = pneg %p512
      %p721 = pneg %p541
      %p722 = pneg %p538
      %p723 = scmp.lt.s32.totalorder %s33, 1
      %s724 = scalar_select %p723, %s33, 1
      %s725 = smul.addr %s724, 8
      %s726 = scalar_lea.vmem %s22, %s725
      %p727 = scmp.lt.s32.totalorder %s33, 1
      %s728 = scalar_select %p727, %s33, 1
      %s729 = smul.addr %s728, 8
      %s730 = scalar_lea.vmem %s0, %s729
      %p731 = scmp.lt.s32.totalorder %s33, 1
      %s732 = scalar_select %p731, %s33, 1
      %s733 = smul.addr %s732, 8
      %s734 = scalar_lea.vmem %s1, %s733
      %p735 = scmp.lt.s32.totalorder %s33, 1
      %s736 = scalar_select %p735, %s33, 1
      %s737 = smul.addr %s736, 8
      %s738 = scalar_lea.vmem %s2, %s737
      %p739 = scmp.lt.s32.totalorder %s33, 1
      %s740 = scalar_select %p739, %s33, 1
      %s741 = smul.addr %s740, 2
      %s742 = smul.addr %s741, 8
      %s743 = scalar_lea.vmem %s3, %s742
      %p744 = scmp.lt.s32.totalorder %s33, 1
      %s745 = scalar_select %p744, %s33, 1
      %s746 = smul.addr %s745, 2
      %s747 = smul.addr %s746, 8
      %s748 = scalar_lea.vmem %s4, %s747
      %p749 = scmp.lt.s32.totalorder %s33, 1
      %s750 = scalar_select %p749, %s33, 1
      %s751 = smul.addr %s750, 8
      %s752 = scalar_lea.vmem %s22, %s751
      %v754 = vld [vmem:[%s730] sm:$0xff]
      %v755 = vpack.c.bf16 %v754, %v754
      %v756 = vld [vmem:[%s5] sm:$0xff]
      %v757 = vld [vmem:[%s5 + $0x8] sm:$0xff]
      %v758 = vld [vmem:[%s5 + $0x10] sm:$0xff]
      %v759 = vld [vmem:[%s5 + $0x18] sm:$0xff]
      %v760 = vpack.c.bf16 %v757, %v756
      %v761 = vpack.c.bf16 %v759, %v758
      %v762 = vld [vmem:[%s6] sm:$0x1]
      %v764 = vlaneseq
      %v765 = vshrl.u32 %v764, 7
      %v766 = vsub.s32 0, %v765
      %v767 = vrot.slane %v762, %v766
      %vm769 = vcmask 261120
      %v771 = vsel %vm769, %v755, 0
      %773 = vmatprep.subr.bf16.mxu0 0
      %774 = vmatpush1.bf16.msra.mxu0 %v760
      %775 = vmatprep.subr.bf16.mxu0 0
      %776 = vmatpush1.bf16.msra.mxu0 %v761
      %777 = vmatprep.subr.bf16.mxu0 0
      %778 = vmatpush1.bf16.msra.mxu0 0
      %779 = vmatprep.subr.bf16.mxu0 0
      %780 = vmatpush1.bf16.msra.mxu0 0
      %781 = vmatprep.subr.bf16.mxu0 0
      %782 = vmatpush1.bf16.msra.mxu0 0
      %783 = vmatprep.subr.bf16.mxu0 0
      %784 = vmatpush1.bf16.msra.mxu0 0
      %785 = vmatprep.subr.bf16.mxu0 0
      %786 = vmatpush1.bf16.msra.mxu0 0
      %787 = vmatprep.subr.bf16.mxu0 0
      %788 = vmatpush1.bf16.msra.mxu0 0
      %789 = vmatprep.subr.bf16.mxu0 0
      %790 = vmatpush1.bf16.msra.mxu0 0
      %791 = vmatprep.subr.bf16.mxu0 0
      %792 = vmatpush1.bf16.msra.mxu0 0
      %793 = vmatprep.subr.bf16.mxu0 0
      %794 = vmatpush1.bf16.msra.mxu0 0
      %795 = vmatprep.subr.bf16.mxu0 0
      %796 = vmatpush1.bf16.msra.mxu0 0
      %797 = vmatprep.subr.bf16.mxu0 0
      %798 = vmatpush1.bf16.msra.mxu0 0
      %799 = vmatprep.subr.bf16.mxu0 0
      %800 = vmatpush1.bf16.msra.mxu0 0
      %801 = vmatprep.subr.bf16.mxu0 0
      %802 = vmatpush1.bf16.msra.mxu0 0
      %803 = vmatprep.subr.bf16.mxu0 0
      %804 = vmatpush1.bf16.msra.mxu0 0
      %805 = vmatprep.mubr.bf16.mxu0 0
      %806 = vmatmul.mubr.bf16.gmra.mrb[0].mxu0 %v771
      %v807 = vpop.f32.mrb[0].mxu0
      %v808 = vadd.f32 %v767, %v807
      %v809 = vpop.f32.mrb[0].mxu0
      %v810 = vpop.f32.mrb[0].mxu0
      %v811 = vpop.f32.mrb[0].mxu0
      %812 = vdwg.mxu0
      %v813 = vld [vmem:[%s734] sm:$0xff]
      %v814 = vpack.c.bf16 %v813, %v813
      %v815 = vld [vmem:[%s7] sm:$0xff]
      %v816 = vld [vmem:[%s7 + $0x8] sm:$0xff]
      %v817 = vld [vmem:[%s7 + $0x10] sm:$0xff]
      %v818 = vld [vmem:[%s7 + $0x18] sm:$0xff]
      %v819 = vpack.c.bf16 %v816, %v815
      %v820 = vpack.c.bf16 %v818, %v817
      %v821 = vld [vmem:[%s8] sm:$0x1]
      %v823 = vlaneseq
      %v824 = vshrl.u32 %v823, 7
      %v825 = vsub.s32 0, %v824
      %v826 = vrot.slane %v821, %v825
      %v829 = vsel %vm769, %v814, 0
      %831 = vmatprep.subr.bf16.mxu0 0
      %832 = vmatpush1.bf16.msra.mxu0 %v819
      %833 = vmatprep.subr.bf16.mxu0 0
      %834 = vmatpush1.bf16.msra.mxu0 %v820
      %835 = vmatprep.subr.bf16.mxu0 0
      %836 = vmatpush1.bf16.msra.mxu0 0
      %837 = vmatprep.subr.bf16.mxu0 0
      %838 = vmatpush1.bf16.msra.mxu0 0
      %839 = vmatprep.subr.bf16.mxu0 0
      %840 = vmatpush1.bf16.msra.mxu0 0
      %841 = vmatprep.subr.bf16.mxu0 0
      %842 = vmatpush1.bf16.msra.mxu0 0
      %843 = vmatprep.subr.bf16.mxu0 0
      %844 = vmatpush1.bf16.msra.mxu0 0
      %845 = vmatprep.subr.bf16.mxu0 0
      %846 = vmatpush1.bf16.msra.mxu0 0
      %847 = vmatprep.subr.bf16.mxu0 0
      %848 = vmatpush1.bf16.msra.mxu0 0
      %849 = vmatprep.subr.bf16.mxu0 0
      %850 = vmatpush1.bf16.msra.mxu0 0
      %851 = vmatprep.subr.bf16.mxu0 0
      %852 = vmatpush1.bf16.msra.mxu0 0
      %853 = vmatprep.subr.bf16.mxu0 0
      %854 = vmatpush1.bf16.msra.mxu0 0
      %855 = vmatprep.subr.bf16.mxu0 0
      %856 = vmatpush1.bf16.msra.mxu0 0
      %857 = vmatprep.subr.bf16.mxu0 0
      %858 = vmatpush1.bf16.msra.mxu0 0
      %859 = vmatprep.subr.bf16.mxu0 0
      %860 = vmatpush1.bf16.msra.mxu0 0
      %861 = vmatprep.subr.bf16.mxu0 0
      %862 = vmatpush1.bf16.msra.mxu0 0
      %863 = vmatprep.mubr.bf16.mxu0 0
      %864 = vmatmul.mubr.bf16.gmra.mrb[0].mxu0 %v829
      %v865 = vpop.f32.mrb[0].mxu0
      %v866 = vadd.f32 %v826, %v865
      %v867 = vpop.f32.mrb[0].mxu0
      %v868 = vpop.f32.mrb[0].mxu0
      %v869 = vpop.f32.mrb[0].mxu0
      %870 = vdwg.mxu0
      %v871 = vadd.f32 %v808, %v866
      %v872 = vpack.c.bf16 %v871, %v871
      %874 = vrot.lane.b32.xlu0 %v872, 96
      %v875 = vpop.permute.xlu0 %874
      %vm876 = vcmask 64512
      %v878 = vsel %vm876, %v872, 0
      %v881 = vsel %vm876, %v875, 0
      %883 = vmatprep.subr.bf16.mxu0 0
      %884 = vmatpush1.bf16.xpose.msra.mxu0 %v881
      %885 = vmatprep.subr.bf16.mxu0 0
      %886 = vmatpush1.bf16.xpose.msra.mxu0 0
      %887 = vmatprep.subr.bf16.mxu0 0
      %888 = vmatpush1.bf16.xpose.msra.mxu0 0
      %889 = vmatprep.subr.bf16.mxu0 0
      %890 = vmatpush1.bf16.xpose.msra.mxu0 0
      %891 = vmatprep.subr.bf16.mxu0 0
      %892 = vmatpush1.bf16.xpose.msra.mxu0 0
      %893 = vmatprep.subr.bf16.mxu0 0
      %894 = vmatpush1.bf16.xpose.msra.mxu0 0
      %895 = vmatprep.subr.bf16.mxu0 0
      %896 = vmatpush1.bf16.xpose.msra.mxu0 0
      %897 = vmatprep.subr.bf16.mxu0 0
      %898 = vmatpush1.bf16.xpose.msra.mxu0 0
      %899 = vmatprep.subr.bf16.mxu0 0
      %900 = vmatpush1.bf16.xpose.msra.mxu0 0
      %901 = vmatprep.subr.bf16.mxu0 0
      %902 = vmatpush1.bf16.xpose.msra.mxu0 0
      %903 = vmatprep.subr.bf16.mxu0 0
      %904 = vmatpush1.bf16.xpose.msra.mxu0 0
      %905 = vmatprep.subr.bf16.mxu0 0
      %906 = vmatpush1.bf16.xpose.msra.mxu0 0
      %907 = vmatprep.subr.bf16.mxu0 0
      %908 = vmatpush1.bf16.xpose.msra.mxu0 0
      %909 = vmatprep.subr.bf16.mxu0 0
      %910 = vmatpush1.bf16.xpose.msra.mxu0 0
      %911 = vmatprep.subr.bf16.mxu0 0
      %912 = vmatpush1.bf16.xpose.msra.mxu0 0
      %913 = vmatprep.subr.bf16.mxu0 0
      %914 = vmatpush1.bf16.xpose.msra.mxu0 0
      %915 = vmatprep.mubr.bf16.mxu0 0
      %916 = vmatmul.mubr.bf16.gmra.mrb[0].mxu0 %v878
      %v917 = vpop.f32.mrb[0].mxu0
      %v918 = vadd.f32 0.0, %v917
      %v919 = vpop.f32.mrb[0].mxu0
      %v920 = vpop.f32.mrb[0].mxu0
      %v921 = vpop.f32.mrb[0].mxu0
      %922 = vdwg.mxu0
      %v923 = vmul.f32 %v918, 0.35355338
      %v924 = vsel %vm876, %v923, -inf
      %925 = vmax.xlane.f32.xlu0 %v924
      %v926 = vpop.xlane.xlu0 %925
      %v927 = vsub.f32 %v923, %v926
      %v928 = vmul.f32 %v927, 1.442695
      %v929 = vpow.pop %v928
      %v930 = vsel %vm876, %v929, 0.0
      %931 = vadd.xlane.f32.xlu0 %v930
      %v932 = vpop.xlane.xlu0 %931
      %v933 = vrcp.pop %v932
      %v934 = vmul.f32 %v929, %v933
      %v935 = vpack.c.bf16 %v934, %v934
      %v936 = vpack.c.bf16 %v808, %v808
      %938 = vrot.lane.b32.xlu0 %v936, 64
      %v939 = vpop.permute.xlu0 %938
      %v941 = vsel %vm876, %v935, 0
      %vm943 = vcmask 1043456
      %v945 = vsel %vm943, %v939, 0
      %947 = vmatprep.subr.bf16.mxu0 0
      %948 = vmatpush1.bf16.msra.mxu0 %v945
      %949 = vmatprep.subr.bf16.mxu0 0
      %950 = vmatpush1.bf16.msra.mxu0 0
      %951 = vmatprep.subr.bf16.mxu0 0
      %952 = vmatpush1.bf16.msra.mxu0 0
      %953 = vmatprep.subr.bf16.mxu0 0
      %954 = vmatpush1.bf16.msra.mxu0 0
      %955 = vmatprep.subr.bf16.mxu0 0
      %956 = vmatpush1.bf16.msra.mxu0 0
      %957 = vmatprep.subr.bf16.mxu0 0
      %958 = vmatpush1.bf16.msra.mxu0 0
      %959 = vmatprep.subr.bf16.mxu0 0
      %960 = vmatpush1.bf16.msra.mxu0 0
      %961 = vmatprep.subr.bf16.mxu0 0
      %962 = vmatpush1.bf16.msra.mxu0 0
      %963 = vmatprep.subr.bf16.mxu0 0
      %964 = vmatpush1.bf16.msra.mxu0 0
      %965 = vmatprep.subr.bf16.mxu0 0
      %966 = vmatpush1.bf16.msra.mxu0 0
      %967 = vmatprep.subr.bf16.mxu0 0
      %968 = vmatpush1.bf16.msra.mxu0 0
      %969 = vmatprep.subr.bf16.mxu0 0
      %970 = vmatpush1.bf16.msra.mxu0 0
      %971 = vmatprep.subr.bf16.mxu0 0
      %972 = vmatpush1.bf16.msra.mxu0 0
      %973 = vmatprep.subr.bf16.mxu0 0
      %974 = vmatpush1.bf16.msra.mxu0 0
      %975 = vmatprep.subr.bf16.mxu0 0
      %976 = vmatpush1.bf16.msra.mxu0 0
      %977 = vmatprep.subr.bf16.mxu0 0
      %978 = vmatpush1.bf16.msra.mxu0 0
      %979 = vmatprep.mubr.bf16.mxu0 0
      %980 = vmatmul.mubr.bf16.gmra.mrb[0].mxu0 %v941
      %v981 = vpop.f32.mrb[0].mxu0
      %v982 = vadd.f32 0.0, %v981
      %v983 = vpop.f32.mrb[0].mxu0
      %v984 = vpop.f32.mrb[0].mxu0
      %v985 = vpop.f32.mrb[0].mxu0
      %986 = vdwg.mxu0
      %987 = vrot.lane.b32.xlu0 %v872, 120
      %v988 = vpop.permute.xlu0 %987
      %989 = vrot.lane.b32.xlu0 %v872, 88
      %v990 = vpop.permute.xlu0 %989
      %v992 = vsel %vm876, %v988, 0
      %v995 = vsel %vm876, %v990, 0
      %997 = vmatprep.subr.bf16.mxu0 0
      %998 = vmatpush1.bf16.xpose.msra.mxu0 %v995
      %999 = vmatprep.subr.bf16.mxu0 0
      %1000 = vmatpush1.bf16.xpose.msra.mxu0 0
      %1001 = vmatprep.subr.bf16.mxu0 0
      %1002 = vmatpush1.bf16.xpose.msra.mxu0 0
      %1003 = vmatprep.subr.bf16.mxu0 0
      %1004 = vmatpush1.bf16.xpose.msra.mxu0 0
      %1005 = vmatprep.subr.bf16.mxu0 0
      %1006 = vmatpush1.bf16.xpose.msra.mxu0 0
      %1007 = vmatprep.subr.bf16.mxu0 0
      %1008 = vmatpush1.bf16.xpose.msra.mxu0 0
      %1009 = vmatprep.subr.bf16.mxu0 0
      %1010 = vmatpush1.bf16.xpose.msra.mxu0 0
      %1011 = vmatprep.subr.bf16.mxu0 0
      %1012 = vmatpush1.bf16.xpose.msra.mxu0 0
      %1013 = vmatprep.subr.bf16.mxu0 0
      %1014 = vmatpush1.bf16.xpose.msra.mxu0 0
      %1015 = vmatprep.subr.bf16.mxu0 0
      %1016 = vmatpush1.bf16.xpose.msra.mxu0 0
      %1017 = vmatprep.subr.bf16.mxu0 0
      %1018 = vmatpush1.bf16.xpose.msra.mxu0 0
      %1019 = vmatprep.subr.bf16.mxu0 0
      %1020 = vmatpush1.bf16.xpose.msra.mxu0 0
      %1021 = vmatprep.subr.bf16.mxu0 0
      %1022 = vmatpush1.bf16.xpose.msra.mxu0 0
      %1023 = vmatprep.subr.bf16.mxu0 0
      %1024 = vmatpush1.bf16.xpose.msra.mxu0 0
      %1025 = vmatprep.subr.bf16.mxu0 0
      %1026 = vmatpush1.bf16.xpose.msra.mxu0 0
      %1027 = vmatprep.subr.bf16.mxu0 0
      %1028 = vmatpush1.bf16.xpose.msra.mxu0 0
      %1029 = vmatprep.mubr.bf16.mxu0 0
      %1030 = vmatmul.mubr.bf16.gmra.mrb[0].mxu0 %v992
      %v1031 = vpop.f32.mrb[0].mxu0
      %v1032 = vadd.f32 0.0, %v1031
      %v1033 = vpop.f32.mrb[0].mxu0
      %v1034 = vpop.f32.mrb[0].mxu0
      %v1035 = vpop.f32.mrb[0].mxu0
      %1036 = vdwg.mxu0
      %v1037 = vmul.f32 %v1032, 0.35355338
      %v1038 = vsel %vm876, %v1037, -inf
      %1039 = vmax.xlane.f32.xlu0 %v1038
      %v1040 = vpop.xlane.xlu0 %1039
      %v1041 = vsub.f32 %v1037, %v1040
      %v1042 = vmul.f32 %v1041, 1.442695
      %v1043 = vpow.pop %v1042
      %v1044 = vsel %vm876, %v1043, 0.0
      %1045 = vadd.xlane.f32.xlu0 %v1044
      %v1046 = vpop.xlane.xlu0 %1045
      %v1047 = vrcp.pop %v1046
      %v1048 = vmul.f32 %v1043, %v1047
      %v1049 = vpack.c.bf16 %v1048, %v1048
      %1050 = vrot.lane.b32.xlu0 %v936, 56
      %v1051 = vpop.permute.xlu0 %1050
      %v1053 = vsel %vm876, %v1049, 0
      %v1056 = vsel %vm943, %v1051, 0
      %1058 = vmatprep.subr.bf16.mxu0 0
      %1059 = vmatpush1.bf16.msra.mxu0 %v1056
      %1060 = vmatprep.subr.bf16.mxu0 0
      %1061 = vmatpush1.bf16.msra.mxu0 0
      %1062 = vmatprep.subr.bf16.mxu0 0
      %1063 = vmatpush1.bf16.msra.mxu0 0
      %1064 = vmatprep.subr.bf16.mxu0 0
      %1065 = vmatpush1.bf16.msra.mxu0 0
      %1066 = vmatprep.subr.bf16.mxu0 0
      %1067 = vmatpush1.bf16.msra.mxu0 0
      %1068 = vmatprep.subr.bf16.mxu0 0
      %1069 = vmatpush1.bf16.msra.mxu0 0
      %1070 = vmatprep.subr.bf16.mxu0 0
      %1071 = vmatpush1.bf16.msra.mxu0 0
      %1072 = vmatprep.subr.bf16.mxu0 0
      %1073 = vmatpush1.bf16.msra.mxu0 0
      %1074 = vmatprep.subr.bf16.mxu0 0
      %1075 = vmatpush1.bf16.msra.mxu0 0
      %1076 = vmatprep.subr.bf16.mxu0 0
      %1077 = vmatpush1.bf16.msra.mxu0 0
      %1078 = vmatprep.subr.bf16.mxu0 0
      %1079 = vmatpush1.bf16.msra.mxu0 0
      %1080 = vmatprep.subr.bf16.mxu0 0
      %1081 = vmatpush1.bf16.msra.mxu0 0
      %1082 = vmatprep.subr.bf16.mxu0 0
      %1083 = vmatpush1.bf16.msra.mxu0 0
      %1084 = vmatprep.subr.bf16.mxu0 0
      %1085 = vmatpush1.bf16.msra.mxu0 0
      %1086 = vmatprep.subr.bf16.mxu0 0
      %1087 = vmatpush1.bf16.msra.mxu0 0
      %1088 = vmatprep.subr.bf16.mxu0 0
      %1089 = vmatpush1.bf16.msra.mxu0 0
      %1090 = vmatprep.mubr.bf16.mxu0 0
      %1091 = vmatmul.mubr.bf16.gmra.mrb[0].mxu0 %v1053
      %v1092 = vpop.f32.mrb[0].mxu0
      %v1093 = vadd.f32 0.0, %v1092
      %v1094 = vpop.f32.mrb[0].mxu0
      %v1095 = vpop.f32.mrb[0].mxu0
      %v1096 = vpop.f32.mrb[0].mxu0
      %1097 = vdwg.mxu0
      %1098 = vrot.lane.b32.xlu0 %v872, 112
      %v1099 = vpop.permute.xlu0 %1098
      %1100 = vrot.lane.b32.xlu0 %v872, 80
      %v1101 = vpop.permute.xlu0 %1100
      %v1103 = vsel %vm876, %v1099, 0
      %v1106 = vsel %vm876, %v1101, 0
      %1108 = vmatprep.subr.bf16.mxu0 0
      %1109 = vmatpush1.bf16.xpose.msra.mxu0 %v1106
      %1110 = vmatprep.subr.bf16.mxu0 0
      %1111 = vmatpush1.bf16.xpose.msra.mxu0 0
      %1112 = vmatprep.subr.bf16.mxu0 0
      %1113 = vmatpush1.bf16.xpose.msra.mxu0 0
      %1114 = vmatprep.subr.bf16.mxu0 0
      %1115 = vmatpush1.bf16.xpose.msra.mxu0 0
      %1116 = vmatprep.subr.bf16.mxu0 0
      %1117 = vmatpush1.bf16.xpose.msra.mxu0 0
      %1118 = vmatprep.subr.bf16.mxu0 0
      %1119 = vmatpush1.bf16.xpose.msra.mxu0 0
      %1120 = vmatprep.subr.bf16.mxu0 0
      %1121 = vmatpush1.bf16.xpose.msra.mxu0 0
      %1122 = vmatprep.subr.bf16.mxu0 0
      %1123 = vmatpush1.bf16.xpose.msra.mxu0 0
      %1124 = vmatprep.subr.bf16.mxu0 0
      %1125 = vmatpush1.bf16.xpose.msra.mxu0 0
      %1126 = vmatprep.subr.bf16.mxu0 0
      %1127 = vmatpush1.bf16.xpose.msra.mxu0 0
      %1128 = vmatprep.subr.bf16.mxu0 0
      %1129 = vmatpush1.bf16.xpose.msra.mxu0 0
      %1130 = vmatprep.subr.bf16.mxu0 0
      %1131 = vmatpush1.bf16.xpose.msra.mxu0 0
      %1132 = vmatprep.subr.bf16.mxu0 0
      %1133 = vmatpush1.bf16.xpose.msra.mxu0 0
      %1134 = vmatprep.subr.bf16.mxu0 0
      %1135 = vmatpush1.bf16.xpose.msra.mxu0 0
      %1136 = vmatprep.subr.bf16.mxu0 0
      %1137 = vmatpush1.bf16.xpose.msra.mxu0 0
      %1138 = vmatprep.subr.bf16.mxu0 0
      %1139 = vmatpush1.bf16.xpose.msra.mxu0 0
      %1140 = vmatprep.mubr.bf16.mxu0 0
      %1141 = vmatmul.mubr.bf16.gmra.mrb[0].mxu0 %v1103
      %v1142 = vpop.f32.mrb[0].mxu0
      %v1143 = vadd.f32 0.0, %v1142
      %v1144 = vpop.f32.mrb[0].mxu0
      %v1145 = vpop.f32.mrb[0].mxu0
      %v1146 = vpop.f32.mrb[0].mxu0
      %1147 = vdwg.mxu0
      %v1148 = vmul.f32 %v1143, 0.35355338
      %v1149 = vsel %vm876, %v1148, -inf
      %1150 = vmax.xlane.f32.xlu0 %v1149
      %v1151 = vpop.xlane.xlu0 %1150
      %v1152 = vsub.f32 %v1148, %v1151
      %v1153 = vmul.f32 %v1152, 1.442695
      %v1154 = vpow.pop %v1153
      %v1155 = vsel %vm876, %v1154, 0.0
      %1156 = vadd.xlane.f32.xlu0 %v1155
      %v1157 = vpop.xlane.xlu0 %1156
      %v1158 = vrcp.pop %v1157
      %v1159 = vmul.f32 %v1154, %v1158
      %v1160 = vpack.c.bf16 %v1159, %v1159
      %1161 = vrot.lane.b32.xlu0 %v936, 48
      %v1162 = vpop.permute.xlu0 %1161
      %v1164 = vsel %vm876, %v1160, 0
      %v1167 = vsel %vm943, %v1162, 0
      %1169 = vmatprep.subr.bf16.mxu0 0
      %1170 = vmatpush1.bf16.msra.mxu0 %v1167
      %1171 = vmatprep.subr.bf16.mxu0 0
      %1172 = vmatpush1.bf16.msra.mxu0 0
      %1173 = vmatprep.subr.bf16.mxu0 0
      %1174 = vmatpush1.bf16.msra.mxu0 0
      %1175 = vmatprep.subr.bf16.mxu0 0
      %1176 = vmatpush1.bf16.msra.mxu0 0
      %1177 = vmatprep.subr.bf16.mxu0 0
      %1178 = vmatpush1.bf16.msra.mxu0 0
      %1179 = vmatprep.subr.bf16.mxu0 0
      %1180 = vmatpush1.bf16.msra.mxu0 0
      %1181 = vmatprep.subr.bf16.mxu0 0
      %1182 = vmatpush1.bf16.msra.mxu0 0
      %1183 = vmatprep.subr.bf16.mxu0 0
      %1184 = vmatpush1.bf16.msra.mxu0 0
      %1185 = vmatprep.subr.bf16.mxu0 0
      %1186 = vmatpush1.bf16.msra.mxu0 0
      %1187 = vmatprep.subr.bf16.mxu0 0
      %1188 = vmatpush1.bf16.msra.mxu0 0
      %1189 = vmatprep.subr.bf16.mxu0 0
      %1190 = vmatpush1.bf16.msra.mxu0 0
      %1191 = vmatprep.subr.bf16.mxu0 0
      %1192 = vmatpush1.bf16.msra.mxu0 0
      %1193 = vmatprep.subr.bf16.mxu0 0
      %1194 = vmatpush1.bf16.msra.mxu0 0
      %1195 = vmatprep.subr.bf16.mxu0 0
      %1196 = vmatpush1.bf16.msra.mxu0 0
      %1197 = vmatprep.subr.bf16.mxu0 0
      %1198 = vmatpush1.bf16.msra.mxu0 0
      %1199 = vmatprep.subr.bf16.mxu0 0
      %1200 = vmatpush1.bf16.msra.mxu0 0
      %1201 = vmatprep.mubr.bf16.mxu0 0
      %1202 = vmatmul.mubr.bf16.gmra.mrb[0].mxu0 %v1164
      %v1203 = vpop.f32.mrb[0].mxu0
      %v1204 = vadd.f32 0.0, %v1203
      %v1205 = vpop.f32.mrb[0].mxu0
      %v1206 = vpop.f32.mrb[0].mxu0
      %v1207 = vpop.f32.mrb[0].mxu0
      %1208 = vdwg.mxu0
      %1209 = vrot.lane.b32.xlu0 %v872, 104
      %v1210 = vpop.permute.xlu0 %1209
      %1211 = vrot.lane.b32.xlu0 %v872, 72
      %v1212 = vpop.permute.xlu0 %1211
      %v1214 = vsel %vm876, %v1210, 0
      %v1217 = vsel %vm876, %v1212, 0
      %1219 = vmatprep.subr.bf16.mxu0 0
      %1220 = vmatpush1.bf16.xpose.msra.mxu0 %v1217
      %1221 = vmatprep.subr.bf16.mxu0 0
      %1222 = vmatpush1.bf16.xpose.msra.mxu0 0
      %1223 = vmatprep.subr.bf16.mxu0 0
      %1224 = vmatpush1.bf16.xpose.msra.mxu0 0
      %1225 = vmatprep.subr.bf16.mxu0 0
      %1226 = vmatpush1.bf16.xpose.msra.mxu0 0
      %1227 = vmatprep.subr.bf16.mxu0 0
      %1228 = vmatpush1.bf16.xpose.msra.mxu0 0
      %1229 = vmatprep.subr.bf16.mxu0 0
      %1230 = vmatpush1.bf16.xpose.msra.mxu0 0
      %1231 = vmatprep.subr.bf16.mxu0 0
      %1232 = vmatpush1.bf16.xpose.msra.mxu0 0
      %1233 = vmatprep.subr.bf16.mxu0 0
      %1234 = vmatpush1.bf16.xpose.msra.mxu0 0
      %1235 = vmatprep.subr.bf16.mxu0 0
      %1236 = vmatpush1.bf16.xpose.msra.mxu0 0
      %1237 = vmatprep.subr.bf16.mxu0 0
      %1238 = vmatpush1.bf16.xpose.msra.mxu0 0
      %1239 = vmatprep.subr.bf16.mxu0 0
      %1240 = vmatpush1.bf16.xpose.msra.mxu0 0
      %1241 = vmatprep.subr.bf16.mxu0 0
      %1242 = vmatpush1.bf16.xpose.msra.mxu0 0
      %1243 = vmatprep.subr.bf16.mxu0 0
      %1244 = vmatpush1.bf16.xpose.msra.mxu0 0
      %1245 = vmatprep.subr.bf16.mxu0 0
      %1246 = vmatpush1.bf16.xpose.msra.mxu0 0
      %1247 = vmatprep.subr.bf16.mxu0 0
      %1248 = vmatpush1.bf16.xpose.msra.mxu0 0
      %1249 = vmatprep.subr.bf16.mxu0 0
      %1250 = vmatpush1.bf16.xpose.msra.mxu0 0
      %1251 = vmatprep.mubr.bf16.mxu0 0
      %1252 = vmatmul.mubr.bf16.gmra.mrb[0].mxu0 %v1214
      %v1253 = vpop.f32.mrb[0].mxu0
      %v1254 = vadd.f32 0.0, %v1253
      %v1255 = vpop.f32.mrb[0].mxu0
      %v1256 = vpop.f32.mrb[0].mxu0
      %v1257 = vpop.f32.mrb[0].mxu0
      %1258 = vdwg.mxu0
      %v1259 = vmul.f32 %v1254, 0.35355338
      %v1260 = vsel %vm876, %v1259, -inf
      %1261 = vmax.xlane.f32.xlu0 %v1260
      %v1262 = vpop.xlane.xlu0 %1261
      %v1263 = vsub.f32 %v1259, %v1262
      %v1264 = vmul.f32 %v1263, 1.442695
      %v1265 = vpow.pop %v1264
      %v1266 = vsel %vm876, %v1265, 0.0
      %1267 = vadd.xlane.f32.xlu0 %v1266
      %v1268 = vpop.xlane.xlu0 %1267
      %v1269 = vrcp.pop %v1268
      %v1270 = vmul.f32 %v1265, %v1269
      %v1271 = vpack.c.bf16 %v1270, %v1270
      %1272 = vrot.lane.b32.xlu0 %v936, 40
      %v1273 = vpop.permute.xlu0 %1272
      %v1275 = vsel %vm876, %v1271, 0
      %v1278 = vsel %vm943, %v1273, 0
      %1280 = vmatprep.subr.bf16.mxu0 0
      %1281 = vmatpush1.bf16.msra.mxu0 %v1278
      %1282 = vmatprep.subr.bf16.mxu0 0
      %1283 = vmatpush1.bf16.msra.mxu0 0
      %1284 = vmatprep.subr.bf16.mxu0 0
      %1285 = vmatpush1.bf16.msra.mxu0 0
      %1286 = vmatprep.subr.bf16.mxu0 0
      %1287 = vmatpush1.bf16.msra.mxu0 0
      %1288 = vmatprep.subr.bf16.mxu0 0
      %1289 = vmatpush1.bf16.msra.mxu0 0
      %1290 = vmatprep.subr.bf16.mxu0 0
      %1291 = vmatpush1.bf16.msra.mxu0 0
      %1292 = vmatprep.subr.bf16.mxu0 0
      %1293 = vmatpush1.bf16.msra.mxu0 0
      %1294 = vmatprep.subr.bf16.mxu0 0
      %1295 = vmatpush1.bf16.msra.mxu0 0
      %1296 = vmatprep.subr.bf16.mxu0 0
      %1297 = vmatpush1.bf16.msra.mxu0 0
      %1298 = vmatprep.subr.bf16.mxu0 0
      %1299 = vmatpush1.bf16.msra.mxu0 0
      %1300 = vmatprep.subr.bf16.mxu0 0
      %1301 = vmatpush1.bf16.msra.mxu0 0
      %1302 = vmatprep.subr.bf16.mxu0 0
      %1303 = vmatpush1.bf16.msra.mxu0 0
      %1304 = vmatprep.subr.bf16.mxu0 0
      %1305 = vmatpush1.bf16.msra.mxu0 0
      %1306 = vmatprep.subr.bf16.mxu0 0
      %1307 = vmatpush1.bf16.msra.mxu0 0
      %1308 = vmatprep.subr.bf16.mxu0 0
      %1309 = vmatpush1.bf16.msra.mxu0 0
      %1310 = vmatprep.subr.bf16.mxu0 0
      %1311 = vmatpush1.bf16.msra.mxu0 0
      %1312 = vmatprep.mubr.bf16.mxu0 0
      %1313 = vmatmul.mubr.bf16.gmra.mrb[0].mxu0 %v1275
      %v1314 = vpop.f32.mrb[0].mxu0
      %v1315 = vadd.f32 0.0, %v1314
      %v1316 = vpop.f32.mrb[0].mxu0
      %v1317 = vpop.f32.mrb[0].mxu0
      %v1318 = vpop.f32.mrb[0].mxu0
      %1319 = vdwg.mxu0
      %1321 = vrot.lane.b32.xlu0 %v1093, 8
      %v1322 = vpop.permute.xlu0 %1321
      %1325 = vrot.lane.b32.xlu0 %v1204, 16
      %v1326 = vpop.permute.xlu0 %1325
      %1329 = vrot.lane.b32.xlu0 %v1315, 24
      %v1330 = vpop.permute.xlu0 %1329
      %v1332 = vsel %vm876, %v982, %v1322
      %vm1333 = vcmask 130048
      %v1334 = vsel %vm1333, %v1332, %v1326
      %vm1335 = vcmask 195584
      %v1336 = vsel %vm1335, %v1334, %v1330
      %v1337 = vadd.f32 %v754, %v1336
      %v1338 = vld [vmem:[%s21] sm:$0x3]
      %v1339 = vsel %vm769, %v1337, 0.0
      %1340 = vadd.xlane.f32.xlu0 %v1339
      %v1341 = vpop.xlane.xlu0 %1340
      %v1342 = vrcp.pop 32.0
      %v1343 = vmul.f32 %v1341, %v1342
      %v1344 = vsub.f32 %v1337, %v1343
      %v1345 = vmul.f32 %v1344, %v1344
      %v1346 = vsel %vm769, %v1345, 0.0
      %1347 = vadd.xlane.f32.xlu0 %v1346
      %v1348 = vpop.xlane.xlu0 %1347
      %v1349 = vmul.f32 %v1348, %v1342
      %v1350 = vadd.f32 %v1349, 1e-05
      %v1351 = vrsqrt.pop %v1350
      %v1352 = vmul.f32 %v1344, %v1351
      %v1353 = vlaneseq
      %v1354 = vshrl.u32 %v1353, 7
      %v1355 = vsub.s32 0, %v1354
      %v1356 = vrot.slane %v1338, %v1355
      %v1357 = vmul.f32 %v1352, %v1356
      %v1358 = vlaneseq
      %v1359 = vshrl.u32 %v1358, 7
      %v1360 = vsub.s32 1, %v1359
      %v1361 = vrot.slane %v1338, %v1360
      %v1362 = vadd.f32 %v1357, %v1361
      %v1363 = vpack.c.bf16 %v1362, %v1362
      %v1364 = vld [vmem:[%s9] sm:$0xff]
      %v1365 = vld [vmem:[%s9 + $0x8] sm:$0xff]
      %v1366 = vld [vmem:[%s9 + $0x10] sm:$0xff]
      %v1367 = vld [vmem:[%s9 + $0x18] sm:$0xff]
      %v1368 = vpack.c.bf16 %v1365, %v1364
      %v1369 = vpack.c.bf16 %v1367, %v1366
      %v1370 = vld [vmem:[%s10] sm:$0x1]
      %v1372 = vlaneseq
      %v1373 = vshrl.u32 %v1372, 7
      %v1374 = vsub.s32 0, %v1373
      %v1375 = vrot.slane %v1370, %v1374
      %v1378 = vsel %vm769, %v1363, 0
      %1380 = vmatprep.subr.bf16.mxu0 0
      %1381 = vmatpush1.bf16.msra.mxu0 %v1368
      %1382 = vmatprep.subr.bf16.mxu0 0
      %1383 = vmatpush1.bf16.msra.mxu0 %v1369
      %1384 = vmatprep.subr.bf16.mxu0 0
      %1385 = vmatpush1.bf16.msra.mxu0 0
      %1386 = vmatprep.subr.bf16.mxu0 0
      %1387 = vmatpush1.bf16.msra.mxu0 0
      %1388 = vmatprep.subr.bf16.mxu0 0
      %1389 = vmatpush1.bf16.msra.mxu0 0
      %1390 = vmatprep.subr.bf16.mxu0 0
      %1391 = vmatpush1.bf16.msra.mxu0 0
      %1392 = vmatprep.subr.bf16.mxu0 0
      %1393 = vmatpush1.bf16.msra.mxu0 0
      %1394 = vmatprep.subr.bf16.mxu0 0
      %1395 = vmatpush1.bf16.msra.mxu0 0
      %1396 = vmatprep.subr.bf16.mxu0 0
      %1397 = vmatpush1.bf16.msra.mxu0 0
      %1398 = vmatprep.subr.bf16.mxu0 0
      %1399 = vmatpush1.bf16.msra.mxu0 0
      %1400 = vmatprep.subr.bf16.mxu0 0
      %1401 = vmatpush1.bf16.msra.mxu0 0
      %1402 = vmatprep.subr.bf16.mxu0 0
      %1403 = vmatpush1.bf16.msra.mxu0 0
      %1404 = vmatprep.subr.bf16.mxu0 0
      %1405 = vmatpush1.bf16.msra.mxu0 0
      %1406 = vmatprep.subr.bf16.mxu0 0
      %1407 = vmatpush1.bf16.msra.mxu0 0
      %1408 = vmatprep.subr.bf16.mxu0 0
      %1409 = vmatpush1.bf16.msra.mxu0 0
      %1410 = vmatprep.subr.bf16.mxu0 0
      %1411 = vmatpush1.bf16.msra.mxu0 0
      %1412 = vmatprep.mubr.bf16.mxu0 0
      %1413 = vmatmul.mubr.bf16.gmra.mrb[0].mxu0 %v1378
      %v1414 = vpop.f32.mrb[0].mxu0
      %v1415 = vadd.f32 %v1375, %v1414
      %v1416 = vpop.f32.mrb[0].mxu0
      %v1417 = vpop.f32.mrb[0].mxu0
      %v1418 = vpop.f32.mrb[0].mxu0
      %1419 = vdwg.mxu0
      %1421 = vrot.lane.b32.xlu0 %v866, 64
      %v1422 = vpop.permute.xlu0 %1421
      %v1424 = vadd.f32 %v1415, %v1422
      %v1425 = vld [vmem:[%s738] sm:$0xff]
      %v1426 = vpack.c.bf16 %v1425, %v1425
      %v1427 = vld [vmem:[%s11] sm:$0xff]
      %v1428 = vld [vmem:[%s11 + $0x8] sm:$0xff]
      %v1429 = vld [vmem:[%s11 + $0x10] sm:$0xff]
      %v1430 = vld [vmem:[%s11 + $0x18] sm:$0xff]
      %v1431 = vpack.c.bf16 %v1428, %v1427
      %v1432 = vpack.c.bf16 %v1430, %v1429
      %v1433 = vld [vmem:[%s12] sm:$0x1]
      %v1435 = vlaneseq
      %v1436 = vshrl.u32 %v1435, 7
      %v1437 = vsub.s32 0, %v1436
      %v1438 = vrot.slane %v1433, %v1437
      %v1441 = vsel %vm769, %v1426, 0
      %1443 = vmatprep.subr.bf16.mxu0 0
      %1444 = vmatpush1.bf16.msra.mxu0 %v1431
      %1445 = vmatprep.subr.bf16.mxu0 0
      %1446 = vmatpush1.bf16.msra.mxu0 %v1432
      %1447 = vmatprep.subr.bf16.mxu0 0
      %1448 = vmatpush1.bf16.msra.mxu0 0
      %1449 = vmatprep.subr.bf16.mxu0 0
      %1450 = vmatpush1.bf16.msra.mxu0 0
      %1451 = vmatprep.subr.bf16.mxu0 0
      %1452 = vmatpush1.bf16.msra.mxu0 0
      %1453 = vmatprep.subr.bf16.mxu0 0
      %1454 = vmatpush1.bf16.msra.mxu0 0
      %1455 = vmatprep.subr.bf16.mxu0 0
      %1456 = vmatpush1.bf16.msra.mxu0 0
      %1457 = vmatprep.subr.bf16.mxu0 0
      %1458 = vmatpush1.bf16.msra.mxu0 0
      %1459 = vmatprep.subr.bf16.mxu0 0
      %1460 = vmatpush1.bf16.msra.mxu0 0
      %1461 = vmatprep.subr.bf16.mxu0 0
      %1462 = vmatpush1.bf16.msra.mxu0 0
      %1463 = vmatprep.subr.bf16.mxu0 0
      %1464 = vmatpush1.bf16.msra.mxu0 0
      %1465 = vmatprep.subr.bf16.mxu0 0
      %1466 = vmatpush1.bf16.msra.mxu0 0
      %1467 = vmatprep.subr.bf16.mxu0 0
      %1468 = vmatpush1.bf16.msra.mxu0 0
      %1469 = vmatprep.subr.bf16.mxu0 0
      %1470 = vmatpush1.bf16.msra.mxu0 0
      %1471 = vmatprep.subr.bf16.mxu0 0
      %1472 = vmatpush1.bf16.msra.mxu0 0
      %1473 = vmatprep.subr.bf16.mxu0 0
      %1474 = vmatpush1.bf16.msra.mxu0 0
      %1475 = vmatprep.mubr.bf16.mxu0 0
      %1476 = vmatmul.mubr.bf16.gmra.mrb[0].mxu0 %v1441
      %v1477 = vpop.f32.mrb[0].mxu0
      %v1478 = vadd.f32 %v1438, %v1477
      %v1479 = vpop.f32.mrb[0].mxu0
      %v1480 = vpop.f32.mrb[0].mxu0
      %v1481 = vpop.f32.mrb[0].mxu0
      %1482 = vdwg.mxu0
      %v1483 = vld [vmem:[%s743] sm:$0xff]
      %v1484 = vld [vmem:[%s743 + $0x8] sm:$0xff]
      %v1485 = vpack.c.bf16 %v1484, %v1483
      %v1486 = vld [vmem:[%s13] sm:$0xff]
      %v1487 = vld [vmem:[%s13 + $0x8] sm:$0xff]
      %v1488 = vld [vmem:[%s13 + $0x10] sm:$0xff]
      %v1489 = vld [vmem:[%s13 + $0x18] sm:$0xff]
      %v1490 = vpack.c.bf16 %v1487, %v1486
      %v1491 = vpack.c.bf16 %v1489, %v1488
      %v1492 = vld [vmem:[%s14] sm:$0x1]
      %v1494 = vlaneseq
      %v1495 = vshrl.u32 %v1494, 7
      %v1496 = vsub.s32 0, %v1495
      %v1497 = vrot.slane %v1492, %v1496
      %v1500 = vsel %vm769, %v1485, 0
      %1502 = vmatprep.subr.bf16.mxu0 0
      %1503 = vmatpush1.bf16.msra.mxu0 %v1490
      %1504 = vmatprep.subr.bf16.mxu0 0
      %1505 = vmatpush1.bf16.msra.mxu0 %v1491
      %1506 = vmatprep.subr.bf16.mxu0 0
      %1507 = vmatpush1.bf16.msra.mxu0 0
      %1508 = vmatprep.subr.bf16.mxu0 0
      %1509 = vmatpush1.bf16.msra.mxu0 0
      %1510 = vmatprep.subr.bf16.mxu0 0
      %1511 = vmatpush1.bf16.msra.mxu0 0
      %1512 = vmatprep.subr.bf16.mxu0 0
      %1513 = vmatpush1.bf16.msra.mxu0 0
      %1514 = vmatprep.subr.bf16.mxu0 0
      %1515 = vmatpush1.bf16.msra.mxu0 0
      %1516 = vmatprep.subr.bf16.mxu0 0
      %1517 = vmatpush1.bf16.msra.mxu0 0
      %1518 = vmatprep.subr.bf16.mxu0 0
      %1519 = vmatpush1.bf16.msra.mxu0 0
      %1520 = vmatprep.subr.bf16.mxu0 0
      %1521 = vmatpush1.bf16.msra.mxu0 0
      %1522 = vmatprep.subr.bf16.mxu0 0
      %1523 = vmatpush1.bf16.msra.mxu0 0
      %1524 = vmatprep.subr.bf16.mxu0 0
      %1525 = vmatpush1.bf16.msra.mxu0 0
      %1526 = vmatprep.subr.bf16.mxu0 0
      %1527 = vmatpush1.bf16.msra.mxu0 0
      %1528 = vmatprep.subr.bf16.mxu0 0
      %1529 = vmatpush1.bf16.msra.mxu0 0
      %1530 = vmatprep.subr.bf16.mxu0 0
      %1531 = vmatpush1.bf16.msra.mxu0 0
      %1532 = vmatprep.subr.bf16.mxu0 0
      %1533 = vmatpush1.bf16.msra.mxu0 0
      %1534 = vmatprep.mubr.bf16.mxu0 0
      %1535 = vmatmul.mubr.bf16.gmra.mrb[0].mxu0 %v1500
      %v1536 = vpop.f32.mrb[0].mxu0
      %v1537 = vadd.f32 %v1497, %v1536
      %v1538 = vpop.f32.mrb[0].mxu0
      %v1539 = vpop.f32.mrb[0].mxu0
      %v1540 = vadd.f32 %v1497, %v1539
      %v1541 = vpop.f32.mrb[0].mxu0
      %1542 = vdwg.mxu0
      %v1543 = vld [vmem:[%s748] sm:$0xff]
      %v1544 = vld [vmem:[%s748 + $0x8] sm:$0xff]
      %v1545 = vpack.c.bf16 %v1544, %v1543
      %v1546 = vld [vmem:[%s15] sm:$0xff]
      %v1547 = vld [vmem:[%s15 + $0x8] sm:$0xff]
      %v1548 = vld [vmem:[%s15 + $0x10] sm:$0xff]
      %v1549 = vld [vmem:[%s15 + $0x18] sm:$0xff]
      %v1550 = vpack.c.bf16 %v1547, %v1546
      %v1551 = vpack.c.bf16 %v1549, %v1548
      %v1552 = vld [vmem:[%s16] sm:$0x1]
      %v1554 = vlaneseq
      %v1555 = vshrl.u32 %v1554, 7
      %v1556 = vsub.s32 0, %v1555
      %v1557 = vrot.slane %v1552, %v1556
      %v1560 = vsel %vm769, %v1545, 0
      %1562 = vmatprep.subr.bf16.mxu0 0
      %1563 = vmatpush1.bf16.msra.mxu0 %v1550
      %1564 = vmatprep.subr.bf16.mxu0 0
      %1565 = vmatpush1.bf16.msra.mxu0 %v1551
      %1566 = vmatprep.subr.bf16.mxu0 0
      %1567 = vmatpush1.bf16.msra.mxu0 0
      %1568 = vmatprep.subr.bf16.mxu0 0
      %1569 = vmatpush1.bf16.msra.mxu0 0
      %1570 = vmatprep.subr.bf16.mxu0 0
      %1571 = vmatpush1.bf16.msra.mxu0 0
      %1572 = vmatprep.subr.bf16.mxu0 0
      %1573 = vmatpush1.bf16.msra.mxu0 0
      %1574 = vmatprep.subr.bf16.mxu0 0
      %1575 = vmatpush1.bf16.msra.mxu0 0
      %1576 = vmatprep.subr.bf16.mxu0 0
      %1577 = vmatpush1.bf16.msra.mxu0 0
      %1578 = vmatprep.subr.bf16.mxu0 0
      %1579 = vmatpush1.bf16.msra.mxu0 0
      %1580 = vmatprep.subr.bf16.mxu0 0
      %1581 = vmatpush1.bf16.msra.mxu0 0
      %1582 = vmatprep.subr.bf16.mxu0 0
      %1583 = vmatpush1.bf16.msra.mxu0 0
      %1584 = vmatprep.subr.bf16.mxu0 0
      %1585 = vmatpush1.bf16.msra.mxu0 0
      %1586 = vmatprep.subr.bf16.mxu0 0
      %1587 = vmatpush1.bf16.msra.mxu0 0
      %1588 = vmatprep.subr.bf16.mxu0 0
      %1589 = vmatpush1.bf16.msra.mxu0 0
      %1590 = vmatprep.subr.bf16.mxu0 0
      %1591 = vmatpush1.bf16.msra.mxu0 0
      %1592 = vmatprep.subr.bf16.mxu0 0
      %1593 = vmatpush1.bf16.msra.mxu0 0
      %1594 = vmatprep.mubr.bf16.mxu0 0
      %1595 = vmatmul.mubr.bf16.gmra.mrb[0].mxu0 %v1560
      %v1596 = vpop.f32.mrb[0].mxu0
      %v1597 = vadd.f32 %v1557, %v1596
      %v1598 = vpop.f32.mrb[0].mxu0
      %v1599 = vpop.f32.mrb[0].mxu0
      %v1600 = vadd.f32 %v1557, %v1599
      %v1601 = vpop.f32.mrb[0].mxu0
      %1602 = vdwg.mxu0
      %v1603 = vadd.f32 %v1537, %v1597
      %v1604 = vadd.f32 %v1540, %v1600
      %v1605 = vpack.c.bf16 %v1424, %v1424
      %v1606 = vpack.c.bf16 %v1604, %v1603
      %v1607 = vpack.c.bf16 %v1478, %v1478
      %v1608 = vpack.c.bf16 %v1600, %v1597
      %v1610 = vsel %vm876, %v1607, 0
      %v1613 = vsel %vm876, %v1608, 0
      %1615 = vmatprep.subr.bf16.mxu0 0
      %1616 = vmatpush1.bf16.xpose.msra.mxu0 %v1613
      %1617 = vmatprep.subr.bf16.mxu0 0
      %1618 = vmatpush1.bf16.xpose.msra.mxu0 0
      %1619 = vmatprep.subr.bf16.mxu0 0
      %1620 = vmatpush1.bf16.xpose.msra.mxu0 0
      %1621 = vmatprep.subr.bf16.mxu0 0
      %1622 = vmatpush1.bf16.xpose.msra.mxu0 0
      %1623 = vmatprep.subr.bf16.mxu0 0
      %1624 = vmatpush1.bf16.xpose.msra.mxu0 0
      %1625 = vmatprep.subr.bf16.mxu0 0
      %1626 = vmatpush1.bf16.xpose.msra.mxu0 0
      %1627 = vmatprep.subr.bf16.mxu0 0
      %1628 = vmatpush1.bf16.xpose.msra.mxu0 0
      %1629 = vmatprep.subr.bf16.mxu0 0
      %1630 = vmatpush1.bf16.xpose.msra.mxu0 0
      %1631 = vmatprep.subr.bf16.mxu0 0
      %1632 = vmatpush1.bf16.xpose.msra.mxu0 0
      %1633 = vmatprep.subr.bf16.mxu0 0
      %1634 = vmatpush1.bf16.xpose.msra.mxu0 0
      %1635 = vmatprep.subr.bf16.mxu0 0
      %1636 = vmatpush1.bf16.xpose.msra.mxu0 0
      %1637 = vmatprep.subr.bf16.mxu0 0
      %1638 = vmatpush1.bf16.xpose.msra.mxu0 0
      %1639 = vmatprep.subr.bf16.mxu0 0
      %1640 = vmatpush1.bf16.xpose.msra.mxu0 0
      %1641 = vmatprep.subr.bf16.mxu0 0
      %1642 = vmatpush1.bf16.xpose.msra.mxu0 0
      %1643 = vmatprep.subr.bf16.mxu0 0
      %1644 = vmatpush1.bf16.xpose.msra.mxu0 0
      %1645 = vmatprep.subr.bf16.mxu0 0
      %1646 = vmatpush1.bf16.xpose.msra.mxu0 0
      %1647 = vmatprep.mubr.bf16.mxu0 0
      %1648 = vmatmul.mubr.bf16.gmra.mrb[0].mxu0 %v1610
      %v1649 = vpop.f32.mrb[0].mxu0
      %v1650 = vadd.f32 0.0, %v1649
      %v1651 = vpop.f32.mrb[0].mxu0
      %v1652 = vpop.f32.mrb[0].mxu0
      %v1653 = vpop.f32.mrb[0].mxu0
      %1654 = vdwg.mxu0
      %v1656 = vsel %vm876, %v1605, 0
      %v1659 = vsel %vm876, %v1606, 0
      %1661 = vmatprep.subr.bf16.mxu0 0
      %1662 = vmatpush1.bf16.xpose.msra.mxu0 %v1659
      %1663 = vmatprep.subr.bf16.mxu0 0
      %1664 = vmatpush1.bf16.xpose.msra.mxu0 0
      %1665 = vmatprep.subr.bf16.mxu0 0
      %1666 = vmatpush1.bf16.xpose.msra.mxu0 0
      %1667 = vmatprep.subr.bf16.mxu0 0
      %1668 = vmatpush1.bf16.xpose.msra.mxu0 0
      %1669 = vmatprep.subr.bf16.mxu0 0
      %1670 = vmatpush1.bf16.xpose.msra.mxu0 0
      %1671 = vmatprep.subr.bf16.mxu0 0
      %1672 = vmatpush1.bf16.xpose.msra.mxu0 0
      %1673 = vmatprep.subr.bf16.mxu0 0
      %1674 = vmatpush1.bf16.xpose.msra.mxu0 0
      %1675 = vmatprep.subr.bf16.mxu0 0
      %1676 = vmatpush1.bf16.xpose.msra.mxu0 0
      %1677 = vmatprep.subr.bf16.mxu0 0
      %1678 = vmatpush1.bf16.xpose.msra.mxu0 0
      %1679 = vmatprep.subr.bf16.mxu0 0
      %1680 = vmatpush1.bf16.xpose.msra.mxu0 0
      %1681 = vmatprep.subr.bf16.mxu0 0
      %1682 = vmatpush1.bf16.xpose.msra.mxu0 0
      %1683 = vmatprep.subr.bf16.mxu0 0
      %1684 = vmatpush1.bf16.xpose.msra.mxu0 0
      %1685 = vmatprep.subr.bf16.mxu0 0
      %1686 = vmatpush1.bf16.xpose.msra.mxu0 0
      %1687 = vmatprep.subr.bf16.mxu0 0
      %1688 = vmatpush1.bf16.xpose.msra.mxu0 0
      %1689 = vmatprep.subr.bf16.mxu0 0
      %1690 = vmatpush1.bf16.xpose.msra.mxu0 0
      %1691 = vmatprep.subr.bf16.mxu0 0
      %1692 = vmatpush1.bf16.xpose.msra.mxu0 0
      %1693 = vmatprep.mubr.bf16.mxu0 0
      %1694 = vmatmul.mubr.bf16.gmra.mrb[0].mxu0 %v1656
      %v1695 = vpop.f32.mrb[0].mxu0
      %v1696 = vadd.f32 %v1650, %v1695
      %v1697 = vpop.f32.mrb[0].mxu0
      %v1698 = vpop.f32.mrb[0].mxu0
      %v1699 = vpop.f32.mrb[0].mxu0
      %1700 = vdwg.mxu0
      %v1701 = vmul.f32 %v1696, 0.25
      %v1702 = vsel %vm1333, %v1701, -inf
      %1703 = vmax.xlane.f32.xlu0 %v1702
      %v1704 = vpop.xlane.xlu0 %1703
      %v1705 = vsub.f32 %v1701, %v1704
      %v1706 = vmul.f32 %v1705, 1.442695
      %v1707 = vpow.pop %v1706
      %v1708 = vsel %vm1333, %v1707, 0.0
      %1709 = vadd.xlane.f32.xlu0 %v1708
      %v1710 = vpop.xlane.xlu0 %1709
      %v1711 = vrcp.pop %v1710
      %v1712 = vmul.f32 %v1707, %v1711
      %v1713 = vpack.c.bf16 %v1712, %v1712
      %v1714 = vpack.c.bf16 %v1540, %v1537
      %1716 = vrot.lane.b32.xlu0 %v1714, 96
      %v1717 = vpop.permute.xlu0 %1716
      %v1720 = vsel %vm1333, %v1713, 0
      %1722 = vmatprep.subr.bf16.mxu0 0
      %1723 = vmatpush1.bf16.msra.mxu0 %v1717
      %1724 = vmatprep.subr.bf16.mxu0 0
      %1725 = vmatpush1.bf16.msra.mxu0 0
      %1726 = vmatprep.subr.bf16.mxu0 0
      %1727 = vmatpush1.bf16.msra.mxu0 0
      %1728 = vmatprep.subr.bf16.mxu0 0
      %1729 = vmatpush1.bf16.msra.mxu0 0
      %1730 = vmatprep.subr.bf16.mxu0 0
      %1731 = vmatpush1.bf16.msra.mxu0 0
      %1732 = vmatprep.subr.bf16.mxu0 0
      %1733 = vmatpush1.bf16.msra.mxu0 0
      %1734 = vmatprep.subr.bf16.mxu0 0
      %1735 = vmatpush1.bf16.msra.mxu0 0
      %1736 = vmatprep.subr.bf16.mxu0 0
      %1737 = vmatpush1.bf16.msra.mxu0 0
      %1738 = vmatprep.subr.bf16.mxu0 0
      %1739 = vmatpush1.bf16.msra.mxu0 0
      %1740 = vmatprep.subr.bf16.mxu0 0
      %1741 = vmatpush1.bf16.msra.mxu0 0
      %1742 = vmatprep.subr.bf16.mxu0 0
      %1743 = vmatpush1.bf16.msra.mxu0 0
      %1744 = vmatprep.subr.bf16.mxu0 0
      %1745 = vmatpush1.bf16.msra.mxu0 0
      %1746 = vmatprep.subr.bf16.mxu0 0
      %1747 = vmatpush1.bf16.msra.mxu0 0
      %1748 = vmatprep.subr.bf16.mxu0 0
      %1749 = vmatpush1.bf16.msra.mxu0 0
      %1750 = vmatprep.subr.bf16.mxu0 0
      %1751 = vmatpush1.bf16.msra.mxu0 0
      %1752 = vmatprep.subr.bf16.mxu0 0
      %1753 = vmatpush1.bf16.msra.mxu0 0
      %1754 = vmatprep.mubr.bf16.mxu0 0
      %1755 = vmatmul.mubr.bf16.gmra.mrb[0].mxu0 %v1720
      %v1756 = vpop.f32.mrb[0].mxu0
      %v1757 = vadd.f32 0.0, %v1756
      %v1758 = vpop.f32.mrb[0].mxu0
      %v1759 = vpop.f32.mrb[0].mxu0
      %v1760 = vpop.f32.mrb[0].mxu0
      %1761 = vdwg.mxu0
      %1763 = vrot.lane.b32.xlu0 %v1607, 120
      %v1764 = vpop.permute.xlu0 %1763
      %1766 = vrot.lane.b32.xlu0 %v1608, 120
      %v1767 = vpop.permute.xlu0 %1766
      %v1769 = vsel %vm876, %v1764, 0
      %v1772 = vsel %vm876, %v1767, 0
      %1774 = vmatprep.subr.bf16.mxu0 0
      %1775 = vmatpush1.bf16.xpose.msra.mxu0 %v1772
      %1776 = vmatprep.subr.bf16.mxu0 0
      %1777 = vmatpush1.bf16.xpose.msra.mxu0 0
      %1778 = vmatprep.subr.bf16.mxu0 0
      %1779 = vmatpush1.bf16.xpose.msra.mxu0 0
      %1780 = vmatprep.subr.bf16.mxu0 0
      %1781 = vmatpush1.bf16.xpose.msra.mxu0 0
      %1782 = vmatprep.subr.bf16.mxu0 0
      %1783 = vmatpush1.bf16.xpose.msra.mxu0 0
      %1784 = vmatprep.subr.bf16.mxu0 0
      %1785 = vmatpush1.bf16.xpose.msra.mxu0 0
      %1786 = vmatprep.subr.bf16.mxu0 0
      %1787 = vmatpush1.bf16.xpose.msra.mxu0 0
      %1788 = vmatprep.subr.bf16.mxu0 0
      %1789 = vmatpush1.bf16.xpose.msra.mxu0 0
      %1790 = vmatprep.subr.bf16.mxu0 0
      %1791 = vmatpush1.bf16.xpose.msra.mxu0 0
      %1792 = vmatprep.subr.bf16.mxu0 0
      %1793 = vmatpush1.bf16.xpose.msra.mxu0 0
      %1794 = vmatprep.subr.bf16.mxu0 0
      %1795 = vmatpush1.bf16.xpose.msra.mxu0 0
      %1796 = vmatprep.subr.bf16.mxu0 0
      %1797 = vmatpush1.bf16.xpose.msra.mxu0 0
      %1798 = vmatprep.subr.bf16.mxu0 0
      %1799 = vmatpush1.bf16.xpose.msra.mxu0 0
      %1800 = vmatprep.subr.bf16.mxu0 0
      %1801 = vmatpush1.bf16.xpose.msra.mxu0 0
      %1802 = vmatprep.subr.bf16.mxu0 0
      %1803 = vmatpush1.bf16.xpose.msra.mxu0 0
      %1804 = vmatprep.subr.bf16.mxu0 0
      %1805 = vmatpush1.bf16.xpose.msra.mxu0 0
      %1806 = vmatprep.mubr.bf16.mxu0 0
      %1807 = vmatmul.mubr.bf16.gmra.mrb[0].mxu0 %v1769
      %v1808 = vpop.f32.mrb[0].mxu0
      %v1809 = vadd.f32 0.0, %v1808
      %v1810 = vpop.f32.mrb[0].mxu0
      %v1811 = vpop.f32.mrb[0].mxu0
      %v1812 = vpop.f32.mrb[0].mxu0
      %1813 = vdwg.mxu0
      %1815 = vrot.lane.b32.xlu0 %v1605, 120
      %v1816 = vpop.permute.xlu0 %1815
      %1818 = vrot.lane.b32.xlu0 %v1606, 120
      %v1819 = vpop.permute.xlu0 %1818
      %v1821 = vsel %vm876, %v1816, 0
      %v1824 = vsel %vm876, %v1819, 0
      %1826 = vmatprep.subr.bf16.mxu0 0
      %1827 = vmatpush1.bf16.xpose.msra.mxu0 %v1824
      %1828 = vmatprep.subr.bf16.mxu0 0
      %1829 = vmatpush1.bf16.xpose.msra.mxu0 0
      %1830 = vmatprep.subr.bf16.mxu0 0
      %1831 = vmatpush1.bf16.xpose.msra.mxu0 0
      %1832 = vmatprep.subr.bf16.mxu0 0
      %1833 = vmatpush1.bf16.xpose.msra.mxu0 0
      %1834 = vmatprep.subr.bf16.mxu0 0
      %1835 = vmatpush1.bf16.xpose.msra.mxu0 0
      %1836 = vmatprep.subr.bf16.mxu0 0
      %1837 = vmatpush1.bf16.xpose.msra.mxu0 0
      %1838 = vmatprep.subr.bf16.mxu0 0
      %1839 = vmatpush1.bf16.xpose.msra.mxu0 0
      %1840 = vmatprep.subr.bf16.mxu0 0
      %1841 = vmatpush1.bf16.xpose.msra.mxu0 0
      %1842 = vmatprep.subr.bf16.mxu0 0
      %1843 = vmatpush1.bf16.xpose.msra.mxu0 0
      %1844 = vmatprep.subr.bf16.mxu0 0
      %1845 = vmatpush1.bf16.xpose.msra.mxu0 0
      %1846 = vmatprep.subr.bf16.mxu0 0
      %1847 = vmatpush1.bf16.xpose.msra.mxu0 0
      %1848 = vmatprep.subr.bf16.mxu0 0
      %1849 = vmatpush1.bf16.xpose.msra.mxu0 0
      %1850 = vmatprep.subr.bf16.mxu0 0
      %1851 = vmatpush1.bf16.xpose.msra.mxu0 0
      %1852 = vmatprep.subr.bf16.mxu0 0
      %1853 = vmatpush1.bf16.xpose.msra.mxu0 0
      %1854 = vmatprep.subr.bf16.mxu0 0
      %1855 = vmatpush1.bf16.xpose.msra.mxu0 0
      %1856 = vmatprep.subr.bf16.mxu0 0
      %1857 = vmatpush1.bf16.xpose.msra.mxu0 0
      %1858 = vmatprep.mubr.bf16.mxu0 0
      %1859 = vmatmul.mubr.bf16.gmra.mrb[0].mxu0 %v1821
      %v1860 = vpop.f32.mrb[0].mxu0
      %v1861 = vadd.f32 %v1809, %v1860
      %v1862 = vpop.f32.mrb[0].mxu0
      %v1863 = vpop.f32.mrb[0].mxu0
      %v1864 = vpop.f32.mrb[0].mxu0
      %1865 = vdwg.mxu0
      %v1866 = vmul.f32 %v1861, 0.25
      %v1867 = vsel %vm1333, %v1866, -inf
      %1868 = vmax.xlane.f32.xlu0 %v1867
      %v1869 = vpop.xlane.xlu0 %1868
      %v1870 = vsub.f32 %v1866, %v1869
      %v1871 = vmul.f32 %v1870, 1.442695
      %v1872 = vpow.pop %v1871
      %v1873 = vsel %vm1333, %v1872, 0.0
      %1874 = vadd.xlane.f32.xlu0 %v1873
      %v1875 = vpop.xlane.xlu0 %1874
      %v1876 = vrcp.pop %v1875
      %v1877 = vmul.f32 %v1872, %v1876
      %v1878 = vpack.c.bf16 %v1877, %v1877
      %1879 = vrot.lane.b32.xlu0 %v1714, 88
      %v1880 = vpop.permute.xlu0 %1879
      %v1883 = vsel %vm1333, %v1878, 0
      %1885 = vmatprep.subr.bf16.mxu0 0
      %1886 = vmatpush1.bf16.msra.mxu0 %v1880
      %1887 = vmatprep.subr.bf16.mxu0 0
      %1888 = vmatpush1.bf16.msra.mxu0 0
      %1889 = vmatprep.subr.bf16.mxu0 0
      %1890 = vmatpush1.bf16.msra.mxu0 0
      %1891 = vmatprep.subr.bf16.mxu0 0
      %1892 = vmatpush1.bf16.msra.mxu0 0
      %1893 = vmatprep.subr.bf16.mxu0 0
      %1894 = vmatpush1.bf16.msra.mxu0 0
      %1895 = vmatprep.subr.bf16.mxu0 0
      %1896 = vmatpush1.bf16.msra.mxu0 0
      %1897 = vmatprep.subr.bf16.mxu0 0
      %1898 = vmatpush1.bf16.msra.mxu0 0
      %1899 = vmatprep.subr.bf16.mxu0 0
      %1900 = vmatpush1.bf16.msra.mxu0 0
      %1901 = vmatprep.subr.bf16.mxu0 0
      %1902 = vmatpush1.bf16.msra.mxu0 0
      %1903 = vmatprep.subr.bf16.mxu0 0
      %1904 = vmatpush1.bf16.msra.mxu0 0
      %1905 = vmatprep.subr.bf16.mxu0 0
      %1906 = vmatpush1.bf16.msra.mxu0 0
      %1907 = vmatprep.subr.bf16.mxu0 0
      %1908 = vmatpush1.bf16.msra.mxu0 0
      %1909 = vmatprep.subr.bf16.mxu0 0
      %1910 = vmatpush1.bf16.msra.mxu0 0
      %1911 = vmatprep.subr.bf16.mxu0 0
      %1912 = vmatpush1.bf16.msra.mxu0 0
      %1913 = vmatprep.subr.bf16.mxu0 0
      %1914 = vmatpush1.bf16.msra.mxu0 0
      %1915 = vmatprep.subr.bf16.mxu0 0
      %1916 = vmatpush1.bf16.msra.mxu0 0
      %1917 = vmatprep.mubr.bf16.mxu0 0
      %1918 = vmatmul.mubr.bf16.gmra.mrb[0].mxu0 %v1883
      %v1919 = vpop.f32.mrb[0].mxu0
      %v1920 = vadd.f32 0.0, %v1919
      %v1921 = vpop.f32.mrb[0].mxu0
      %v1922 = vpop.f32.mrb[0].mxu0
      %v1923 = vpop.f32.mrb[0].mxu0
      %1924 = vdwg.mxu0
      %1925 = vrot.lane.b32.xlu0 %v1607, 112
      %v1926 = vpop.permute.xlu0 %1925
      %1927 = vrot.lane.b32.xlu0 %v1608, 112
      %v1928 = vpop.permute.xlu0 %1927
      %v1930 = vsel %vm876, %v1926, 0
      %v1933 = vsel %vm876, %v1928, 0
      %1935 = vmatprep.subr.bf16.mxu0 0
      %1936 = vmatpush1.bf16.xpose.msra.mxu0 %v1933
      %1937 = vmatprep.subr.bf16.mxu0 0
      %1938 = vmatpush1.bf16.xpose.msra.mxu0 0
      %1939 = vmatprep.subr.bf16.mxu0 0
      %1940 = vmatpush1.bf16.xpose.msra.mxu0 0
      %1941 = vmatprep.subr.bf16.mxu0 0
      %1942 = vmatpush1.bf16.xpose.msra.mxu0 0
      %1943 = vmatprep.subr.bf16.mxu0 0
      %1944 = vmatpush1.bf16.xpose.msra.mxu0 0
      %1945 = vmatprep.subr.bf16.mxu0 0
      %1946 = vmatpush1.bf16.xpose.msra.mxu0 0
      %1947 = vmatprep.subr.bf16.mxu0 0
      %1948 = vmatpush1.bf16.xpose.msra.mxu0 0
      %1949 = vmatprep.subr.bf16.mxu0 0
      %1950 = vmatpush1.bf16.xpose.msra.mxu0 0
      %1951 = vmatprep.subr.bf16.mxu0 0
      %1952 = vmatpush1.bf16.xpose.msra.mxu0 0
      %1953 = vmatprep.subr.bf16.mxu0 0
      %1954 = vmatpush1.bf16.xpose.msra.mxu0 0
      %1955 = vmatprep.subr.bf16.mxu0 0
      %1956 = vmatpush1.bf16.xpose.msra.mxu0 0
      %1957 = vmatprep.subr.bf16.mxu0 0
      %1958 = vmatpush1.bf16.xpose.msra.mxu0 0
      %1959 = vmatprep.subr.bf16.mxu0 0
      %1960 = vmatpush1.bf16.xpose.msra.mxu0 0
      %1961 = vmatprep.subr.bf16.mxu0 0
      %1962 = vmatpush1.bf16.xpose.msra.mxu0 0
      %1963 = vmatprep.subr.bf16.mxu0 0
      %1964 = vmatpush1.bf16.xpose.msra.mxu0 0
      %1965 = vmatprep.subr.bf16.mxu0 0
      %1966 = vmatpush1.bf16.xpose.msra.mxu0 0
      %1967 = vmatprep.mubr.bf16.mxu0 0
      %1968 = vmatmul.mubr.bf16.gmra.mrb[0].mxu0 %v1930
      %v1969 = vpop.f32.mrb[0].mxu0
      %v1970 = vadd.f32 0.0, %v1969
      %v1971 = vpop.f32.mrb[0].mxu0
      %v1972 = vpop.f32.mrb[0].mxu0
      %v1973 = vpop.f32.mrb[0].mxu0
      %1974 = vdwg.mxu0
      %1975 = vrot.lane.b32.xlu0 %v1605, 112
      %v1976 = vpop.permute.xlu0 %1975
      %1977 = vrot.lane.b32.xlu0 %v1606, 112
      %v1978 = vpop.permute.xlu0 %1977
      %v1980 = vsel %vm876, %v1976, 0
      %v1983 = vsel %vm876, %v1978, 0
      %1985 = vmatprep.subr.bf16.mxu0 0
      %1986 = vmatpush1.bf16.xpose.msra.mxu0 %v1983
      %1987 = vmatprep.subr.bf16.mxu0 0
      %1988 = vmatpush1.bf16.xpose.msra.mxu0 0
      %1989 = vmatprep.subr.bf16.mxu0 0
      %1990 = vmatpush1.bf16.xpose.msra.mxu0 0
      %1991 = vmatprep.subr.bf16.mxu0 0
      %1992 = vmatpush1.bf16.xpose.msra.mxu0 0
      %1993 = vmatprep.subr.bf16.mxu0 0
      %1994 = vmatpush1.bf16.xpose.msra.mxu0 0
      %1995 = vmatprep.subr.bf16.mxu0 0
      %1996 = vmatpush1.bf16.xpose.msra.mxu0 0
      %1997 = vmatprep.subr.bf16.mxu0 0
      %1998 = vmatpush1.bf16.xpose.msra.mxu0 0
      %1999 = vmatprep.subr.bf16.mxu0 0
      %2000 = vmatpush1.bf16.xpose.msra.mxu0 0
      %2001 = vmatprep.subr.bf16.mxu0 0
      %2002 = vmatpush1.bf16.xpose.msra.mxu0 0
      %2003 = vmatprep.subr.bf16.mxu0 0
      %2004 = vmatpush1.bf16.xpose.msra.mxu0 0
      %2005 = vmatprep.subr.bf16.mxu0 0
      %2006 = vmatpush1.bf16.xpose.msra.mxu0 0
      %2007 = vmatprep.subr.bf16.mxu0 0
      %2008 = vmatpush1.bf16.xpose.msra.mxu0 0
      %2009 = vmatprep.subr.bf16.mxu0 0
      %2010 = vmatpush1.bf16.xpose.msra.mxu0 0
      %2011 = vmatprep.subr.bf16.mxu0 0
      %2012 = vmatpush1.bf16.xpose.msra.mxu0 0
      %2013 = vmatprep.subr.bf16.mxu0 0
      %2014 = vmatpush1.bf16.xpose.msra.mxu0 0
      %2015 = vmatprep.subr.bf16.mxu0 0
      %2016 = vmatpush1.bf16.xpose.msra.mxu0 0
      %2017 = vmatprep.mubr.bf16.mxu0 0
      %2018 = vmatmul.mubr.bf16.gmra.mrb[0].mxu0 %v1980
      %v2019 = vpop.f32.mrb[0].mxu0
      %v2020 = vadd.f32 %v1970, %v2019
      %v2021 = vpop.f32.mrb[0].mxu0
      %v2022 = vpop.f32.mrb[0].mxu0
      %v2023 = vpop.f32.mrb[0].mxu0
      %2024 = vdwg.mxu0
      %v2025 = vmul.f32 %v2020, 0.25
      %v2026 = vsel %vm1333, %v2025, -inf
      %2027 = vmax.xlane.f32.xlu0 %v2026
      %v2028 = vpop.xlane.xlu0 %2027
      %v2029 = vsub.f32 %v2025, %v2028
      %v2030 = vmul.f32 %v2029, 1.442695
      %v2031 = vpow.pop %v2030
      %v2032 = vsel %vm1333, %v2031, 0.0
      %2033 = vadd.xlane.f32.xlu0 %v2032
      %v2034 = vpop.xlane.xlu0 %2033
      %v2035 = vrcp.pop %v2034
      %v2036 = vmul.f32 %v2031, %v2035
      %v2037 = vpack.c.bf16 %v2036, %v2036
      %2038 = vrot.lane.b32.xlu0 %v1714, 80
      %v2039 = vpop.permute.xlu0 %2038
      %v2042 = vsel %vm1333, %v2037, 0
      %2044 = vmatprep.subr.bf16.mxu0 0
      %2045 = vmatpush1.bf16.msra.mxu0 %v2039
      %2046 = vmatprep.subr.bf16.mxu0 0
      %2047 = vmatpush1.bf16.msra.mxu0 0
      %2048 = vmatprep.subr.bf16.mxu0 0
      %2049 = vmatpush1.bf16.msra.mxu0 0
      %2050 = vmatprep.subr.bf16.mxu0 0
      %2051 = vmatpush1.bf16.msra.mxu0 0
      %2052 = vmatprep.subr.bf16.mxu0 0
      %2053 = vmatpush1.bf16.msra.mxu0 0
      %2054 = vmatprep.subr.bf16.mxu0 0
      %2055 = vmatpush1.bf16.msra.mxu0 0
      %2056 = vmatprep.subr.bf16.mxu0 0
      %2057 = vmatpush1.bf16.msra.mxu0 0
      %2058 = vmatprep.subr.bf16.mxu0 0
      %2059 = vmatpush1.bf16.msra.mxu0 0
      %2060 = vmatprep.subr.bf16.mxu0 0
      %2061 = vmatpush1.bf16.msra.mxu0 0
      %2062 = vmatprep.subr.bf16.mxu0 0
      %2063 = vmatpush1.bf16.msra.mxu0 0
      %2064 = vmatprep.subr.bf16.mxu0 0
      %2065 = vmatpush1.bf16.msra.mxu0 0
      %2066 = vmatprep.subr.bf16.mxu0 0
      %2067 = vmatpush1.bf16.msra.mxu0 0
      %2068 = vmatprep.subr.bf16.mxu0 0
      %2069 = vmatpush1.bf16.msra.mxu0 0
      %2070 = vmatprep.subr.bf16.mxu0 0
      %2071 = vmatpush1.bf16.msra.mxu0 0
      %2072 = vmatprep.subr.bf16.mxu0 0
      %2073 = vmatpush1.bf16.msra.mxu0 0
      %2074 = vmatprep.subr.bf16.mxu0 0
      %2075 = vmatpush1.bf16.msra.mxu0 0
      %2076 = vmatprep.mubr.bf16.mxu0 0
      %2077 = vmatmul.mubr.bf16.gmra.mrb[0].mxu0 %v2042
      %v2078 = vpop.f32.mrb[0].mxu0
      %v2079 = vadd.f32 0.0, %v2078
      %v2080 = vpop.f32.mrb[0].mxu0
      %v2081 = vpop.f32.mrb[0].mxu0
      %v2082 = vpop.f32.mrb[0].mxu0
      %2083 = vdwg.mxu0
      %2084 = vrot.lane.b32.xlu0 %v1607, 104
      %v2085 = vpop.permute.xlu0 %2084
      %2086 = vrot.lane.b32.xlu0 %v1608, 104
      %v2087 = vpop.permute.xlu0 %2086
      %v2089 = vsel %vm876, %v2085, 0
      %v2092 = vsel %vm876, %v2087, 0
      %2094 = vmatprep.subr.bf16.mxu0 0
      %2095 = vmatpush1.bf16.xpose.msra.mxu0 %v2092
      %2096 = vmatprep.subr.bf16.mxu0 0
      %2097 = vmatpush1.bf16.xpose.msra.mxu0 0
      %2098 = vmatprep.subr.bf16.mxu0 0
      %2099 = vmatpush1.bf16.xpose.msra.mxu0 0
      %2100 = vmatprep.subr.bf16.mxu0 0
      %2101 = vmatpush1.bf16.xpose.msra.mxu0 0
      %2102 = vmatprep.subr.bf16.mxu0 0
      %2103 = vmatpush1.bf16.xpose.msra.mxu0 0
      %2104 = vmatprep.subr.bf16.mxu0 0
      %2105 = vmatpush1.bf16.xpose.msra.mxu0 0
      %2106 = vmatprep.subr.bf16.mxu0 0
      %2107 = vmatpush1.bf16.xpose.msra.mxu0 0
      %2108 = vmatprep.subr.bf16.mxu0 0
      %2109 = vmatpush1.bf16.xpose.msra.mxu0 0
      %2110 = vmatprep.subr.bf16.mxu0 0
      %2111 = vmatpush1.bf16.xpose.msra.mxu0 0
      %2112 = vmatprep.subr.bf16.mxu0 0
      %2113 = vmatpush1.bf16.xpose.msra.mxu0 0
      %2114 = vmatprep.subr.bf16.mxu0 0
      %2115 = vmatpush1.bf16.xpose.msra.mxu0 0
      %2116 = vmatprep.subr.bf16.mxu0 0
      %2117 = vmatpush1.bf16.xpose.msra.mxu0 0
      %2118 = vmatprep.subr.bf16.mxu0 0
      %2119 = vmatpush1.bf16.xpose.msra.mxu0 0
      %2120 = vmatprep.subr.bf16.mxu0 0
      %2121 = vmatpush1.bf16.xpose.msra.mxu0 0
      %2122 = vmatprep.subr.bf16.mxu0 0
      %2123 = vmatpush1.bf16.xpose.msra.mxu0 0
      %2124 = vmatprep.subr.bf16.mxu0 0
      %2125 = vmatpush1.bf16.xpose.msra.mxu0 0
      %2126 = vmatprep.mubr.bf16.mxu0 0
      %2127 = vmatmul.mubr.bf16.gmra.mrb[0].mxu0 %v2089
      %v2128 = vpop.f32.mrb[0].mxu0
      %v2129 = vadd.f32 0.0, %v2128
      %v2130 = vpop.f32.mrb[0].mxu0
      %v2131 = vpop.f32.mrb[0].mxu0
      %v2132 = vpop.f32.mrb[0].mxu0
      %2133 = vdwg.mxu0
      %2134 = vrot.lane.b32.xlu0 %v1605, 104
      %v2135 = vpop.permute.xlu0 %2134
      %2136 = vrot.lane.b32.xlu0 %v1606, 104
      %v2137 = vpop.permute.xlu0 %2136
      %v2139 = vsel %vm876, %v2135, 0
      %v2142 = vsel %vm876, %v2137, 0
      %2144 = vmatprep.subr.bf16.mxu0 0
      %2145 = vmatpush1.bf16.xpose.msra.mxu0 %v2142
      %2146 = vmatprep.subr.bf16.mxu0 0
      %2147 = vmatpush1.bf16.xpose.msra.mxu0 0
      %2148 = vmatprep.subr.bf16.mxu0 0
      %2149 = vmatpush1.bf16.xpose.msra.mxu0 0
      %2150 = vmatprep.subr.bf16.mxu0 0
      %2151 = vmatpush1.bf16.xpose.msra.mxu0 0
      %2152 = vmatprep.subr.bf16.mxu0 0
      %2153 = vmatpush1.bf16.xpose.msra.mxu0 0
      %2154 = vmatprep.subr.bf16.mxu0 0
      %2155 = vmatpush1.bf16.xpose.msra.mxu0 0
      %2156 = vmatprep.subr.bf16.mxu0 0
      %2157 = vmatpush1.bf16.xpose.msra.mxu0 0
      %2158 = vmatprep.subr.bf16.mxu0 0
      %2159 = vmatpush1.bf16.xpose.msra.mxu0 0
      %2160 = vmatprep.subr.bf16.mxu0 0
      %2161 = vmatpush1.bf16.xpose.msra.mxu0 0
      %2162 = vmatprep.subr.bf16.mxu0 0
      %2163 = vmatpush1.bf16.xpose.msra.mxu0 0
      %2164 = vmatprep.subr.bf16.mxu0 0
      %2165 = vmatpush1.bf16.xpose.msra.mxu0 0
      %2166 = vmatprep.subr.bf16.mxu0 0
      %2167 = vmatpush1.bf16.xpose.msra.mxu0 0
      %2168 = vmatprep.subr.bf16.mxu0 0
      %2169 = vmatpush1.bf16.xpose.msra.mxu0 0
      %2170 = vmatprep.subr.bf16.mxu0 0
      %2171 = vmatpush1.bf16.xpose.msra.mxu0 0
      %2172 = vmatprep.subr.bf16.mxu0 0
      %2173 = vmatpush1.bf16.xpose.msra.mxu0 0
      %2174 = vmatprep.subr.bf16.mxu0 0
      %2175 = vmatpush1.bf16.xpose.msra.mxu0 0
      %2176 = vmatprep.mubr.bf16.mxu0 0
      %2177 = vmatmul.mubr.bf16.gmra.mrb[0].mxu0 %v2139
      %v2178 = vpop.f32.mrb[0].mxu0
      %v2179 = vadd.f32 %v2129, %v2178
      %v2180 = vpop.f32.mrb[0].mxu0
      %v2181 = vpop.f32.mrb[0].mxu0
      %v2182 = vpop.f32.mrb[0].mxu0
      %2183 = vdwg.mxu0
      %v2184 = vmul.f32 %v2179, 0.25
      %v2185 = vsel %vm1333, %v2184, -inf
      %2186 = vmax.xlane.f32.xlu0 %v2185
      %v2187 = vpop.xlane.xlu0 %2186
      %v2188 = vsub.f32 %v2184, %v2187
      %v2189 = vmul.f32 %v2188, 1.442695
      %v2190 = vpow.pop %v2189
      %v2191 = vsel %vm1333, %v2190, 0.0
      %2192 = vadd.xlane.f32.xlu0 %v2191
      %v2193 = vpop.xlane.xlu0 %2192
      %v2194 = vrcp.pop %v2193
      %v2195 = vmul.f32 %v2190, %v2194
      %v2196 = vpack.c.bf16 %v2195, %v2195
      %2197 = vrot.lane.b32.xlu0 %v1714, 72
      %v2198 = vpop.permute.xlu0 %2197
      %v2201 = vsel %vm1333, %v2196, 0
      %2203 = vmatprep.subr.bf16.mxu0 0
      %2204 = vmatpush1.bf16.msra.mxu0 %v2198
      %2205 = vmatprep.subr.bf16.mxu0 0
      %2206 = vmatpush1.bf16.msra.mxu0 0
      %2207 = vmatprep.subr.bf16.mxu0 0
      %2208 = vmatpush1.bf16.msra.mxu0 0
      %2209 = vmatprep.subr.bf16.mxu0 0
      %2210 = vmatpush1.bf16.msra.mxu0 0
      %2211 = vmatprep.subr.bf16.mxu0 0
      %2212 = vmatpush1.bf16.msra.mxu0 0
      %2213 = vmatprep.subr.bf16.mxu0 0
      %2214 = vmatpush1.bf16.msra.mxu0 0
      %2215 = vmatprep.subr.bf16.mxu0 0
      %2216 = vmatpush1.bf16.msra.mxu0 0
      %2217 = vmatprep.subr.bf16.mxu0 0
      %2218 = vmatpush1.bf16.msra.mxu0 0
      %2219 = vmatprep.subr.bf16.mxu0 0
      %2220 = vmatpush1.bf16.msra.mxu0 0
      %2221 = vmatprep.subr.bf16.mxu0 0
      %2222 = vmatpush1.bf16.msra.mxu0 0
      %2223 = vmatprep.subr.bf16.mxu0 0
      %2224 = vmatpush1.bf16.msra.mxu0 0
      %2225 = vmatprep.subr.bf16.mxu0 0
      %2226 = vmatpush1.bf16.msra.mxu0 0
      %2227 = vmatprep.subr.bf16.mxu0 0
      %2228 = vmatpush1.bf16.msra.mxu0 0
      %2229 = vmatprep.subr.bf16.mxu0 0
      %2230 = vmatpush1.bf16.msra.mxu0 0
      %2231 = vmatprep.subr.bf16.mxu0 0
      %2232 = vmatpush1.bf16.msra.mxu0 0
      %2233 = vmatprep.subr.bf16.mxu0 0
      %2234 = vmatpush1.bf16.msra.mxu0 0
      %2235 = vmatprep.mubr.bf16.mxu0 0
      %2236 = vmatmul.mubr.bf16.gmra.mrb[0].mxu0 %v2201
      %v2237 = vpop.f32.mrb[0].mxu0
      %v2238 = vadd.f32 0.0, %v2237
      %v2239 = vpop.f32.mrb[0].mxu0
      %v2240 = vpop.f32.mrb[0].mxu0
      %v2241 = vpop.f32.mrb[0].mxu0
      %2242 = vdwg.mxu0
      %2244 = vrot.lane.b32.xlu0 %v1920, 8
      %v2245 = vpop.permute.xlu0 %2244
      %2248 = vrot.lane.b32.xlu0 %v2079, 16
      %v2249 = vpop.permute.xlu0 %2248
      %2252 = vrot.lane.b32.xlu0 %v2238, 24
      %v2253 = vpop.permute.xlu0 %2252
      %v2255 = vsel %vm876, %v1757, %v2245
      %v2256 = vsel %vm1333, %v2255, %v2249
      %v2257 = vsel %vm1335, %v2256, %v2253
      %v2258 = vadd.f32 %v1362, %v2257
      %s2259 = scalar_lea.vmem %s21, 2
      %v2260 = vld [vmem:[%s2259] sm:$0x3]
      %v2261 = vsel %vm769, %v2258, 0.0
      %2262 = vadd.xlane.f32.xlu0 %v2261
      %v2263 = vpop.xlane.xlu0 %2262
      %v2264 = vmul.f32 %v2263, %v1342
      %v2265 = vsub.f32 %v2258, %v2264
      %v2266 = vmul.f32 %v2265, %v2265
      %v2267 = vsel %vm769, %v2266, 0.0
      %2268 = vadd.xlane.f32.xlu0 %v2267
      %v2269 = vpop.xlane.xlu0 %2268
      %v2270 = vmul.f32 %v2269, %v1342
      %v2271 = vadd.f32 %v2270, 1e-05
      %v2272 = vrsqrt.pop %v2271
      %v2273 = vmul.f32 %v2265, %v2272
      %v2274 = vlaneseq
      %v2275 = vshrl.u32 %v2274, 7
      %v2276 = vsub.s32 0, %v2275
      %v2277 = vrot.slane %v2260, %v2276
      %v2278 = vmul.f32 %v2273, %v2277
      %v2279 = vlaneseq
      %v2280 = vshrl.u32 %v2279, 7
      %v2281 = vsub.s32 1, %v2280
      %v2282 = vrot.slane %v2260, %v2281
      %v2283 = vadd.f32 %v2278, %v2282
      %v2284 = vpack.c.bf16 %v2283, %v2283
      %v2285 = vld [vmem:[%s17] sm:$0xff]
      %v2286 = vld [vmem:[%s17 + $0x8] sm:$0xff]
      %v2287 = vld [vmem:[%s17 + $0x10] sm:$0xff]
      %v2288 = vld [vmem:[%s17 + $0x18] sm:$0xff]
      %v2289 = vpack.c.bf16 %v2286, %v2285
      %v2290 = vpack.c.bf16 %v2288, %v2287
      %v2291 = vld [vmem:[%s18] sm:$0x1]
      %v2293 = vlaneseq
      %v2294 = vshrl.u32 %v2293, 7
      %v2295 = vsub.s32 0, %v2294
      %v2296 = vrot.slane %v2291, %v2295
      %v2299 = vsel %vm769, %v2284, 0
      %2301 = vmatprep.subr.bf16.mxu0 0
      %2302 = vmatpush1.bf16.msra.mxu0 %v2289
      %2303 = vmatprep.subr.bf16.mxu0 0
      %2304 = vmatpush1.bf16.msra.mxu0 %v2290
      %2305 = vmatprep.subr.bf16.mxu0 0
      %2306 = vmatpush1.bf16.msra.mxu0 0
      %2307 = vmatprep.subr.bf16.mxu0 0
      %2308 = vmatpush1.bf16.msra.mxu0 0
      %2309 = vmatprep.subr.bf16.mxu0 0
      %2310 = vmatpush1.bf16.msra.mxu0 0
      %2311 = vmatprep.subr.bf16.mxu0 0
      %2312 = vmatpush1.bf16.msra.mxu0 0
      %2313 = vmatprep.subr.bf16.mxu0 0
      %2314 = vmatpush1.bf16.msra.mxu0 0
      %2315 = vmatprep.subr.bf16.mxu0 0
      %2316 = vmatpush1.bf16.msra.mxu0 0
      %2317 = vmatprep.subr.bf16.mxu0 0
      %2318 = vmatpush1.bf16.msra.mxu0 0
      %2319 = vmatprep.subr.bf16.mxu0 0
      %2320 = vmatpush1.bf16.msra.mxu0 0
      %2321 = vmatprep.subr.bf16.mxu0 0
      %2322 = vmatpush1.bf16.msra.mxu0 0
      %2323 = vmatprep.subr.bf16.mxu0 0
      %2324 = vmatpush1.bf16.msra.mxu0 0
      %2325 = vmatprep.subr.bf16.mxu0 0
      %2326 = vmatpush1.bf16.msra.mxu0 0
      %2327 = vmatprep.subr.bf16.mxu0 0
      %2328 = vmatpush1.bf16.msra.mxu0 0
      %2329 = vmatprep.subr.bf16.mxu0 0
      %2330 = vmatpush1.bf16.msra.mxu0 0
      %2331 = vmatprep.subr.bf16.mxu0 0
      %2332 = vmatpush1.bf16.msra.mxu0 0
      %2333 = vmatprep.mubr.bf16.mxu0 0
      %2334 = vmatmul.mubr.bf16.gmra.mrb[0].mxu0 %v2299
      %v2335 = vpop.f32.mrb[0].mxu0
      %v2336 = vadd.f32 %v2296, %v2335
      %v2337 = vpop.f32.mrb[0].mxu0
      %v2338 = vpop.f32.mrb[0].mxu0
      %v2339 = vpop.f32.mrb[0].mxu0
      %2340 = vdwg.mxu0
      %v2341 = vmax.f32 %v2336, 0.0
      %v2342 = vpack.c.bf16 %v2341, %v2341
      %v2343 = vld [vmem:[%s19] sm:$0xff]
      %v2344 = vld [vmem:[%s19 + $0x8] sm:$0xff]
      %v2345 = vld [vmem:[%s19 + $0x10] sm:$0xff]
      %v2346 = vld [vmem:[%s19 + $0x18] sm:$0xff]
      %v2347 = vld [vmem:[%s19 + $0x20] sm:$0xff]
      %v2348 = vld [vmem:[%s19 + $0x28] sm:$0xff]
      %v2349 = vld [vmem:[%s19 + $0x30] sm:$0xff]
      %v2350 = vld [vmem:[%s19 + $0x38] sm:$0xff]
      %v2351 = vpack.c.bf16 %v2344, %v2343
      %v2352 = vpack.c.bf16 %v2346, %v2345
      %v2353 = vpack.c.bf16 %v2348, %v2347
      %v2354 = vpack.c.bf16 %v2350, %v2349
      %v2355 = vld [vmem:[%s20] sm:$0x1]
      %v2357 = vlaneseq
      %v2358 = vshrl.u32 %v2357, 7
      %v2359 = vsub.s32 0, %v2358
      %v2360 = vrot.slane %v2355, %v2359
      %vm2362 = vcmask 523264
      %v2364 = vsel %vm2362, %v2342, 0
      %2366 = vmatprep.subr.bf16.mxu0 0
      %2367 = vmatpush1.bf16.msra.mxu0 %v2351
      %2368 = vmatprep.subr.bf16.mxu0 0
      %2369 = vmatpush1.bf16.msra.mxu0 %v2352
      %2370 = vmatprep.subr.bf16.mxu0 0
      %2371 = vmatpush1.bf16.msra.mxu0 %v2353
      %2372 = vmatprep.subr.bf16.mxu0 0
      %2373 = vmatpush1.bf16.msra.mxu0 %v2354
      %2374 = vmatprep.subr.bf16.mxu0 0
      %2375 = vmatpush1.bf16.msra.mxu0 0
      %2376 = vmatprep.subr.bf16.mxu0 0
      %2377 = vmatpush1.bf16.msra.mxu0 0
      %2378 = vmatprep.subr.bf16.mxu0 0
      %2379 = vmatpush1.bf16.msra.mxu0 0
      %2380 = vmatprep.subr.bf16.mxu0 0
      %2381 = vmatpush1.bf16.msra.mxu0 0
      %2382 = vmatprep.subr.bf16.mxu0 0
      %2383 = vmatpush1.bf16.msra.mxu0 0
      %2384 = vmatprep.subr.bf16.mxu0 0
      %2385 = vmatpush1.bf16.msra.mxu0 0
      %2386 = vmatprep.subr.bf16.mxu0 0
      %2387 = vmatpush1.bf16.msra.mxu0 0
      %2388 = vmatprep.subr.bf16.mxu0 0
      %2389 = vmatpush1.bf16.msra.mxu0 0
      %2390 = vmatprep.subr.bf16.mxu0 0
      %2391 = vmatpush1.bf16.msra.mxu0 0
      %2392 = vmatprep.subr.bf16.mxu0 0
      %2393 = vmatpush1.bf16.msra.mxu0 0
      %2394 = vmatprep.subr.bf16.mxu0 0
      %2395 = vmatpush1.bf16.msra.mxu0 0
      %2396 = vmatprep.subr.bf16.mxu0 0
      %2397 = vmatpush1.bf16.msra.mxu0 0
      %2398 = vmatprep.mubr.bf16.mxu0 0
      %2399 = vmatmul.mubr.bf16.gmra.mrb[0].mxu0 %v2364
      %v2400 = vpop.f32.mrb[0].mxu0
      %v2401 = vadd.f32 %v2360, %v2400
      %v2402 = vpop.f32.mrb[0].mxu0
      %v2403 = vpop.f32.mrb[0].mxu0
      %v2404 = vpop.f32.mrb[0].mxu0
      %2405 = vdwg.mxu0
      %v2406 = vadd.f32 %v2283, %v2401
      %s2407 = scalar_lea.vmem %s21, 4
      %v2408 = vld [vmem:[%s2407] sm:$0x3]
      %v2409 = vsel %vm769, %v2406, 0.0
      %2410 = vadd.xlane.f32.xlu0 %v2409
      %v2411 = vpop.xlane.xlu0 %2410
      %v2412 = vmul.f32 %v2411, %v1342
      %v2413 = vsub.f32 %v2406, %v2412
      %v2414 = vmul.f32 %v2413, %v2413
      %v2415 = vsel %vm769, %v2414, 0.0
      %2416 = vadd.xlane.f32.xlu0 %v2415
      %v2417 = vpop.xlane.xlu0 %2416
      %v2418 = vmul.f32 %v2417, %v1342
      %v2419 = vadd.f32 %v2418, 1e-05
      %v2420 = vrsqrt.pop %v2419
      %v2421 = vmul.f32 %v2413, %v2420
      %v2422 = vlaneseq
      %v2423 = vshrl.u32 %v2422, 7
      %v2424 = vsub.s32 0, %v2423
      %v2425 = vrot.slane %v2408, %v2424
      %v2426 = vmul.f32 %v2421, %v2425
      %v2427 = vlaneseq
      %v2428 = vshrl.u32 %v2427, 7
      %v2429 = vsub.s32 1, %v2428
      %v2430 = vrot.slane %v2408, %v2429
      %v2431 = vadd.f32 %v2426, %v2430
      %2432 = vst.msk [vmem:[%s752] sm:$0xff] %vm769, %v2431
      %p2433 = scmp.lt.s32.totalorder %s33, 1
      %s2434 = scalar_select %p2433, %s33, 1
      %s2435 = smul.addr %s2434, 8
      %s2436 = scalar_lea.vmem %s22, %s2435
      // Predicated region
      $region109: #{decoder_layer_forward_pallas.1} parent=107 // pred_check
        %p2437 = pneg %p538
      $region110: #{decoder_layer_forward_pallas.1} parent=107 // pred_check_branch
        %2439 = sbr.rel (%p2437) target = $region112
      $region111: #{decoder_layer_forward_pallas.1} parent=107 // pred_region
        _
      $region112: #{decoder_layer_forward_pallas.1} parent=107 // pred_fallthru
        _
    $region108: #{decoder_layer_forward_pallas.1} parent=5 // pred_fallthru
      _
    %p2440 = scmp.le.s32.totalorder 2, %s28
    // Predicated region
    $region113: #{decoder_layer_forward_pallas.1} parent=5 // pred_check
      %p2441 = pneg %p2440
    $region114: #{decoder_layer_forward_pallas.1} parent=5 // pred_check_branch
      %2443 = sbr.rel (%p2441) target = $region116
    $region115: #{decoder_layer_forward_pallas.1} parent=5 // pred_region
      %s2444 = ssub.s32 %s28, 2
      // Predicated region
      $region117: #{decoder_layer_forward_pallas.1} parent=115 // pred_check
        %p2445 = pneg %p544
      $region118: #{decoder_layer_forward_pallas.1} parent=115 // pred_check_branch
        %2447 = sbr.rel (%p2445) target = $region120
      $region119: #{decoder_layer_forward_pallas.1} parent=115 // pred_region
        %p2448 = scmp.lt.s32.totalorder %s34, 1
        %s2449 = scalar_select %p2448, %s34, 1
        %s2450 = smul.addr %s2449, 8
        %s2451 = scalar_lea.vmem %s22, %s2450
      $region120: #{decoder_layer_forward_pallas.1} parent=115 // pred_fallthru
        _
    $region116: #{decoder_layer_forward_pallas.1} parent=5 // pred_fallthru
      _
  $region6: #{decoder_layer_forward_pallas.1} parent=0 // loop_footer
    %s32 = sadd.s32 1, %s28
  $region7: #{decoder_layer_forward_pallas.1} parent=0 // loop_footer_branch
    %27 = sbr.rel target = $region3
  $region8: #{decoder_layer_forward_pallas.1} parent=0 // loop_exit
    _

</llo_original>
